<compile_context>
chip_gen: v7x
topology: tpu7x:2x2x1
jax: 0.10.0
libtpu: 0.0.40
codegen_flags: <defaults>
</compile_context>

<pallas_src>
import functools
import math

import jax
import jax.numpy as jnp
from jax.experimental import pallas as pl
from jax.experimental.pallas import tpu as pltpu

# name, cin, cout, is_transposed_conv, relu
_LAYERS = (
    ("conv",   3,  4,  False, False),
    ("block1", 4,  8,  False, True),
    ("block2", 8,  16, False, True),
    ("block3", 16, 32, False, True),
    ("block6", 32, 16, True,  True),
    ("block7", 16, 8,  True,  True),
    ("block8", 8,  4,  True,  True),
    ("dconv",  4,  3,  True,  False),
)

_C_MAX = 32                                   # max(cin, cout) over all layers


def _tap_stride(cin):
    return ((cin + 7) // 8) * 8               # 8-aligned rows per tap block (f32 vreg rows)


_K_LIST = [9 * _tap_stride(cin) for _, cin, _, _, _ in _LAYERS]
_K_OFFS = [sum(_K_LIST[:i]) for i in range(len(_LAYERS))]
_K_TOTAL = sum(_K_LIST)                        # 936
_K_MAX = max(_K_LIST)                          # 288


# ---------------------------------------------------------------------------
# Fused kernel: entire Deep_CNN forward for block_n images, VMEM-resident.
# ---------------------------------------------------------------------------
def _deep_cnn_kernel(x_ref, w_ref, bias_ref, o_ref, scr_ref, patch_ref,
                     *, H, W, pad, block_n):
    hw = H * W
    seg = hw + 2 * pad                                    # per-image staging segment

    # Zero only the halo strips of the staging buffer (interior is always
    # overwritten) and the whole patch scratch (so zero-weight padding rows
    # never see uninitialized VMEM).  Done per grid step (scratch is per-core).
    for img in range(block_n):
        base = img * seg
        scr_ref[:, base:base + pad] = jnp.zeros((_C_MAX, pad), scr_ref.dtype)
        scr_ref[:, base + pad + hw:base + seg] = jnp.zeros((_C_MAX, pad), scr_ref.dtype)
    patch_ref[...] = jnp.zeros(patch_ref.shape, patch_ref.dtype)

    # Column-validity masks.  Row (dy) out-of-image handling comes from the
    # zero halo, so only dx = +-1 need a mask; dx == 0 taps need none.
    lane = jax.lax.broadcasted_iota(jnp.int32, (1, hw), 1)
    w_idx = lane % W
    left_ok = w_idx >= 1                                   # for dx = -1
    right_ok = w_idx <= W - 2                              # for dx = +1

    taps = []
    for dy in (-1, 0, 1):
        for dx in (-1, 0, 1):
            m = left_ok if dx == -1 else (right_ok if dx == 1 else None)
            taps.append((dy * W + dx, m))

    # Stage the input: channels on sublanes, flattened H*W on lanes (f32).
    cin0 = x_ref.shape[1]
    for img in range(block_n):
        base = img * seg
        scr_ref[0:cin0, base + pad:base + pad + hw] = x_ref[img]

    n_layers = len(_LAYERS)
    for li, (_, cin, cout, _, relu) in enumerate(_LAYERS):
        stride = _tap_stride(cin)
        K = 9 * stride
        koff = _K_OFFS[li]

        # In-VMEM im2col: 9 shifted windows of the staged activation -> patch.
        for t, (shift, mask) in enumerate(taps):
            for img in range(block_n):
                base = img * seg
                src = scr_ref[0:cin, base + pad + shift:base + pad + shift + hw]
                if mask is not None:
                    src = jnp.where(mask, src, 0.0)
                patch_ref[t * stride:t * stride + cin, img * hw:(img + 1) * hw] = src

        # One MXU matmul per layer: (cout, K) x (K, block_n*hw), f32 accumulate.
        w_l = w_ref[0:cout, koff:koff + K]                       # bf16
        p = patch_ref[0:K, :].astype(jnp.bfloat16)               # single cast per layer
        acc = jnp.dot(w_l, p, preferred_element_type=jnp.float32)

        acc = acc + bias_ref[0:cout, li:li + 1]                  # f32 bias, lane-broadcast
        if relu:
            acc = jnp.maximum(acc, 0.0)

        if li + 1 < n_layers:
            for img in range(block_n):
                base = img * seg
                scr_ref[0:cout, base + pad:base + pad + hw] = acc[:, img * hw:(img + 1) * hw]
        else:
            for img in range(block_n):
                o_ref[img] = acc[:, img * hw:(img + 1) * hw].astype(o_ref.dtype)


# ---------------------------------------------------------------------------
# Wrapper
# ---------------------------------------------------------------------------
def _pick_block_n(n):
    # Pack several images per grid step for big batches, but keep >= 2 grid
    # steps when possible so v7x can shard the batch across its 2 TensorCores.
    if n % 4 == 0 and n >= 8:
        return 4
    if n % 2 == 0 and n >= 4:
        return 2
    return 1


def deep_cnn_forward(params, x_nchw):
    n, c, h, w = x_nchw.shape
    hw = h * w
    pad = w + 1                                # halo large enough for +-(W+1) shifts
    seg = hw + 2 * pad
    block_n = _pick_block_n(n)
    x = x_nchw.reshape(n, c, hw)               # NCHW -> (N, C, H*W), no transpose
    c_out = _LAYERS[-1][2]

    out = pl.pallas_call(
        functools.partial(_deep_cnn_kernel, H=h, W=w, pad=pad, block_n=block_n),
        out_shape=jax.ShapeDtypeStruct((n, c_out, hw), x_nchw.dtype),
        grid=(n // block_n,),
        in_specs=[
            pl.BlockSpec((block_n, c, hw), lambda i: (i, 0, 0)),
            pl.BlockSpec((_C_MAX, _K_TOTAL), lambda i: (0, 0)),          # packed weights
            pl.BlockSpec((_C_MAX, len(_LAYERS)), lambda i: (0, 0)),      # packed biases
        ],
        out_specs=pl.BlockSpec((block_n, c_out, hw), lambda i: (i, 0, 0)),
        scratch_shapes=[
            pltpu.VMEM((_C_MAX, block_n * seg), jnp.float32),            # staged activation (haloed)
            pltpu.VMEM((_K_MAX, block_n * hw), jnp.float32),             # im2col patch
        ],
        compiler_params=pltpu.CompilerParams(
            dimension_semantics=("parallel",),     # v7x: shard batch over 2 TCs
        ),
    )(x, params["w"], params["b"])
    return out.reshape(n, c_out, h, w)


# ---------------------------------------------------------------------------
# Parameter init (PyTorch-style init, packed ONCE into the kernel layout).
# ---------------------------------------------------------------------------
def init_deep_cnn_params(key):
    wblob = jnp.zeros((_C_MAX, _K_TOTAL), jnp.float32)
    bblob = jnp.zeros((_C_MAX, len(_LAYERS)), jnp.float32)
    keys = jax.random.split(key, len(_LAYERS))
    for li, (k, (name, cin, cout, is_t, _)) in enumerate(zip(keys, _LAYERS)):
        kw, kb = jax.random.split(k)
        if is_t:
            # PyTorch ConvTranspose2d: weight (Cin, Cout, 3, 3); fan_in = Cout*9.
            bound = 1.0 / math.sqrt(cout * 9)
            w_t = jax.random.uniform(kw, (cin, cout, 3, 3), jnp.float32, -bound, bound)
            # ConvT(k=3, s=1, p=1) == conv with channel-swapped, spatially-flipped kernel.
            w_conv = jnp.flip(jnp.transpose(w_t, (1, 0, 2, 3)), axis=(2, 3))
        else:
            bound = 1.0 / math.sqrt(cin * 9)
            w_conv = jax.random.uniform(kw, (cout, cin, 3, 3), jnp.float32, -bound, bound)
        b = jax.random.uniform(kb, (cout,), jnp.float32, -bound, bound)

        # Pack as (cout, 9*stride) tap-major with zero channel padding so the
        # kernel can do a single (cout, K) x (K, N) matmul per layer.
        stride = _tap_stride(cin)
        koff = _K_OFFS[li]
        w_taps = jnp.transpose(w_conv, (2, 3, 0, 1)).reshape(9, cout, cin)  # (9, cout, cin)
        for t in range(9):
            col = koff + t * stride
            wblob = wblob.at[0:cout, col:col + cin].set(w_taps[t])
        bblob = bblob.at[0:cout, li].set(b)
    return {"w": wblob.astype(jnp.bfloat16), "b": bblob}


# ---------------------------------------------------------------------------
# Pure-JAX (XLA conv) reference on the same packed weights, for validation.
# ---------------------------------------------------------------------------
def _ref_forward(params, x_nchw):
    x = x_nchw
    for li, (_, cin, cout, _, relu) in enumerate(_LAYERS):
        stride = _tap_stride(cin)
        koff = _K_OFFS[li]
        wl = params["w"].astype(jnp.float32)[0:cout, koff:koff + 9 * stride]
        w_taps = wl.reshape(cout, 9, stride)[:, :, 0:cin]                  # (cout, 9, cin)
        w = jnp.transpose(w_taps.reshape(cout, 3, 3, cin), (0, 3, 1, 2))   # OIHW
        b = params["b"][0:cout, li]
        x = x.astype(jnp.bfloat16).astype(jnp.float32)   # mirror kernel's MXU operand cast
        x = jax.lax.conv_general_dilated(
            x, w, (1, 1), ((1, 1), (1, 1)),
            dimension_numbers=("NCHW", "OIHW", "NCHW"),
            precision=jax.lax.Precision.HIGHEST)
        x = x + b.reshape(1, cout, 1, 1)
        if relu:
            x = jnp.maximum(x, 0.0)
    return x


if __name__ == "__main__":
    key = jax.random.PRNGKey(0)
    pkey, xkey = jax.random.split(key)
    params = init_deep_cnn_params(pkey)
    x = jax.random.normal(xkey, (2, 3, 16, 16), jnp.float32)   # NCHW like PyTorch

    y = jax.jit(deep_cnn_forward)(params, x)
    jax.block_until_ready(y)
    assert y.shape == (2, 3, 16, 16) and y.dtype == jnp.float32

    # Correctness check vs XLA conv (same bf16-rounded operands -> tight bound).
    y_ref = _ref_forward(params, x)
    err = float(jnp.max(jnp.abs(y - y_ref)))
    scale = float(jnp.max(jnp.abs(y_ref)))
    assert err <= 5e-3 * scale + 1e-5, f"kernel/reference mismatch: {err} (scale {scale})"

    print("KERNEL_OK")
</pallas_src>

<mosaic_0001>
module attributes {stable_mosaic.version = 11 : i64} {
  func.func @_deep_cnn_kernel(%arg0: i32, %arg1: memref<1x3x256xf32, #tpu.memory_space<vmem>>, %arg2: memref<32x936xbf16, #tpu.memory_space<vmem>>, %arg3: memref<32x8xf32, #tpu.memory_space<vmem>>, %arg4: memref<1x3x256xf32, #tpu.memory_space<vmem>>, %arg5: memref<32x290xf32, #tpu.memory_space<vmem>>, %arg6: memref<288x256xf32, #tpu.memory_space<vmem>>) attributes {dimension_semantics = [#tpu.dimension_semantics<parallel>], iteration_bounds = array<i64: 2>, scalar_prefetch = 0 : i64, scratch_operands = 2 : i64, tpu.core_type = #tpu.core_type<tc>, window_params = [{transform_indices = @transform_0, window_bounds = array<i64: 1, 3, 256>}, {pipeline_mode = #tpu.pipeline_mode<synchronous>, transform_indices = @transform_1, window_bounds = array<i64: 32, 936>}, {pipeline_mode = #tpu.pipeline_mode<synchronous>, transform_indices = @transform_2, window_bounds = array<i64: 32, 8>}, {transform_indices = @transform_3, window_bounds = array<i64: 1, 3, 256>}]} {
    %cst = arith.constant 0.000000e+00 : f32
    %0 = vector.broadcast %cst : f32 to vector<32x17xf32>
    %c0 = arith.constant 0 : index
    %c0_0 = arith.constant 0 : index
    %1 = vector.load %arg5[%c0, %c0_0] : memref<32x290xf32, #tpu.memory_space<vmem>>, vector<32x17xf32>
    tpu.vector_store %arg5[%c0, %c0_0], %0 {strides = array<i32>} : memref<32x290xf32, #tpu.memory_space<vmem>>, vector<32x17xf32>,
    %cst_1 = arith.constant 0.000000e+00 : f32
    %2 = vector.broadcast %cst_1 : f32 to vector<32x17xf32>
    %c0_2 = arith.constant 0 : index
    %c273 = arith.constant 273 : index
    %3 = vector.load %arg5[%c0_2, %c273] : memref<32x290xf32, #tpu.memory_space<vmem>>, vector<32x17xf32>
    tpu.vector_store %arg5[%c0_2, %c273], %2 {strides = array<i32>} : memref<32x290xf32, #tpu.memory_space<vmem>>, vector<32x17xf32>,
    %cst_3 = arith.constant 0.000000e+00 : f32
    %4 = vector.broadcast %cst_3 : f32 to vector<288x256xf32>
    %c0_4 = arith.constant 0 : index
    %c0_5 = arith.constant 0 : index
    %5 = vector.load %arg6[%c0_4, %c0_5] : memref<288x256xf32, #tpu.memory_space<vmem>>, vector<288x256xf32>
    tpu.vector_store %arg6[%c0_4, %c0_5], %4 {strides = array<i32>} : memref<288x256xf32, #tpu.memory_space<vmem>>, vector<288x256xf32>,
    %6 = tpu.iota {dimensions = array<i32: 1>} : vector<1x256xi32>
    %c16_i32 = arith.constant 16 : i32
    %c0_i32 = arith.constant 0 : i32
    %7 = arith.cmpi eq, %c16_i32, %c0_i32 : i32
    %c1_i32 = arith.constant 1 : i32
    %8 = arith.select %7, %c1_i32, %c16_i32 : i32
    %9 = vector.broadcast %8 : i32 to vector<1x256xi32>
    %10 = arith.remsi %6, %9 : vector<1x256xi32>
    %c0_i32_6 = arith.constant 0 : i32
    %11 = vector.broadcast %c0_i32_6 : i32 to vector<1x256xi32>
    %12 = arith.cmpi ne, %10, %11 : vector<1x256xi32>
    %c0_i32_7 = arith.constant 0 : i32
    %13 = vector.broadcast %c0_i32_7 : i32 to vector<1x256xi32>
    %14 = arith.cmpi slt, %10, %13 : vector<1x256xi32>
    %c0_i32_8 = arith.constant 0 : i32
    %15 = arith.cmpi slt, %8, %c0_i32_8 : i32
    %16 = vector.broadcast %15 : i1 to vector<1x256xi1>
    %17 = vector.broadcast %16 : vector<1x256xi1> to vector<1x256xi1>
    %18 = arith.xori %14, %17 : vector<1x256xi1>
    %19 = arith.andi %18, %12 : vector<1x256xi1>
    %20 = vector.broadcast %8 : i32 to vector<1x256xi32>
    %21 = arith.addi %10, %20 : vector<1x256xi32>
    %22 = arith.select %19, %21, %10 : vector<1x256xi1>, vector<1x256xi32>
    %c1_i32_9 = arith.constant 1 : i32
    %23 = vector.broadcast %c1_i32_9 : i32 to vector<1x256xi32>
    %24 = arith.cmpi sge, %22, %23 : vector<1x256xi32>
    %c14_i32 = arith.constant 14 : i32
    %25 = vector.broadcast %c14_i32 : i32 to vector<1x256xi32>
    %26 = arith.cmpi sle, %22, %25 : vector<1x256xi32>
    %c0_10 = arith.constant 0 : index
    %c0_11 = arith.constant 0 : index
    %c0_12 = arith.constant 0 : index
    %27 = vector.load %arg1[%c0_10, %c0_11, %c0_12] : memref<1x3x256xf32, #tpu.memory_space<vmem>>, vector<1x3x256xf32>
    %28 = vector.shape_cast %27 : vector<1x3x256xf32> to vector<3x256xf32>
    %c0_13 = arith.constant 0 : index
    %c17 = arith.constant 17 : index
    %29 = vector.load %arg5[%c0_13, %c17] : memref<32x290xf32, #tpu.memory_space<vmem>>, vector<3x256xf32>
    tpu.vector_store %arg5[%c0_13, %c17], %28 {strides = array<i32>} : memref<32x290xf32, #tpu.memory_space<vmem>>, vector<3x256xf32>,
    %c0_14 = arith.constant 0 : index
    %c0_15 = arith.constant 0 : index
    %30 = vector.load %arg5[%c0_14, %c0_15] : memref<32x290xf32, #tpu.memory_space<vmem>>, vector<3x256xf32>
    %cst_16 = arith.constant 0.000000e+00 : f32
    %31 = vector.shape_cast %24 : vector<1x256xi1> to vector<1x256xi1>
    %32 = vector.broadcast %31 : vector<1x256xi1> to vector<3x256xi1>
    %33 = vector.broadcast %cst_16 : f32 to vector<3x256xf32>
    %34 = arith.select %32, %30, %33 : vector<3x256xi1>, vector<3x256xf32>
    %c0_17 = arith.constant 0 : index
    %c0_18 = arith.constant 0 : index
    %35 = vector.load %arg6[%c0_17, %c0_18] : memref<288x256xf32, #tpu.memory_space<vmem>>, vector<3x256xf32>
    tpu.vector_store %arg6[%c0_17, %c0_18], %34 {strides = array<i32>} : memref<288x256xf32, #tpu.memory_space<vmem>>, vector<3x256xf32>,
    %c0_19 = arith.constant 0 : index
    %c1 = arith.constant 1 : index
    %36 = vector.load %arg5[%c0_19, %c1] : memref<32x290xf32, #tpu.memory_space<vmem>>, vector<3x256xf32>
    %c8 = arith.constant 8 : index
    %c0_20 = arith.constant 0 : index
    %37 = vector.load %arg6[%c8, %c0_20] : memref<288x256xf32, #tpu.memory_space<vmem>>, vector<3x256xf32>
    tpu.vector_store %arg6[%c8, %c0_20], %36 {strides = array<i32>} : memref<288x256xf32, #tpu.memory_space<vmem>>, vector<3x256xf32>,
    %c0_21 = arith.constant 0 : index
    %c2 = arith.constant 2 : index
    %38 = vector.load %arg5[%c0_21, %c2] : memref<32x290xf32, #tpu.memory_space<vmem>>, vector<3x256xf32>
    %cst_22 = arith.constant 0.000000e+00 : f32
    %39 = vector.shape_cast %26 : vector<1x256xi1> to vector<1x256xi1>
    %40 = vector.broadcast %39 : vector<1x256xi1> to vector<3x256xi1>
    %41 = vector.broadcast %cst_22 : f32 to vector<3x256xf32>
    %42 = arith.select %40, %38, %41 : vector<3x256xi1>, vector<3x256xf32>
    %c16 = arith.constant 16 : index
    %c0_23 = arith.constant 0 : index
    %43 = vector.load %arg6[%c16, %c0_23] : memref<288x256xf32, #tpu.memory_space<vmem>>, vector<3x256xf32>
    tpu.vector_store %arg6[%c16, %c0_23], %42 {strides = array<i32>} : memref<288x256xf32, #tpu.memory_space<vmem>>, vector<3x256xf32>,
    %c0_24 = arith.constant 0 : index
    %c16_25 = arith.constant 16 : index
    %44 = vector.load %arg5[%c0_24, %c16_25] : memref<32x290xf32, #tpu.memory_space<vmem>>, vector<3x256xf32>
    %cst_26 = arith.constant 0.000000e+00 : f32
    %45 = vector.shape_cast %24 : vector<1x256xi1> to vector<1x256xi1>
    %46 = vector.broadcast %45 : vector<1x256xi1> to vector<3x256xi1>
    %47 = vector.broadcast %cst_26 : f32 to vector<3x256xf32>
    %48 = arith.select %46, %44, %47 : vector<3x256xi1>, vector<3x256xf32>
    %c24 = arith.constant 24 : index
    %c0_27 = arith.constant 0 : index
    %49 = vector.load %arg6[%c24, %c0_27] : memref<288x256xf32, #tpu.memory_space<vmem>>, vector<3x256xf32>
    tpu.vector_store %arg6[%c24, %c0_27], %48 {strides = array<i32>} : memref<288x256xf32, #tpu.memory_space<vmem>>, vector<3x256xf32>,
    %c0_28 = arith.constant 0 : index
    %c17_29 = arith.constant 17 : index
    %50 = vector.load %arg5[%c0_28, %c17_29] : memref<32x290xf32, #tpu.memory_space<vmem>>, vector<3x256xf32>
    %c32 = arith.constant 32 : index
    %c0_30 = arith.constant 0 : index
    %51 = vector.load %arg6[%c32, %c0_30] : memref<288x256xf32, #tpu.memory_space<vmem>>, vector<3x256xf32>
    tpu.vector_store %arg6[%c32, %c0_30], %50 {strides = array<i32>} : memref<288x256xf32, #tpu.memory_space<vmem>>, vector<3x256xf32>,
    %c0_31 = arith.constant 0 : index
    %c18 = arith.constant 18 : index
    %52 = vector.load %arg5[%c0_31, %c18] : memref<32x290xf32, #tpu.memory_space<vmem>>, vector<3x256xf32>
    %cst_32 = arith.constant 0.000000e+00 : f32
    %53 = vector.shape_cast %26 : vector<1x256xi1> to vector<1x256xi1>
    %54 = vector.broadcast %53 : vector<1x256xi1> to vector<3x256xi1>
    %55 = vector.broadcast %cst_32 : f32 to vector<3x256xf32>
    %56 = arith.select %54, %52, %55 : vector<3x256xi1>, vector<3x256xf32>
    %c40 = arith.constant 40 : index
    %c0_33 = arith.constant 0 : index
    %57 = vector.load %arg6[%c40, %c0_33] : memref<288x256xf32, #tpu.memory_space<vmem>>, vector<3x256xf32>
    tpu.vector_store %arg6[%c40, %c0_33], %56 {strides = array<i32>} : memref<288x256xf32, #tpu.memory_space<vmem>>, vector<3x256xf32>,
    %c0_34 = arith.constant 0 : index
    %c32_35 = arith.constant 32 : index
    %58 = vector.load %arg5[%c0_34, %c32_35] : memref<32x290xf32, #tpu.memory_space<vmem>>, vector<3x256xf32>
    %cst_36 = arith.constant 0.000000e+00 : f32
    %59 = vector.shape_cast %24 : vector<1x256xi1> to vector<1x256xi1>
    %60 = vector.broadcast %59 : vector<1x256xi1> to vector<3x256xi1>
    %61 = vector.broadcast %cst_36 : f32 to vector<3x256xf32>
    %62 = arith.select %60, %58, %61 : vector<3x256xi1>, vector<3x256xf32>
    %c48 = arith.constant 48 : index
    %c0_37 = arith.constant 0 : index
    %63 = vector.load %arg6[%c48, %c0_37] : memref<288x256xf32, #tpu.memory_space<vmem>>, vector<3x256xf32>
    tpu.vector_store %arg6[%c48, %c0_37], %62 {strides = array<i32>} : memref<288x256xf32, #tpu.memory_space<vmem>>, vector<3x256xf32>,
    %c0_38 = arith.constant 0 : index
    %c33 = arith.constant 33 : index
    %64 = vector.load %arg5[%c0_38, %c33] : memref<32x290xf32, #tpu.memory_space<vmem>>, vector<3x256xf32>
    %c56 = arith.constant 56 : index
    %c0_39 = arith.constant 0 : index
    %65 = vector.load %arg6[%c56, %c0_39] : memref<288x256xf32, #tpu.memory_space<vmem>>, vector<3x256xf32>
    tpu.vector_store %arg6[%c56, %c0_39], %64 {strides = array<i32>} : memref<288x256xf32, #tpu.memory_space<vmem>>, vector<3x256xf32>,
    %c0_40 = arith.constant 0 : index
    %c34 = arith.constant 34 : index
    %66 = vector.load %arg5[%c0_40, %c34] : memref<32x290xf32, #tpu.memory_space<vmem>>, vector<3x256xf32>
    %cst_41 = arith.constant 0.000000e+00 : f32
    %67 = vector.shape_cast %26 : vector<1x256xi1> to vector<1x256xi1>
    %68 = vector.broadcast %67 : vector<1x256xi1> to vector<3x256xi1>
    %69 = vector.broadcast %cst_41 : f32 to vector<3x256xf32>
    %70 = arith.select %68, %66, %69 : vector<3x256xi1>, vector<3x256xf32>
    %c64 = arith.constant 64 : index
    %c0_42 = arith.constant 0 : index
    %71 = vector.load %arg6[%c64, %c0_42] : memref<288x256xf32, #tpu.memory_space<vmem>>, vector<3x256xf32>
    tpu.vector_store %arg6[%c64, %c0_42], %70 {strides = array<i32>} : memref<288x256xf32, #tpu.memory_space<vmem>>, vector<3x256xf32>,
    %c0_43 = arith.constant 0 : index
    %c0_44 = arith.constant 0 : index
    %72 = vector.load %arg2[%c0_43, %c0_44] : memref<32x936xbf16, #tpu.memory_space<vmem>>, vector<4x72xbf16>
    %c0_45 = arith.constant 0 : index
    %c0_46 = arith.constant 0 : index
    %73 = vector.load %arg6[%c0_45, %c0_46] : memref<288x256xf32, #tpu.memory_space<vmem>>, vector<72x256xf32>
    %74 = arith.truncf %73 : vector<72x256xf32> to vector<72x256xbf16>
    %cst_47 = arith.constant dense<0.000000e+00> : vector<4x256xf32>
    %75 = tpu.matmul %72, %74, %cst_47 {dimension_numbers = #tpu.dot_dimension_numbers<[1], [0], [0], [1], [0, 0, 1, 1], [], []>} : vector<4x72xbf16>, vector<72x256xbf16>, vector<4x256xf32> -> vector<4x256xf32>
    %c0_48 = arith.constant 0 : index
    %c0_49 = arith.constant 0 : index
    %76 = vector.load %arg3[%c0_48, %c0_49] : memref<32x8xf32, #tpu.memory_space<vmem>>, vector<4x1xf32>
    %77 = vector.broadcast %76 : vector<4x1xf32> to vector<4x256xf32>
    %78 = arith.addf %75, %77 : vector<4x256xf32>
    %c0_50 = arith.constant 0 : index
    %c17_51 = arith.constant 17 : index
    %79 = vector.load %arg5[%c0_50, %c17_51] : memref<32x290xf32, #tpu.memory_space<vmem>>, vector<4x256xf32>
    tpu.vector_store %arg5[%c0_50, %c17_51], %78 {strides = array<i32>} : memref<32x290xf32, #tpu.memory_space<vmem>>, vector<4x256xf32>,
    %c0_52 = arith.constant 0 : index
    %c0_53 = arith.constant 0 : index
    %80 = vector.load %arg5[%c0_52, %c0_53] : memref<32x290xf32, #tpu.memory_space<vmem>>, vector<4x256xf32>
    %cst_54 = arith.constant 0.000000e+00 : f32
    %81 = vector.shape_cast %24 : vector<1x256xi1> to vector<1x256xi1>
    %82 = vector.broadcast %81 : vector<1x256xi1> to vector<4x256xi1>
    %83 = vector.broadcast %cst_54 : f32 to vector<4x256xf32>
    %84 = arith.select %82, %80, %83 : vector<4x256xi1>, vector<4x256xf32>
    %c0_55 = arith.constant 0 : index
    %c0_56 = arith.constant 0 : index
    %85 = vector.load %arg6[%c0_55, %c0_56] : memref<288x256xf32, #tpu.memory_space<vmem>>, vector<4x256xf32>
    tpu.vector_store %arg6[%c0_55, %c0_56], %84 {strides = array<i32>} : memref<288x256xf32, #tpu.memory_space<vmem>>, vector<4x256xf32>,
    %c0_57 = arith.constant 0 : index
    %c1_58 = arith.constant 1 : index
    %86 = vector.load %arg5[%c0_57, %c1_58] : memref<32x290xf32, #tpu.memory_space<vmem>>, vector<4x256xf32>
    %c8_59 = arith.constant 8 : index
    %c0_60 = arith.constant 0 : index
    %87 = vector.load %arg6[%c8_59, %c0_60] : memref<288x256xf32, #tpu.memory_space<vmem>>, vector<4x256xf32>
    tpu.vector_store %arg6[%c8_59, %c0_60], %86 {strides = array<i32>} : memref<288x256xf32, #tpu.memory_space<vmem>>, vector<4x256xf32>,
    %c0_61 = arith.constant 0 : index
    %c2_62 = arith.constant 2 : index
    %88 = vector.load %arg5[%c0_61, %c2_62] : memref<32x290xf32, #tpu.memory_space<vmem>>, vector<4x256xf32>
    %cst_63 = arith.constant 0.000000e+00 : f32
    %89 = vector.shape_cast %26 : vector<1x256xi1> to vector<1x256xi1>
    %90 = vector.broadcast %89 : vector<1x256xi1> to vector<4x256xi1>
    %91 = vector.broadcast %cst_63 : f32 to vector<4x256xf32>
    %92 = arith.select %90, %88, %91 : vector<4x256xi1>, vector<4x256xf32>
    %c16_64 = arith.constant 16 : index
    %c0_65 = arith.constant 0 : index
    %93 = vector.load %arg6[%c16_64, %c0_65] : memref<288x256xf32, #tpu.memory_space<vmem>>, vector<4x256xf32>
    tpu.vector_store %arg6[%c16_64, %c0_65], %92 {strides = array<i32>} : memref<288x256xf32, #tpu.memory_space<vmem>>, vector<4x256xf32>,
    %c0_66 = arith.constant 0 : index
    %c16_67 = arith.constant 16 : index
    %94 = vector.load %arg5[%c0_66, %c16_67] : memref<32x290xf32, #tpu.memory_space<vmem>>, vector<4x256xf32>
    %cst_68 = arith.constant 0.000000e+00 : f32
    %95 = vector.shape_cast %24 : vector<1x256xi1> to vector<1x256xi1>
    %96 = vector.broadcast %95 : vector<1x256xi1> to vector<4x256xi1>
    %97 = vector.broadcast %cst_68 : f32 to vector<4x256xf32>
    %98 = arith.select %96, %94, %97 : vector<4x256xi1>, vector<4x256xf32>
    %c24_69 = arith.constant 24 : index
    %c0_70 = arith.constant 0 : index
    %99 = vector.load %arg6[%c24_69, %c0_70] : memref<288x256xf32, #tpu.memory_space<vmem>>, vector<4x256xf32>
    tpu.vector_store %arg6[%c24_69, %c0_70], %98 {strides = array<i32>} : memref<288x256xf32, #tpu.memory_space<vmem>>, vector<4x256xf32>,
    %c0_71 = arith.constant 0 : index
    %c17_72 = arith.constant 17 : index
    %100 = vector.load %arg5[%c0_71, %c17_72] : memref<32x290xf32, #tpu.memory_space<vmem>>, vector<4x256xf32>
    %c32_73 = arith.constant 32 : index
    %c0_74 = arith.constant 0 : index
    %101 = vector.load %arg6[%c32_73, %c0_74] : memref<288x256xf32, #tpu.memory_space<vmem>>, vector<4x256xf32>
    tpu.vector_store %arg6[%c32_73, %c0_74], %100 {strides = array<i32>} : memref<288x256xf32, #tpu.memory_space<vmem>>, vector<4x256xf32>,
    %c0_75 = arith.constant 0 : index
    %c18_76 = arith.constant 18 : index
    %102 = vector.load %arg5[%c0_75, %c18_76] : memref<32x290xf32, #tpu.memory_space<vmem>>, vector<4x256xf32>
    %cst_77 = arith.constant 0.000000e+00 : f32
    %103 = vector.shape_cast %26 : vector<1x256xi1> to vector<1x256xi1>
    %104 = vector.broadcast %103 : vector<1x256xi1> to vector<4x256xi1>
    %105 = vector.broadcast %cst_77 : f32 to vector<4x256xf32>
    %106 = arith.select %104, %102, %105 : vector<4x256xi1>, vector<4x256xf32>
    %c40_78 = arith.constant 40 : index
    %c0_79 = arith.constant 0 : index
    %107 = vector.load %arg6[%c40_78, %c0_79] : memref<288x256xf32, #tpu.memory_space<vmem>>, vector<4x256xf32>
    tpu.vector_store %arg6[%c40_78, %c0_79], %106 {strides = array<i32>} : memref<288x256xf32, #tpu.memory_space<vmem>>, vector<4x256xf32>,
    %c0_80 = arith.constant 0 : index
    %c32_81 = arith.constant 32 : index
    %108 = vector.load %arg5[%c0_80, %c32_81] : memref<32x290xf32, #tpu.memory_space<vmem>>, vector<4x256xf32>
    %cst_82 = arith.constant 0.000000e+00 : f32
    %109 = vector.shape_cast %24 : vector<1x256xi1> to vector<1x256xi1>
    %110 = vector.broadcast %109 : vector<1x256xi1> to vector<4x256xi1>
    %111 = vector.broadcast %cst_82 : f32 to vector<4x256xf32>
    %112 = arith.select %110, %108, %111 : vector<4x256xi1>, vector<4x256xf32>
    %c48_83 = arith.constant 48 : index
    %c0_84 = arith.constant 0 : index
    %113 = vector.load %arg6[%c48_83, %c0_84] : memref<288x256xf32, #tpu.memory_space<vmem>>, vector<4x256xf32>
    tpu.vector_store %arg6[%c48_83, %c0_84], %112 {strides = array<i32>} : memref<288x256xf32, #tpu.memory_space<vmem>>, vector<4x256xf32>,
    %c0_85 = arith.constant 0 : index
    %c33_86 = arith.constant 33 : index
    %114 = vector.load %arg5[%c0_85, %c33_86] : memref<32x290xf32, #tpu.memory_space<vmem>>, vector<4x256xf32>
    %c56_87 = arith.constant 56 : index
    %c0_88 = arith.constant 0 : index
    %115 = vector.load %arg6[%c56_87, %c0_88] : memref<288x256xf32, #tpu.memory_space<vmem>>, vector<4x256xf32>
    tpu.vector_store %arg6[%c56_87, %c0_88], %114 {strides = array<i32>} : memref<288x256xf32, #tpu.memory_space<vmem>>, vector<4x256xf32>,
    %c0_89 = arith.constant 0 : index
    %c34_90 = arith.constant 34 : index
    %116 = vector.load %arg5[%c0_89, %c34_90] : memref<32x290xf32, #tpu.memory_space<vmem>>, vector<4x256xf32>
    %cst_91 = arith.constant 0.000000e+00 : f32
    %117 = vector.shape_cast %26 : vector<1x256xi1> to vector<1x256xi1>
    %118 = vector.broadcast %117 : vector<1x256xi1> to vector<4x256xi1>
    %119 = vector.broadcast %cst_91 : f32 to vector<4x256xf32>
    %120 = arith.select %118, %116, %119 : vector<4x256xi1>, vector<4x256xf32>
    %c64_92 = arith.constant 64 : index
    %c0_93 = arith.constant 0 : index
    %121 = vector.load %arg6[%c64_92, %c0_93] : memref<288x256xf32, #tpu.memory_space<vmem>>, vector<4x256xf32>
    tpu.vector_store %arg6[%c64_92, %c0_93], %120 {strides = array<i32>} : memref<288x256xf32, #tpu.memory_space<vmem>>, vector<4x256xf32>,
    %c0_94 = arith.constant 0 : index
    %c72 = arith.constant 72 : index
    %122 = vector.load %arg2[%c0_94, %c72] : memref<32x936xbf16, #tpu.memory_space<vmem>>, vector<8x72xbf16>
    %c0_95 = arith.constant 0 : index
    %c0_96 = arith.constant 0 : index
    %123 = vector.load %arg6[%c0_95, %c0_96] : memref<288x256xf32, #tpu.memory_space<vmem>>, vector<72x256xf32>
    %124 = arith.truncf %123 : vector<72x256xf32> to vector<72x256xbf16>
    %cst_97 = arith.constant dense<0.000000e+00> : vector<8x256xf32>
    %125 = tpu.matmul %122, %124, %cst_97 {dimension_numbers = #tpu.dot_dimension_numbers<[1], [0], [0], [1], [0, 0, 1, 1], [], []>} : vector<8x72xbf16>, vector<72x256xbf16>, vector<8x256xf32> -> vector<8x256xf32>
    %c0_98 = arith.constant 0 : index
    %c1_99 = arith.constant 1 : index
    %126 = vector.load %arg3[%c0_98, %c1_99] : memref<32x8xf32, #tpu.memory_space<vmem>>, vector<8x1xf32>
    %127 = vector.broadcast %126 : vector<8x1xf32> to vector<8x256xf32>
    %128 = arith.addf %125, %127 : vector<8x256xf32>
    %cst_100 = arith.constant 0.000000e+00 : f32
    %129 = vector.broadcast %cst_100 : f32 to vector<8x256xf32>
    %130 = arith.maximumf %128, %129 : vector<8x256xf32>
    %c0_101 = arith.constant 0 : index
    %c17_102 = arith.constant 17 : index
    %131 = vector.load %arg5[%c0_101, %c17_102] : memref<32x290xf32, #tpu.memory_space<vmem>>, vector<8x256xf32>
    tpu.vector_store %arg5[%c0_101, %c17_102], %130 {strides = array<i32>} : memref<32x290xf32, #tpu.memory_space<vmem>>, vector<8x256xf32>,
    %c0_103 = arith.constant 0 : index
    %c0_104 = arith.constant 0 : index
    %132 = vector.load %arg5[%c0_103, %c0_104] : memref<32x290xf32, #tpu.memory_space<vmem>>, vector<8x256xf32>
    %cst_105 = arith.constant 0.000000e+00 : f32
    %133 = vector.shape_cast %24 : vector<1x256xi1> to vector<1x256xi1>
    %134 = vector.broadcast %133 : vector<1x256xi1> to vector<8x256xi1>
    %135 = vector.broadcast %cst_105 : f32 to vector<8x256xf32>
    %136 = arith.select %134, %132, %135 : vector<8x256xi1>, vector<8x256xf32>
    %c0_106 = arith.constant 0 : index
    %c0_107 = arith.constant 0 : index
    %137 = vector.load %arg6[%c0_106, %c0_107] : memref<288x256xf32, #tpu.memory_space<vmem>>, vector<8x256xf32>
    tpu.vector_store %arg6[%c0_106, %c0_107], %136 {strides = array<i32>} : memref<288x256xf32, #tpu.memory_space<vmem>>, vector<8x256xf32>,
    %c0_108 = arith.constant 0 : index
    %c1_109 = arith.constant 1 : index
    %138 = vector.load %arg5[%c0_108, %c1_109] : memref<32x290xf32, #tpu.memory_space<vmem>>, vector<8x256xf32>
    %c8_110 = arith.constant 8 : index
    %c0_111 = arith.constant 0 : index
    %139 = vector.load %arg6[%c8_110, %c0_111] : memref<288x256xf32, #tpu.memory_space<vmem>>, vector<8x256xf32>
    tpu.vector_store %arg6[%c8_110, %c0_111], %138 {strides = array<i32>} : memref<288x256xf32, #tpu.memory_space<vmem>>, vector<8x256xf32>,
    %c0_112 = arith.constant 0 : index
    %c2_113 = arith.constant 2 : index
    %140 = vector.load %arg5[%c0_112, %c2_113] : memref<32x290xf32, #tpu.memory_space<vmem>>, vector<8x256xf32>
    %cst_114 = arith.constant 0.000000e+00 : f32
    %141 = vector.shape_cast %26 : vector<1x256xi1> to vector<1x256xi1>
    %142 = vector.broadcast %141 : vector<1x256xi1> to vector<8x256xi1>
    %143 = vector.broadcast %cst_114 : f32 to vector<8x256xf32>
    %144 = arith.select %142, %140, %143 : vector<8x256xi1>, vector<8x256xf32>
    %c16_115 = arith.constant 16 : index
    %c0_116 = arith.constant 0 : index
    %145 = vector.load %arg6[%c16_115, %c0_116] : memref<288x256xf32, #tpu.memory_space<vmem>>, vector<8x256xf32>
    tpu.vector_store %arg6[%c16_115, %c0_116], %144 {strides = array<i32>} : memref<288x256xf32, #tpu.memory_space<vmem>>, vector<8x256xf32>,
    %c0_117 = arith.constant 0 : index
    %c16_118 = arith.constant 16 : index
    %146 = vector.load %arg5[%c0_117, %c16_118] : memref<32x290xf32, #tpu.memory_space<vmem>>, vector<8x256xf32>
    %cst_119 = arith.constant 0.000000e+00 : f32
    %147 = vector.shape_cast %24 : vector<1x256xi1> to vector<1x256xi1>
    %148 = vector.broadcast %147 : vector<1x256xi1> to vector<8x256xi1>
    %149 = vector.broadcast %cst_119 : f32 to vector<8x256xf32>
    %150 = arith.select %148, %146, %149 : vector<8x256xi1>, vector<8x256xf32>
    %c24_120 = arith.constant 24 : index
    %c0_121 = arith.constant 0 : index
    %151 = vector.load %arg6[%c24_120, %c0_121] : memref<288x256xf32, #tpu.memory_space<vmem>>, vector<8x256xf32>
    tpu.vector_store %arg6[%c24_120, %c0_121], %150 {strides = array<i32>} : memref<288x256xf32, #tpu.memory_space<vmem>>, vector<8x256xf32>,
    %c0_122 = arith.constant 0 : index
    %c17_123 = arith.constant 17 : index
    %152 = vector.load %arg5[%c0_122, %c17_123] : memref<32x290xf32, #tpu.memory_space<vmem>>, vector<8x256xf32>
    %c32_124 = arith.constant 32 : index
    %c0_125 = arith.constant 0 : index
    %153 = vector.load %arg6[%c32_124, %c0_125] : memref<288x256xf32, #tpu.memory_space<vmem>>, vector<8x256xf32>
    tpu.vector_store %arg6[%c32_124, %c0_125], %152 {strides = array<i32>} : memref<288x256xf32, #tpu.memory_space<vmem>>, vector<8x256xf32>,
    %c0_126 = arith.constant 0 : index
    %c18_127 = arith.constant 18 : index
    %154 = vector.load %arg5[%c0_126, %c18_127] : memref<32x290xf32, #tpu.memory_space<vmem>>, vector<8x256xf32>
    %cst_128 = arith.constant 0.000000e+00 : f32
    %155 = vector.shape_cast %26 : vector<1x256xi1> to vector<1x256xi1>
    %156 = vector.broadcast %155 : vector<1x256xi1> to vector<8x256xi1>
    %157 = vector.broadcast %cst_128 : f32 to vector<8x256xf32>
    %158 = arith.select %156, %154, %157 : vector<8x256xi1>, vector<8x256xf32>
    %c40_129 = arith.constant 40 : index
    %c0_130 = arith.constant 0 : index
    %159 = vector.load %arg6[%c40_129, %c0_130] : memref<288x256xf32, #tpu.memory_space<vmem>>, vector<8x256xf32>
    tpu.vector_store %arg6[%c40_129, %c0_130], %158 {strides = array<i32>} : memref<288x256xf32, #tpu.memory_space<vmem>>, vector<8x256xf32>,
    %c0_131 = arith.constant 0 : index
    %c32_132 = arith.constant 32 : index
    %160 = vector.load %arg5[%c0_131, %c32_132] : memref<32x290xf32, #tpu.memory_space<vmem>>, vector<8x256xf32>
    %cst_133 = arith.constant 0.000000e+00 : f32
    %161 = vector.shape_cast %24 : vector<1x256xi1> to vector<1x256xi1>
    %162 = vector.broadcast %161 : vector<1x256xi1> to vector<8x256xi1>
    %163 = vector.broadcast %cst_133 : f32 to vector<8x256xf32>
    %164 = arith.select %162, %160, %163 : vector<8x256xi1>, vector<8x256xf32>
    %c48_134 = arith.constant 48 : index
    %c0_135 = arith.constant 0 : index
    %165 = vector.load %arg6[%c48_134, %c0_135] : memref<288x256xf32, #tpu.memory_space<vmem>>, vector<8x256xf32>
    tpu.vector_store %arg6[%c48_134, %c0_135], %164 {strides = array<i32>} : memref<288x256xf32, #tpu.memory_space<vmem>>, vector<8x256xf32>,
    %c0_136 = arith.constant 0 : index
    %c33_137 = arith.constant 33 : index
    %166 = vector.load %arg5[%c0_136, %c33_137] : memref<32x290xf32, #tpu.memory_space<vmem>>, vector<8x256xf32>
    %c56_138 = arith.constant 56 : index
    %c0_139 = arith.constant 0 : index
    %167 = vector.load %arg6[%c56_138, %c0_139] : memref<288x256xf32, #tpu.memory_space<vmem>>, vector<8x256xf32>
    tpu.vector_store %arg6[%c56_138, %c0_139], %166 {strides = array<i32>} : memref<288x256xf32, #tpu.memory_space<vmem>>, vector<8x256xf32>,
    %c0_140 = arith.constant 0 : index
    %c34_141 = arith.constant 34 : index
    %168 = vector.load %arg5[%c0_140, %c34_141] : memref<32x290xf32, #tpu.memory_space<vmem>>, vector<8x256xf32>
    %cst_142 = arith.constant 0.000000e+00 : f32
    %169 = vector.shape_cast %26 : vector<1x256xi1> to vector<1x256xi1>
    %170 = vector.broadcast %169 : vector<1x256xi1> to vector<8x256xi1>
    %171 = vector.broadcast %cst_142 : f32 to vector<8x256xf32>
    %172 = arith.select %170, %168, %171 : vector<8x256xi1>, vector<8x256xf32>
    %c64_143 = arith.constant 64 : index
    %c0_144 = arith.constant 0 : index
    %173 = vector.load %arg6[%c64_143, %c0_144] : memref<288x256xf32, #tpu.memory_space<vmem>>, vector<8x256xf32>
    tpu.vector_store %arg6[%c64_143, %c0_144], %172 {strides = array<i32>} : memref<288x256xf32, #tpu.memory_space<vmem>>, vector<8x256xf32>,
    %c0_145 = arith.constant 0 : index
    %c144 = arith.constant 144 : index
    %174 = vector.load %arg2[%c0_145, %c144] : memref<32x936xbf16, #tpu.memory_space<vmem>>, vector<16x72xbf16>
    %c0_146 = arith.constant 0 : index
    %c0_147 = arith.constant 0 : index
    %175 = vector.load %arg6[%c0_146, %c0_147] : memref<288x256xf32, #tpu.memory_space<vmem>>, vector<72x256xf32>
    %176 = arith.truncf %175 : vector<72x256xf32> to vector<72x256xbf16>
    %cst_148 = arith.constant dense<0.000000e+00> : vector<16x256xf32>
    %177 = tpu.matmul %174, %176, %cst_148 {dimension_numbers = #tpu.dot_dimension_numbers<[1], [0], [0], [1], [0, 0, 1, 1], [], []>} : vector<16x72xbf16>, vector<72x256xbf16>, vector<16x256xf32> -> vector<16x256xf32>
    %c0_149 = arith.constant 0 : index
    %c2_150 = arith.constant 2 : index
    %178 = vector.load %arg3[%c0_149, %c2_150] : memref<32x8xf32, #tpu.memory_space<vmem>>, vector<16x1xf32>
    %179 = vector.broadcast %178 : vector<16x1xf32> to vector<16x256xf32>
    %180 = arith.addf %177, %179 : vector<16x256xf32>
    %cst_151 = arith.constant 0.000000e+00 : f32
    %181 = vector.broadcast %cst_151 : f32 to vector<16x256xf32>
    %182 = arith.maximumf %180, %181 : vector<16x256xf32>
    %c0_152 = arith.constant 0 : index
    %c17_153 = arith.constant 17 : index
    %183 = vector.load %arg5[%c0_152, %c17_153] : memref<32x290xf32, #tpu.memory_space<vmem>>, vector<16x256xf32>
    tpu.vector_store %arg5[%c0_152, %c17_153], %182 {strides = array<i32>} : memref<32x290xf32, #tpu.memory_space<vmem>>, vector<16x256xf32>,
    %c0_154 = arith.constant 0 : index
    %c0_155 = arith.constant 0 : index
    %184 = vector.load %arg5[%c0_154, %c0_155] : memref<32x290xf32, #tpu.memory_space<vmem>>, vector<16x256xf32>
    %cst_156 = arith.constant 0.000000e+00 : f32
    %185 = vector.shape_cast %24 : vector<1x256xi1> to vector<1x256xi1>
    %186 = vector.broadcast %185 : vector<1x256xi1> to vector<16x256xi1>
    %187 = vector.broadcast %cst_156 : f32 to vector<16x256xf32>
    %188 = arith.select %186, %184, %187 : vector<16x256xi1>, vector<16x256xf32>
    %c0_157 = arith.constant 0 : index
    %c0_158 = arith.constant 0 : index
    %189 = vector.load %arg6[%c0_157, %c0_158] : memref<288x256xf32, #tpu.memory_space<vmem>>, vector<16x256xf32>
    tpu.vector_store %arg6[%c0_157, %c0_158], %188 {strides = array<i32>} : memref<288x256xf32, #tpu.memory_space<vmem>>, vector<16x256xf32>,
    %c0_159 = arith.constant 0 : index
    %c1_160 = arith.constant 1 : index
    %190 = vector.load %arg5[%c0_159, %c1_160] : memref<32x290xf32, #tpu.memory_space<vmem>>, vector<16x256xf32>
    %c16_161 = arith.constant 16 : index
    %c0_162 = arith.constant 0 : index
    %191 = vector.load %arg6[%c16_161, %c0_162] : memref<288x256xf32, #tpu.memory_space<vmem>>, vector<16x256xf32>
    tpu.vector_store %arg6[%c16_161, %c0_162], %190 {strides = array<i32>} : memref<288x256xf32, #tpu.memory_space<vmem>>, vector<16x256xf32>,
    %c0_163 = arith.constant 0 : index
    %c2_164 = arith.constant 2 : index
    %192 = vector.load %arg5[%c0_163, %c2_164] : memref<32x290xf32, #tpu.memory_space<vmem>>, vector<16x256xf32>
    %cst_165 = arith.constant 0.000000e+00 : f32
    %193 = vector.shape_cast %26 : vector<1x256xi1> to vector<1x256xi1>
    %194 = vector.broadcast %193 : vector<1x256xi1> to vector<16x256xi1>
    %195 = vector.broadcast %cst_165 : f32 to vector<16x256xf32>
    %196 = arith.select %194, %192, %195 : vector<16x256xi1>, vector<16x256xf32>
    %c32_166 = arith.constant 32 : index
    %c0_167 = arith.constant 0 : index
    %197 = vector.load %arg6[%c32_166, %c0_167] : memref<288x256xf32, #tpu.memory_space<vmem>>, vector<16x256xf32>
    tpu.vector_store %arg6[%c32_166, %c0_167], %196 {strides = array<i32>} : memref<288x256xf32, #tpu.memory_space<vmem>>, vector<16x256xf32>,
    %c0_168 = arith.constant 0 : index
    %c16_169 = arith.constant 16 : index
    %198 = vector.load %arg5[%c0_168, %c16_169] : memref<32x290xf32, #tpu.memory_space<vmem>>, vector<16x256xf32>
    %cst_170 = arith.constant 0.000000e+00 : f32
    %199 = vector.shape_cast %24 : vector<1x256xi1> to vector<1x256xi1>
    %200 = vector.broadcast %199 : vector<1x256xi1> to vector<16x256xi1>
    %201 = vector.broadcast %cst_170 : f32 to vector<16x256xf32>
    %202 = arith.select %200, %198, %201 : vector<16x256xi1>, vector<16x256xf32>
    %c48_171 = arith.constant 48 : index
    %c0_172 = arith.constant 0 : index
    %203 = vector.load %arg6[%c48_171, %c0_172] : memref<288x256xf32, #tpu.memory_space<vmem>>, vector<16x256xf32>
    tpu.vector_store %arg6[%c48_171, %c0_172], %202 {strides = array<i32>} : memref<288x256xf32, #tpu.memory_space<vmem>>, vector<16x256xf32>,
    %c0_173 = arith.constant 0 : index
    %c17_174 = arith.constant 17 : index
    %204 = vector.load %arg5[%c0_173, %c17_174] : memref<32x290xf32, #tpu.memory_space<vmem>>, vector<16x256xf32>
    %c64_175 = arith.constant 64 : index
    %c0_176 = arith.constant 0 : index
    %205 = vector.load %arg6[%c64_175, %c0_176] : memref<288x256xf32, #tpu.memory_space<vmem>>, vector<16x256xf32>
    tpu.vector_store %arg6[%c64_175, %c0_176], %204 {strides = array<i32>} : memref<288x256xf32, #tpu.memory_space<vmem>>, vector<16x256xf32>,
    %c0_177 = arith.constant 0 : index
    %c18_178 = arith.constant 18 : index
    %206 = vector.load %arg5[%c0_177, %c18_178] : memref<32x290xf32, #tpu.memory_space<vmem>>, vector<16x256xf32>
    %cst_179 = arith.constant 0.000000e+00 : f32
    %207 = vector.shape_cast %26 : vector<1x256xi1> to vector<1x256xi1>
    %208 = vector.broadcast %207 : vector<1x256xi1> to vector<16x256xi1>
    %209 = vector.broadcast %cst_179 : f32 to vector<16x256xf32>
    %210 = arith.select %208, %206, %209 : vector<16x256xi1>, vector<16x256xf32>
    %c80 = arith.constant 80 : index
    %c0_180 = arith.constant 0 : index
    %211 = vector.load %arg6[%c80, %c0_180] : memref<288x256xf32, #tpu.memory_space<vmem>>, vector<16x256xf32>
    tpu.vector_store %arg6[%c80, %c0_180], %210 {strides = array<i32>} : memref<288x256xf32, #tpu.memory_space<vmem>>, vector<16x256xf32>,
    %c0_181 = arith.constant 0 : index
    %c32_182 = arith.constant 32 : index
    %212 = vector.load %arg5[%c0_181, %c32_182] : memref<32x290xf32, #tpu.memory_space<vmem>>, vector<16x256xf32>
    %cst_183 = arith.constant 0.000000e+00 : f32
    %213 = vector.shape_cast %24 : vector<1x256xi1> to vector<1x256xi1>
    %214 = vector.broadcast %213 : vector<1x256xi1> to vector<16x256xi1>
    %215 = vector.broadcast %cst_183 : f32 to vector<16x256xf32>
    %216 = arith.select %214, %212, %215 : vector<16x256xi1>, vector<16x256xf32>
    %c96 = arith.constant 96 : index
    %c0_184 = arith.constant 0 : index
    %217 = vector.load %arg6[%c96, %c0_184] : memref<288x256xf32, #tpu.memory_space<vmem>>, vector<16x256xf32>
    tpu.vector_store %arg6[%c96, %c0_184], %216 {strides = array<i32>} : memref<288x256xf32, #tpu.memory_space<vmem>>, vector<16x256xf32>,
    %c0_185 = arith.constant 0 : index
    %c33_186 = arith.constant 33 : index
    %218 = vector.load %arg5[%c0_185, %c33_186] : memref<32x290xf32, #tpu.memory_space<vmem>>, vector<16x256xf32>
    %c112 = arith.constant 112 : index
    %c0_187 = arith.constant 0 : index
    %219 = vector.load %arg6[%c112, %c0_187] : memref<288x256xf32, #tpu.memory_space<vmem>>, vector<16x256xf32>
    tpu.vector_store %arg6[%c112, %c0_187], %218 {strides = array<i32>} : memref<288x256xf32, #tpu.memory_space<vmem>>, vector<16x256xf32>,
    %c0_188 = arith.constant 0 : index
    %c34_189 = arith.constant 34 : index
    %220 = vector.load %arg5[%c0_188, %c34_189] : memref<32x290xf32, #tpu.memory_space<vmem>>, vector<16x256xf32>
    %cst_190 = arith.constant 0.000000e+00 : f32
    %221 = vector.shape_cast %26 : vector<1x256xi1> to vector<1x256xi1>
    %222 = vector.broadcast %221 : vector<1x256xi1> to vector<16x256xi1>
    %223 = vector.broadcast %cst_190 : f32 to vector<16x256xf32>
    %224 = arith.select %222, %220, %223 : vector<16x256xi1>, vector<16x256xf32>
    %c128 = arith.constant 128 : index
    %c0_191 = arith.constant 0 : index
    %225 = vector.load %arg6[%c128, %c0_191] : memref<288x256xf32, #tpu.memory_space<vmem>>, vector<16x256xf32>
    tpu.vector_store %arg6[%c128, %c0_191], %224 {strides = array<i32>} : memref<288x256xf32, #tpu.memory_space<vmem>>, vector<16x256xf32>,
    %c0_192 = arith.constant 0 : index
    %c216 = arith.constant 216 : index
    %226 = vector.load %arg2[%c0_192, %c216] : memref<32x936xbf16, #tpu.memory_space<vmem>>, vector<32x144xbf16>
    %c0_193 = arith.constant 0 : index
    %c0_194 = arith.constant 0 : index
    %227 = vector.load %arg6[%c0_193, %c0_194] : memref<288x256xf32, #tpu.memory_space<vmem>>, vector<144x256xf32>
    %228 = arith.truncf %227 : vector<144x256xf32> to vector<144x256xbf16>
    %cst_195 = arith.constant dense<0.000000e+00> : vector<32x256xf32>
    %229 = tpu.matmul %226, %228, %cst_195 {dimension_numbers = #tpu.dot_dimension_numbers<[1], [0], [0], [1], [0, 0, 1, 1], [], []>} : vector<32x144xbf16>, vector<144x256xbf16>, vector<32x256xf32> -> vector<32x256xf32>
    %c0_196 = arith.constant 0 : index
    %c3 = arith.constant 3 : index
    %230 = vector.load %arg3[%c0_196, %c3] : memref<32x8xf32, #tpu.memory_space<vmem>>, vector<32x1xf32>
    %231 = vector.broadcast %230 : vector<32x1xf32> to vector<32x256xf32>
    %232 = arith.addf %229, %231 : vector<32x256xf32>
    %cst_197 = arith.constant 0.000000e+00 : f32
    %233 = vector.broadcast %cst_197 : f32 to vector<32x256xf32>
    %234 = arith.maximumf %232, %233 : vector<32x256xf32>
    %c0_198 = arith.constant 0 : index
    %c17_199 = arith.constant 17 : index
    %235 = vector.load %arg5[%c0_198, %c17_199] : memref<32x290xf32, #tpu.memory_space<vmem>>, vector<32x256xf32>
    tpu.vector_store %arg5[%c0_198, %c17_199], %234 {strides = array<i32>} : memref<32x290xf32, #tpu.memory_space<vmem>>, vector<32x256xf32>,
    %c0_200 = arith.constant 0 : index
    %c0_201 = arith.constant 0 : index
    %236 = vector.load %arg5[%c0_200, %c0_201] : memref<32x290xf32, #tpu.memory_space<vmem>>, vector<32x256xf32>
    %cst_202 = arith.constant 0.000000e+00 : f32
    %237 = vector.shape_cast %24 : vector<1x256xi1> to vector<1x256xi1>
    %238 = vector.broadcast %237 : vector<1x256xi1> to vector<32x256xi1>
    %239 = vector.broadcast %cst_202 : f32 to vector<32x256xf32>
    %240 = arith.select %238, %236, %239 : vector<32x256xi1>, vector<32x256xf32>
    %c0_203 = arith.constant 0 : index
    %c0_204 = arith.constant 0 : index
    %241 = vector.load %arg6[%c0_203, %c0_204] : memref<288x256xf32, #tpu.memory_space<vmem>>, vector<32x256xf32>
    tpu.vector_store %arg6[%c0_203, %c0_204], %240 {strides = array<i32>} : memref<288x256xf32, #tpu.memory_space<vmem>>, vector<32x256xf32>,
    %c0_205 = arith.constant 0 : index
    %c1_206 = arith.constant 1 : index
    %242 = vector.load %arg5[%c0_205, %c1_206] : memref<32x290xf32, #tpu.memory_space<vmem>>, vector<32x256xf32>
    %c32_207 = arith.constant 32 : index
    %c0_208 = arith.constant 0 : index
    %243 = vector.load %arg6[%c32_207, %c0_208] : memref<288x256xf32, #tpu.memory_space<vmem>>, vector<32x256xf32>
    tpu.vector_store %arg6[%c32_207, %c0_208], %242 {strides = array<i32>} : memref<288x256xf32, #tpu.memory_space<vmem>>, vector<32x256xf32>,
    %c0_209 = arith.constant 0 : index
    %c2_210 = arith.constant 2 : index
    %244 = vector.load %arg5[%c0_209, %c2_210] : memref<32x290xf32, #tpu.memory_space<vmem>>, vector<32x256xf32>
    %cst_211 = arith.constant 0.000000e+00 : f32
    %245 = vector.shape_cast %26 : vector<1x256xi1> to vector<1x256xi1>
    %246 = vector.broadcast %245 : vector<1x256xi1> to vector<32x256xi1>
    %247 = vector.broadcast %cst_211 : f32 to vector<32x256xf32>
    %248 = arith.select %246, %244, %247 : vector<32x256xi1>, vector<32x256xf32>
    %c64_212 = arith.constant 64 : index
    %c0_213 = arith.constant 0 : index
    %249 = vector.load %arg6[%c64_212, %c0_213] : memref<288x256xf32, #tpu.memory_space<vmem>>, vector<32x256xf32>
    tpu.vector_store %arg6[%c64_212, %c0_213], %248 {strides = array<i32>} : memref<288x256xf32, #tpu.memory_space<vmem>>, vector<32x256xf32>,
    %c0_214 = arith.constant 0 : index
    %c16_215 = arith.constant 16 : index
    %250 = vector.load %arg5[%c0_214, %c16_215] : memref<32x290xf32, #tpu.memory_space<vmem>>, vector<32x256xf32>
    %cst_216 = arith.constant 0.000000e+00 : f32
    %251 = vector.shape_cast %24 : vector<1x256xi1> to vector<1x256xi1>
    %252 = vector.broadcast %251 : vector<1x256xi1> to vector<32x256xi1>
    %253 = vector.broadcast %cst_216 : f32 to vector<32x256xf32>
    %254 = arith.select %252, %250, %253 : vector<32x256xi1>, vector<32x256xf32>
    %c96_217 = arith.constant 96 : index
    %c0_218 = arith.constant 0 : index
    %255 = vector.load %arg6[%c96_217, %c0_218] : memref<288x256xf32, #tpu.memory_space<vmem>>, vector<32x256xf32>
    tpu.vector_store %arg6[%c96_217, %c0_218], %254 {strides = array<i32>} : memref<288x256xf32, #tpu.memory_space<vmem>>, vector<32x256xf32>,
    %c0_219 = arith.constant 0 : index
    %c17_220 = arith.constant 17 : index
    %256 = vector.load %arg5[%c0_219, %c17_220] : memref<32x290xf32, #tpu.memory_space<vmem>>, vector<32x256xf32>
    %c128_221 = arith.constant 128 : index
    %c0_222 = arith.constant 0 : index
    %257 = vector.load %arg6[%c128_221, %c0_222] : memref<288x256xf32, #tpu.memory_space<vmem>>, vector<32x256xf32>
    tpu.vector_store %arg6[%c128_221, %c0_222], %256 {strides = array<i32>} : memref<288x256xf32, #tpu.memory_space<vmem>>, vector<32x256xf32>,
    %c0_223 = arith.constant 0 : index
    %c18_224 = arith.constant 18 : index
    %258 = vector.load %arg5[%c0_223, %c18_224] : memref<32x290xf32, #tpu.memory_space<vmem>>, vector<32x256xf32>
    %cst_225 = arith.constant 0.000000e+00 : f32
    %259 = vector.shape_cast %26 : vector<1x256xi1> to vector<1x256xi1>
    %260 = vector.broadcast %259 : vector<1x256xi1> to vector<32x256xi1>
    %261 = vector.broadcast %cst_225 : f32 to vector<32x256xf32>
    %262 = arith.select %260, %258, %261 : vector<32x256xi1>, vector<32x256xf32>
    %c160 = arith.constant 160 : index
    %c0_226 = arith.constant 0 : index
    %263 = vector.load %arg6[%c160, %c0_226] : memref<288x256xf32, #tpu.memory_space<vmem>>, vector<32x256xf32>
    tpu.vector_store %arg6[%c160, %c0_226], %262 {strides = array<i32>} : memref<288x256xf32, #tpu.memory_space<vmem>>, vector<32x256xf32>,
    %c0_227 = arith.constant 0 : index
    %c32_228 = arith.constant 32 : index
    %264 = vector.load %arg5[%c0_227, %c32_228] : memref<32x290xf32, #tpu.memory_space<vmem>>, vector<32x256xf32>
    %cst_229 = arith.constant 0.000000e+00 : f32
    %265 = vector.shape_cast %24 : vector<1x256xi1> to vector<1x256xi1>
    %266 = vector.broadcast %265 : vector<1x256xi1> to vector<32x256xi1>
    %267 = vector.broadcast %cst_229 : f32 to vector<32x256xf32>
    %268 = arith.select %266, %264, %267 : vector<32x256xi1>, vector<32x256xf32>
    %c192 = arith.constant 192 : index
    %c0_230 = arith.constant 0 : index
    %269 = vector.load %arg6[%c192, %c0_230] : memref<288x256xf32, #tpu.memory_space<vmem>>, vector<32x256xf32>
    tpu.vector_store %arg6[%c192, %c0_230], %268 {strides = array<i32>} : memref<288x256xf32, #tpu.memory_space<vmem>>, vector<32x256xf32>,
    %c0_231 = arith.constant 0 : index
    %c33_232 = arith.constant 33 : index
    %270 = vector.load %arg5[%c0_231, %c33_232] : memref<32x290xf32, #tpu.memory_space<vmem>>, vector<32x256xf32>
    %c224 = arith.constant 224 : index
    %c0_233 = arith.constant 0 : index
    %271 = vector.load %arg6[%c224, %c0_233] : memref<288x256xf32, #tpu.memory_space<vmem>>, vector<32x256xf32>
    tpu.vector_store %arg6[%c224, %c0_233], %270 {strides = array<i32>} : memref<288x256xf32, #tpu.memory_space<vmem>>, vector<32x256xf32>,
    %c0_234 = arith.constant 0 : index
    %c34_235 = arith.constant 34 : index
    %272 = vector.load %arg5[%c0_234, %c34_235] : memref<32x290xf32, #tpu.memory_space<vmem>>, vector<32x256xf32>
    %cst_236 = arith.constant 0.000000e+00 : f32
    %273 = vector.shape_cast %26 : vector<1x256xi1> to vector<1x256xi1>
    %274 = vector.broadcast %273 : vector<1x256xi1> to vector<32x256xi1>
    %275 = vector.broadcast %cst_236 : f32 to vector<32x256xf32>
    %276 = arith.select %274, %272, %275 : vector<32x256xi1>, vector<32x256xf32>
    %c256 = arith.constant 256 : index
    %c0_237 = arith.constant 0 : index
    %277 = vector.load %arg6[%c256, %c0_237] : memref<288x256xf32, #tpu.memory_space<vmem>>, vector<32x256xf32>
    tpu.vector_store %arg6[%c256, %c0_237], %276 {strides = array<i32>} : memref<288x256xf32, #tpu.memory_space<vmem>>, vector<32x256xf32>,
    %c0_238 = arith.constant 0 : index
    %c360 = arith.constant 360 : index
    %278 = vector.load %arg2[%c0_238, %c360] : memref<32x936xbf16, #tpu.memory_space<vmem>>, vector<16x288xbf16>
    %c0_239 = arith.constant 0 : index
    %c0_240 = arith.constant 0 : index
    %279 = vector.load %arg6[%c0_239, %c0_240] : memref<288x256xf32, #tpu.memory_space<vmem>>, vector<288x256xf32>
    %280 = arith.truncf %279 : vector<288x256xf32> to vector<288x256xbf16>
    %cst_241 = arith.constant dense<0.000000e+00> : vector<16x256xf32>
    %281 = tpu.matmul %278, %280, %cst_241 {dimension_numbers = #tpu.dot_dimension_numbers<[1], [0], [0], [1], [0, 0, 1, 1], [], []>} : vector<16x288xbf16>, vector<288x256xbf16>, vector<16x256xf32> -> vector<16x256xf32>
    %c0_242 = arith.constant 0 : index
    %c4 = arith.constant 4 : index
    %282 = vector.load %arg3[%c0_242, %c4] : memref<32x8xf32, #tpu.memory_space<vmem>>, vector<16x1xf32>
    %283 = vector.broadcast %282 : vector<16x1xf32> to vector<16x256xf32>
    %284 = arith.addf %281, %283 : vector<16x256xf32>
    %cst_243 = arith.constant 0.000000e+00 : f32
    %285 = vector.broadcast %cst_243 : f32 to vector<16x256xf32>
    %286 = arith.maximumf %284, %285 : vector<16x256xf32>
    %c0_244 = arith.constant 0 : index
    %c17_245 = arith.constant 17 : index
    %287 = vector.load %arg5[%c0_244, %c17_245] : memref<32x290xf32, #tpu.memory_space<vmem>>, vector<16x256xf32>
    tpu.vector_store %arg5[%c0_244, %c17_245], %286 {strides = array<i32>} : memref<32x290xf32, #tpu.memory_space<vmem>>, vector<16x256xf32>,
    %c0_246 = arith.constant 0 : index
    %c0_247 = arith.constant 0 : index
    %288 = vector.load %arg5[%c0_246, %c0_247] : memref<32x290xf32, #tpu.memory_space<vmem>>, vector<16x256xf32>
    %cst_248 = arith.constant 0.000000e+00 : f32
    %289 = vector.shape_cast %24 : vector<1x256xi1> to vector<1x256xi1>
    %290 = vector.broadcast %289 : vector<1x256xi1> to vector<16x256xi1>
    %291 = vector.broadcast %cst_248 : f32 to vector<16x256xf32>
    %292 = arith.select %290, %288, %291 : vector<16x256xi1>, vector<16x256xf32>
    %c0_249 = arith.constant 0 : index
    %c0_250 = arith.constant 0 : index
    %293 = vector.load %arg6[%c0_249, %c0_250] : memref<288x256xf32, #tpu.memory_space<vmem>>, vector<16x256xf32>
    tpu.vector_store %arg6[%c0_249, %c0_250], %292 {strides = array<i32>} : memref<288x256xf32, #tpu.memory_space<vmem>>, vector<16x256xf32>,
    %c0_251 = arith.constant 0 : index
    %c1_252 = arith.constant 1 : index
    %294 = vector.load %arg5[%c0_251, %c1_252] : memref<32x290xf32, #tpu.memory_space<vmem>>, vector<16x256xf32>
    %c16_253 = arith.constant 16 : index
    %c0_254 = arith.constant 0 : index
    %295 = vector.load %arg6[%c16_253, %c0_254] : memref<288x256xf32, #tpu.memory_space<vmem>>, vector<16x256xf32>
    tpu.vector_store %arg6[%c16_253, %c0_254], %294 {strides = array<i32>} : memref<288x256xf32, #tpu.memory_space<vmem>>, vector<16x256xf32>,
    %c0_255 = arith.constant 0 : index
    %c2_256 = arith.constant 2 : index
    %296 = vector.load %arg5[%c0_255, %c2_256] : memref<32x290xf32, #tpu.memory_space<vmem>>, vector<16x256xf32>
    %cst_257 = arith.constant 0.000000e+00 : f32
    %297 = vector.shape_cast %26 : vector<1x256xi1> to vector<1x256xi1>
    %298 = vector.broadcast %297 : vector<1x256xi1> to vector<16x256xi1>
    %299 = vector.broadcast %cst_257 : f32 to vector<16x256xf32>
    %300 = arith.select %298, %296, %299 : vector<16x256xi1>, vector<16x256xf32>
    %c32_258 = arith.constant 32 : index
    %c0_259 = arith.constant 0 : index
    %301 = vector.load %arg6[%c32_258, %c0_259] : memref<288x256xf32, #tpu.memory_space<vmem>>, vector<16x256xf32>
    tpu.vector_store %arg6[%c32_258, %c0_259], %300 {strides = array<i32>} : memref<288x256xf32, #tpu.memory_space<vmem>>, vector<16x256xf32>,
    %c0_260 = arith.constant 0 : index
    %c16_261 = arith.constant 16 : index
    %302 = vector.load %arg5[%c0_260, %c16_261] : memref<32x290xf32, #tpu.memory_space<vmem>>, vector<16x256xf32>
    %cst_262 = arith.constant 0.000000e+00 : f32
    %303 = vector.shape_cast %24 : vector<1x256xi1> to vector<1x256xi1>
    %304 = vector.broadcast %303 : vector<1x256xi1> to vector<16x256xi1>
    %305 = vector.broadcast %cst_262 : f32 to vector<16x256xf32>
    %306 = arith.select %304, %302, %305 : vector<16x256xi1>, vector<16x256xf32>
    %c48_263 = arith.constant 48 : index
    %c0_264 = arith.constant 0 : index
    %307 = vector.load %arg6[%c48_263, %c0_264] : memref<288x256xf32, #tpu.memory_space<vmem>>, vector<16x256xf32>
    tpu.vector_store %arg6[%c48_263, %c0_264], %306 {strides = array<i32>} : memref<288x256xf32, #tpu.memory_space<vmem>>, vector<16x256xf32>,
    %c0_265 = arith.constant 0 : index
    %c17_266 = arith.constant 17 : index
    %308 = vector.load %arg5[%c0_265, %c17_266] : memref<32x290xf32, #tpu.memory_space<vmem>>, vector<16x256xf32>
    %c64_267 = arith.constant 64 : index
    %c0_268 = arith.constant 0 : index
    %309 = vector.load %arg6[%c64_267, %c0_268] : memref<288x256xf32, #tpu.memory_space<vmem>>, vector<16x256xf32>
    tpu.vector_store %arg6[%c64_267, %c0_268], %308 {strides = array<i32>} : memref<288x256xf32, #tpu.memory_space<vmem>>, vector<16x256xf32>,
    %c0_269 = arith.constant 0 : index
    %c18_270 = arith.constant 18 : index
    %310 = vector.load %arg5[%c0_269, %c18_270] : memref<32x290xf32, #tpu.memory_space<vmem>>, vector<16x256xf32>
    %cst_271 = arith.constant 0.000000e+00 : f32
    %311 = vector.shape_cast %26 : vector<1x256xi1> to vector<1x256xi1>
    %312 = vector.broadcast %311 : vector<1x256xi1> to vector<16x256xi1>
    %313 = vector.broadcast %cst_271 : f32 to vector<16x256xf32>
    %314 = arith.select %312, %310, %313 : vector<16x256xi1>, vector<16x256xf32>
    %c80_272 = arith.constant 80 : index
    %c0_273 = arith.constant 0 : index
    %315 = vector.load %arg6[%c80_272, %c0_273] : memref<288x256xf32, #tpu.memory_space<vmem>>, vector<16x256xf32>
    tpu.vector_store %arg6[%c80_272, %c0_273], %314 {strides = array<i32>} : memref<288x256xf32, #tpu.memory_space<vmem>>, vector<16x256xf32>,
    %c0_274 = arith.constant 0 : index
    %c32_275 = arith.constant 32 : index
    %316 = vector.load %arg5[%c0_274, %c32_275] : memref<32x290xf32, #tpu.memory_space<vmem>>, vector<16x256xf32>
    %cst_276 = arith.constant 0.000000e+00 : f32
    %317 = vector.shape_cast %24 : vector<1x256xi1> to vector<1x256xi1>
    %318 = vector.broadcast %317 : vector<1x256xi1> to vector<16x256xi1>
    %319 = vector.broadcast %cst_276 : f32 to vector<16x256xf32>
    %320 = arith.select %318, %316, %319 : vector<16x256xi1>, vector<16x256xf32>
    %c96_277 = arith.constant 96 : index
    %c0_278 = arith.constant 0 : index
    %321 = vector.load %arg6[%c96_277, %c0_278] : memref<288x256xf32, #tpu.memory_space<vmem>>, vector<16x256xf32>
    tpu.vector_store %arg6[%c96_277, %c0_278], %320 {strides = array<i32>} : memref<288x256xf32, #tpu.memory_space<vmem>>, vector<16x256xf32>,
    %c0_279 = arith.constant 0 : index
    %c33_280 = arith.constant 33 : index
    %322 = vector.load %arg5[%c0_279, %c33_280] : memref<32x290xf32, #tpu.memory_space<vmem>>, vector<16x256xf32>
    %c112_281 = arith.constant 112 : index
    %c0_282 = arith.constant 0 : index
    %323 = vector.load %arg6[%c112_281, %c0_282] : memref<288x256xf32, #tpu.memory_space<vmem>>, vector<16x256xf32>
    tpu.vector_store %arg6[%c112_281, %c0_282], %322 {strides = array<i32>} : memref<288x256xf32, #tpu.memory_space<vmem>>, vector<16x256xf32>,
    %c0_283 = arith.constant 0 : index
    %c34_284 = arith.constant 34 : index
    %324 = vector.load %arg5[%c0_283, %c34_284] : memref<32x290xf32, #tpu.memory_space<vmem>>, vector<16x256xf32>
    %cst_285 = arith.constant 0.000000e+00 : f32
    %325 = vector.shape_cast %26 : vector<1x256xi1> to vector<1x256xi1>
    %326 = vector.broadcast %325 : vector<1x256xi1> to vector<16x256xi1>
    %327 = vector.broadcast %cst_285 : f32 to vector<16x256xf32>
    %328 = arith.select %326, %324, %327 : vector<16x256xi1>, vector<16x256xf32>
    %c128_286 = arith.constant 128 : index
    %c0_287 = arith.constant 0 : index
    %329 = vector.load %arg6[%c128_286, %c0_287] : memref<288x256xf32, #tpu.memory_space<vmem>>, vector<16x256xf32>
    tpu.vector_store %arg6[%c128_286, %c0_287], %328 {strides = array<i32>} : memref<288x256xf32, #tpu.memory_space<vmem>>, vector<16x256xf32>,
    %c0_288 = arith.constant 0 : index
    %c648 = arith.constant 648 : index
    %330 = vector.load %arg2[%c0_288, %c648] : memref<32x936xbf16, #tpu.memory_space<vmem>>, vector<8x144xbf16>
    %c0_289 = arith.constant 0 : index
    %c0_290 = arith.constant 0 : index
    %331 = vector.load %arg6[%c0_289, %c0_290] : memref<288x256xf32, #tpu.memory_space<vmem>>, vector<144x256xf32>
    %332 = arith.truncf %331 : vector<144x256xf32> to vector<144x256xbf16>
    %cst_291 = arith.constant dense<0.000000e+00> : vector<8x256xf32>
    %333 = tpu.matmul %330, %332, %cst_291 {dimension_numbers = #tpu.dot_dimension_numbers<[1], [0], [0], [1], [0, 0, 1, 1], [], []>} : vector<8x144xbf16>, vector<144x256xbf16>, vector<8x256xf32> -> vector<8x256xf32>
    %c0_292 = arith.constant 0 : index
    %c5 = arith.constant 5 : index
    %334 = vector.load %arg3[%c0_292, %c5] : memref<32x8xf32, #tpu.memory_space<vmem>>, vector<8x1xf32>
    %335 = vector.broadcast %334 : vector<8x1xf32> to vector<8x256xf32>
    %336 = arith.addf %333, %335 : vector<8x256xf32>
    %cst_293 = arith.constant 0.000000e+00 : f32
    %337 = vector.broadcast %cst_293 : f32 to vector<8x256xf32>
    %338 = arith.maximumf %336, %337 : vector<8x256xf32>
    %c0_294 = arith.constant 0 : index
    %c17_295 = arith.constant 17 : index
    %339 = vector.load %arg5[%c0_294, %c17_295] : memref<32x290xf32, #tpu.memory_space<vmem>>, vector<8x256xf32>
    tpu.vector_store %arg5[%c0_294, %c17_295], %338 {strides = array<i32>} : memref<32x290xf32, #tpu.memory_space<vmem>>, vector<8x256xf32>,
    %c0_296 = arith.constant 0 : index
    %c0_297 = arith.constant 0 : index
    %340 = vector.load %arg5[%c0_296, %c0_297] : memref<32x290xf32, #tpu.memory_space<vmem>>, vector<8x256xf32>
    %cst_298 = arith.constant 0.000000e+00 : f32
    %341 = vector.shape_cast %24 : vector<1x256xi1> to vector<1x256xi1>
    %342 = vector.broadcast %341 : vector<1x256xi1> to vector<8x256xi1>
    %343 = vector.broadcast %cst_298 : f32 to vector<8x256xf32>
    %344 = arith.select %342, %340, %343 : vector<8x256xi1>, vector<8x256xf32>
    %c0_299 = arith.constant 0 : index
    %c0_300 = arith.constant 0 : index
    %345 = vector.load %arg6[%c0_299, %c0_300] : memref<288x256xf32, #tpu.memory_space<vmem>>, vector<8x256xf32>
    tpu.vector_store %arg6[%c0_299, %c0_300], %344 {strides = array<i32>} : memref<288x256xf32, #tpu.memory_space<vmem>>, vector<8x256xf32>,
    %c0_301 = arith.constant 0 : index
    %c1_302 = arith.constant 1 : index
    %346 = vector.load %arg5[%c0_301, %c1_302] : memref<32x290xf32, #tpu.memory_space<vmem>>, vector<8x256xf32>
    %c8_303 = arith.constant 8 : index
    %c0_304 = arith.constant 0 : index
    %347 = vector.load %arg6[%c8_303, %c0_304] : memref<288x256xf32, #tpu.memory_space<vmem>>, vector<8x256xf32>
    tpu.vector_store %arg6[%c8_303, %c0_304], %346 {strides = array<i32>} : memref<288x256xf32, #tpu.memory_space<vmem>>, vector<8x256xf32>,
    %c0_305 = arith.constant 0 : index
    %c2_306 = arith.constant 2 : index
    %348 = vector.load %arg5[%c0_305, %c2_306] : memref<32x290xf32, #tpu.memory_space<vmem>>, vector<8x256xf32>
    %cst_307 = arith.constant 0.000000e+00 : f32
    %349 = vector.shape_cast %26 : vector<1x256xi1> to vector<1x256xi1>
    %350 = vector.broadcast %349 : vector<1x256xi1> to vector<8x256xi1>
    %351 = vector.broadcast %cst_307 : f32 to vector<8x256xf32>
    %352 = arith.select %350, %348, %351 : vector<8x256xi1>, vector<8x256xf32>
    %c16_308 = arith.constant 16 : index
    %c0_309 = arith.constant 0 : index
    %353 = vector.load %arg6[%c16_308, %c0_309] : memref<288x256xf32, #tpu.memory_space<vmem>>, vector<8x256xf32>
    tpu.vector_store %arg6[%c16_308, %c0_309], %352 {strides = array<i32>} : memref<288x256xf32, #tpu.memory_space<vmem>>, vector<8x256xf32>,
    %c0_310 = arith.constant 0 : index
    %c16_311 = arith.constant 16 : index
    %354 = vector.load %arg5[%c0_310, %c16_311] : memref<32x290xf32, #tpu.memory_space<vmem>>, vector<8x256xf32>
    %cst_312 = arith.constant 0.000000e+00 : f32
    %355 = vector.shape_cast %24 : vector<1x256xi1> to vector<1x256xi1>
    %356 = vector.broadcast %355 : vector<1x256xi1> to vector<8x256xi1>
    %357 = vector.broadcast %cst_312 : f32 to vector<8x256xf32>
    %358 = arith.select %356, %354, %357 : vector<8x256xi1>, vector<8x256xf32>
    %c24_313 = arith.constant 24 : index
    %c0_314 = arith.constant 0 : index
    %359 = vector.load %arg6[%c24_313, %c0_314] : memref<288x256xf32, #tpu.memory_space<vmem>>, vector<8x256xf32>
    tpu.vector_store %arg6[%c24_313, %c0_314], %358 {strides = array<i32>} : memref<288x256xf32, #tpu.memory_space<vmem>>, vector<8x256xf32>,
    %c0_315 = arith.constant 0 : index
    %c17_316 = arith.constant 17 : index
    %360 = vector.load %arg5[%c0_315, %c17_316] : memref<32x290xf32, #tpu.memory_space<vmem>>, vector<8x256xf32>
    %c32_317 = arith.constant 32 : index
    %c0_318 = arith.constant 0 : index
    %361 = vector.load %arg6[%c32_317, %c0_318] : memref<288x256xf32, #tpu.memory_space<vmem>>, vector<8x256xf32>
    tpu.vector_store %arg6[%c32_317, %c0_318], %360 {strides = array<i32>} : memref<288x256xf32, #tpu.memory_space<vmem>>, vector<8x256xf32>,
    %c0_319 = arith.constant 0 : index
    %c18_320 = arith.constant 18 : index
    %362 = vector.load %arg5[%c0_319, %c18_320] : memref<32x290xf32, #tpu.memory_space<vmem>>, vector<8x256xf32>
    %cst_321 = arith.constant 0.000000e+00 : f32
    %363 = vector.shape_cast %26 : vector<1x256xi1> to vector<1x256xi1>
    %364 = vector.broadcast %363 : vector<1x256xi1> to vector<8x256xi1>
    %365 = vector.broadcast %cst_321 : f32 to vector<8x256xf32>
    %366 = arith.select %364, %362, %365 : vector<8x256xi1>, vector<8x256xf32>
    %c40_322 = arith.constant 40 : index
    %c0_323 = arith.constant 0 : index
    %367 = vector.load %arg6[%c40_322, %c0_323] : memref<288x256xf32, #tpu.memory_space<vmem>>, vector<8x256xf32>
    tpu.vector_store %arg6[%c40_322, %c0_323], %366 {strides = array<i32>} : memref<288x256xf32, #tpu.memory_space<vmem>>, vector<8x256xf32>,
    %c0_324 = arith.constant 0 : index
    %c32_325 = arith.constant 32 : index
    %368 = vector.load %arg5[%c0_324, %c32_325] : memref<32x290xf32, #tpu.memory_space<vmem>>, vector<8x256xf32>
    %cst_326 = arith.constant 0.000000e+00 : f32
    %369 = vector.shape_cast %24 : vector<1x256xi1> to vector<1x256xi1>
    %370 = vector.broadcast %369 : vector<1x256xi1> to vector<8x256xi1>
    %371 = vector.broadcast %cst_326 : f32 to vector<8x256xf32>
    %372 = arith.select %370, %368, %371 : vector<8x256xi1>, vector<8x256xf32>
    %c48_327 = arith.constant 48 : index
    %c0_328 = arith.constant 0 : index
    %373 = vector.load %arg6[%c48_327, %c0_328] : memref<288x256xf32, #tpu.memory_space<vmem>>, vector<8x256xf32>
    tpu.vector_store %arg6[%c48_327, %c0_328], %372 {strides = array<i32>} : memref<288x256xf32, #tpu.memory_space<vmem>>, vector<8x256xf32>,
    %c0_329 = arith.constant 0 : index
    %c33_330 = arith.constant 33 : index
    %374 = vector.load %arg5[%c0_329, %c33_330] : memref<32x290xf32, #tpu.memory_space<vmem>>, vector<8x256xf32>
    %c56_331 = arith.constant 56 : index
    %c0_332 = arith.constant 0 : index
    %375 = vector.load %arg6[%c56_331, %c0_332] : memref<288x256xf32, #tpu.memory_space<vmem>>, vector<8x256xf32>
    tpu.vector_store %arg6[%c56_331, %c0_332], %374 {strides = array<i32>} : memref<288x256xf32, #tpu.memory_space<vmem>>, vector<8x256xf32>,
    %c0_333 = arith.constant 0 : index
    %c34_334 = arith.constant 34 : index
    %376 = vector.load %arg5[%c0_333, %c34_334] : memref<32x290xf32, #tpu.memory_space<vmem>>, vector<8x256xf32>
    %cst_335 = arith.constant 0.000000e+00 : f32
    %377 = vector.shape_cast %26 : vector<1x256xi1> to vector<1x256xi1>
    %378 = vector.broadcast %377 : vector<1x256xi1> to vector<8x256xi1>
    %379 = vector.broadcast %cst_335 : f32 to vector<8x256xf32>
    %380 = arith.select %378, %376, %379 : vector<8x256xi1>, vector<8x256xf32>
    %c64_336 = arith.constant 64 : index
    %c0_337 = arith.constant 0 : index
    %381 = vector.load %arg6[%c64_336, %c0_337] : memref<288x256xf32, #tpu.memory_space<vmem>>, vector<8x256xf32>
    tpu.vector_store %arg6[%c64_336, %c0_337], %380 {strides = array<i32>} : memref<288x256xf32, #tpu.memory_space<vmem>>, vector<8x256xf32>,
    %c0_338 = arith.constant 0 : index
    %c792 = arith.constant 792 : index
    %382 = vector.load %arg2[%c0_338, %c792] : memref<32x936xbf16, #tpu.memory_space<vmem>>, vector<4x72xbf16>
    %c0_339 = arith.constant 0 : index
    %c0_340 = arith.constant 0 : index
    %383 = vector.load %arg6[%c0_339, %c0_340] : memref<288x256xf32, #tpu.memory_space<vmem>>, vector<72x256xf32>
    %384 = arith.truncf %383 : vector<72x256xf32> to vector<72x256xbf16>
    %cst_341 = arith.constant dense<0.000000e+00> : vector<4x256xf32>
    %385 = tpu.matmul %382, %384, %cst_341 {dimension_numbers = #tpu.dot_dimension_numbers<[1], [0], [0], [1], [0, 0, 1, 1], [], []>} : vector<4x72xbf16>, vector<72x256xbf16>, vector<4x256xf32> -> vector<4x256xf32>
    %c0_342 = arith.constant 0 : index
    %c6 = arith.constant 6 : index
    %386 = vector.load %arg3[%c0_342, %c6] : memref<32x8xf32, #tpu.memory_space<vmem>>, vector<4x1xf32>
    %387 = vector.broadcast %386 : vector<4x1xf32> to vector<4x256xf32>
    %388 = arith.addf %385, %387 : vector<4x256xf32>
    %cst_343 = arith.constant 0.000000e+00 : f32
    %389 = vector.broadcast %cst_343 : f32 to vector<4x256xf32>
    %390 = arith.maximumf %388, %389 : vector<4x256xf32>
    %c0_344 = arith.constant 0 : index
    %c17_345 = arith.constant 17 : index
    %391 = vector.load %arg5[%c0_344, %c17_345] : memref<32x290xf32, #tpu.memory_space<vmem>>, vector<4x256xf32>
    tpu.vector_store %arg5[%c0_344, %c17_345], %390 {strides = array<i32>} : memref<32x290xf32, #tpu.memory_space<vmem>>, vector<4x256xf32>,
    %c0_346 = arith.constant 0 : index
    %c0_347 = arith.constant 0 : index
    %392 = vector.load %arg5[%c0_346, %c0_347] : memref<32x290xf32, #tpu.memory_space<vmem>>, vector<4x256xf32>
    %cst_348 = arith.constant 0.000000e+00 : f32
    %393 = vector.shape_cast %24 : vector<1x256xi1> to vector<1x256xi1>
    %394 = vector.broadcast %393 : vector<1x256xi1> to vector<4x256xi1>
    %395 = vector.broadcast %cst_348 : f32 to vector<4x256xf32>
    %396 = arith.select %394, %392, %395 : vector<4x256xi1>, vector<4x256xf32>
    %c0_349 = arith.constant 0 : index
    %c0_350 = arith.constant 0 : index
    %397 = vector.load %arg6[%c0_349, %c0_350] : memref<288x256xf32, #tpu.memory_space<vmem>>, vector<4x256xf32>
    tpu.vector_store %arg6[%c0_349, %c0_350], %396 {strides = array<i32>} : memref<288x256xf32, #tpu.memory_space<vmem>>, vector<4x256xf32>,
    %c0_351 = arith.constant 0 : index
    %c1_352 = arith.constant 1 : index
    %398 = vector.load %arg5[%c0_351, %c1_352] : memref<32x290xf32, #tpu.memory_space<vmem>>, vector<4x256xf32>
    %c8_353 = arith.constant 8 : index
    %c0_354 = arith.constant 0 : index
    %399 = vector.load %arg6[%c8_353, %c0_354] : memref<288x256xf32, #tpu.memory_space<vmem>>, vector<4x256xf32>
    tpu.vector_store %arg6[%c8_353, %c0_354], %398 {strides = array<i32>} : memref<288x256xf32, #tpu.memory_space<vmem>>, vector<4x256xf32>,
    %c0_355 = arith.constant 0 : index
    %c2_356 = arith.constant 2 : index
    %400 = vector.load %arg5[%c0_355, %c2_356] : memref<32x290xf32, #tpu.memory_space<vmem>>, vector<4x256xf32>
    %cst_357 = arith.constant 0.000000e+00 : f32
    %401 = vector.shape_cast %26 : vector<1x256xi1> to vector<1x256xi1>
    %402 = vector.broadcast %401 : vector<1x256xi1> to vector<4x256xi1>
    %403 = vector.broadcast %cst_357 : f32 to vector<4x256xf32>
    %404 = arith.select %402, %400, %403 : vector<4x256xi1>, vector<4x256xf32>
    %c16_358 = arith.constant 16 : index
    %c0_359 = arith.constant 0 : index
    %405 = vector.load %arg6[%c16_358, %c0_359] : memref<288x256xf32, #tpu.memory_space<vmem>>, vector<4x256xf32>
    tpu.vector_store %arg6[%c16_358, %c0_359], %404 {strides = array<i32>} : memref<288x256xf32, #tpu.memory_space<vmem>>, vector<4x256xf32>,
    %c0_360 = arith.constant 0 : index
    %c16_361 = arith.constant 16 : index
    %406 = vector.load %arg5[%c0_360, %c16_361] : memref<32x290xf32, #tpu.memory_space<vmem>>, vector<4x256xf32>
    %cst_362 = arith.constant 0.000000e+00 : f32
    %407 = vector.shape_cast %24 : vector<1x256xi1> to vector<1x256xi1>
    %408 = vector.broadcast %407 : vector<1x256xi1> to vector<4x256xi1>
    %409 = vector.broadcast %cst_362 : f32 to vector<4x256xf32>
    %410 = arith.select %408, %406, %409 : vector<4x256xi1>, vector<4x256xf32>
    %c24_363 = arith.constant 24 : index
    %c0_364 = arith.constant 0 : index
    %411 = vector.load %arg6[%c24_363, %c0_364] : memref<288x256xf32, #tpu.memory_space<vmem>>, vector<4x256xf32>
    tpu.vector_store %arg6[%c24_363, %c0_364], %410 {strides = array<i32>} : memref<288x256xf32, #tpu.memory_space<vmem>>, vector<4x256xf32>,
    %c0_365 = arith.constant 0 : index
    %c17_366 = arith.constant 17 : index
    %412 = vector.load %arg5[%c0_365, %c17_366] : memref<32x290xf32, #tpu.memory_space<vmem>>, vector<4x256xf32>
    %c32_367 = arith.constant 32 : index
    %c0_368 = arith.constant 0 : index
    %413 = vector.load %arg6[%c32_367, %c0_368] : memref<288x256xf32, #tpu.memory_space<vmem>>, vector<4x256xf32>
    tpu.vector_store %arg6[%c32_367, %c0_368], %412 {strides = array<i32>} : memref<288x256xf32, #tpu.memory_space<vmem>>, vector<4x256xf32>,
    %c0_369 = arith.constant 0 : index
    %c18_370 = arith.constant 18 : index
    %414 = vector.load %arg5[%c0_369, %c18_370] : memref<32x290xf32, #tpu.memory_space<vmem>>, vector<4x256xf32>
    %cst_371 = arith.constant 0.000000e+00 : f32
    %415 = vector.shape_cast %26 : vector<1x256xi1> to vector<1x256xi1>
    %416 = vector.broadcast %415 : vector<1x256xi1> to vector<4x256xi1>
    %417 = vector.broadcast %cst_371 : f32 to vector<4x256xf32>
    %418 = arith.select %416, %414, %417 : vector<4x256xi1>, vector<4x256xf32>
    %c40_372 = arith.constant 40 : index
    %c0_373 = arith.constant 0 : index
    %419 = vector.load %arg6[%c40_372, %c0_373] : memref<288x256xf32, #tpu.memory_space<vmem>>, vector<4x256xf32>
    tpu.vector_store %arg6[%c40_372, %c0_373], %418 {strides = array<i32>} : memref<288x256xf32, #tpu.memory_space<vmem>>, vector<4x256xf32>,
    %c0_374 = arith.constant 0 : index
    %c32_375 = arith.constant 32 : index
    %420 = vector.load %arg5[%c0_374, %c32_375] : memref<32x290xf32, #tpu.memory_space<vmem>>, vector<4x256xf32>
    %cst_376 = arith.constant 0.000000e+00 : f32
    %421 = vector.shape_cast %24 : vector<1x256xi1> to vector<1x256xi1>
    %422 = vector.broadcast %421 : vector<1x256xi1> to vector<4x256xi1>
    %423 = vector.broadcast %cst_376 : f32 to vector<4x256xf32>
    %424 = arith.select %422, %420, %423 : vector<4x256xi1>, vector<4x256xf32>
    %c48_377 = arith.constant 48 : index
    %c0_378 = arith.constant 0 : index
    %425 = vector.load %arg6[%c48_377, %c0_378] : memref<288x256xf32, #tpu.memory_space<vmem>>, vector<4x256xf32>
    tpu.vector_store %arg6[%c48_377, %c0_378], %424 {strides = array<i32>} : memref<288x256xf32, #tpu.memory_space<vmem>>, vector<4x256xf32>,
    %c0_379 = arith.constant 0 : index
    %c33_380 = arith.constant 33 : index
    %426 = vector.load %arg5[%c0_379, %c33_380] : memref<32x290xf32, #tpu.memory_space<vmem>>, vector<4x256xf32>
    %c56_381 = arith.constant 56 : index
    %c0_382 = arith.constant 0 : index
    %427 = vector.load %arg6[%c56_381, %c0_382] : memref<288x256xf32, #tpu.memory_space<vmem>>, vector<4x256xf32>
    tpu.vector_store %arg6[%c56_381, %c0_382], %426 {strides = array<i32>} : memref<288x256xf32, #tpu.memory_space<vmem>>, vector<4x256xf32>,
    %c0_383 = arith.constant 0 : index
    %c34_384 = arith.constant 34 : index
    %428 = vector.load %arg5[%c0_383, %c34_384] : memref<32x290xf32, #tpu.memory_space<vmem>>, vector<4x256xf32>
    %cst_385 = arith.constant 0.000000e+00 : f32
    %429 = vector.shape_cast %26 : vector<1x256xi1> to vector<1x256xi1>
    %430 = vector.broadcast %429 : vector<1x256xi1> to vector<4x256xi1>
    %431 = vector.broadcast %cst_385 : f32 to vector<4x256xf32>
    %432 = arith.select %430, %428, %431 : vector<4x256xi1>, vector<4x256xf32>
    %c64_386 = arith.constant 64 : index
    %c0_387 = arith.constant 0 : index
    %433 = vector.load %arg6[%c64_386, %c0_387] : memref<288x256xf32, #tpu.memory_space<vmem>>, vector<4x256xf32>
    tpu.vector_store %arg6[%c64_386, %c0_387], %432 {strides = array<i32>} : memref<288x256xf32, #tpu.memory_space<vmem>>, vector<4x256xf32>,
    %c0_388 = arith.constant 0 : index
    %c864 = arith.constant 864 : index
    %434 = vector.load %arg2[%c0_388, %c864] : memref<32x936xbf16, #tpu.memory_space<vmem>>, vector<3x72xbf16>
    %c0_389 = arith.constant 0 : index
    %c0_390 = arith.constant 0 : index
    %435 = vector.load %arg6[%c0_389, %c0_390] : memref<288x256xf32, #tpu.memory_space<vmem>>, vector<72x256xf32>
    %436 = arith.truncf %435 : vector<72x256xf32> to vector<72x256xbf16>
    %cst_391 = arith.constant dense<0.000000e+00> : vector<3x256xf32>
    %437 = tpu.matmul %434, %436, %cst_391 {dimension_numbers = #tpu.dot_dimension_numbers<[1], [0], [0], [1], [0, 0, 1, 1], [], []>} : vector<3x72xbf16>, vector<72x256xbf16>, vector<3x256xf32> -> vector<3x256xf32>
    %c0_392 = arith.constant 0 : index
    %c7 = arith.constant 7 : index
    %438 = vector.load %arg3[%c0_392, %c7] : memref<32x8xf32, #tpu.memory_space<vmem>>, vector<3x1xf32>
    %439 = vector.broadcast %438 : vector<3x1xf32> to vector<3x256xf32>
    %440 = arith.addf %437, %439 : vector<3x256xf32>
    %c0_393 = arith.constant 0 : index
    %c0_394 = arith.constant 0 : index
    %c0_395 = arith.constant 0 : index
    %441 = vector.load %arg4[%c0_393, %c0_394, %c0_395] : memref<1x3x256xf32, #tpu.memory_space<vmem>>, vector<1x3x256xf32>
    %442 = vector.shape_cast %441 : vector<1x3x256xf32> to vector<3x256xf32>
    %443 = vector.shape_cast %440 : vector<3x256xf32> to vector<1x3x256xf32>
    tpu.vector_store %arg4[%c0_393, %c0_394, %c0_395], %443 {strides = array<i32>} : memref<1x3x256xf32, #tpu.memory_space<vmem>>, vector<1x3x256xf32>,
    return
  }
  func.func @transform_0(%arg0: i32) -> (i32, i32, i32) {
    %c0_i32 = arith.constant 0 : i32
    %c0_i32_0 = arith.constant 0 : i32
    %c0_i32_1 = arith.constant 0 : i32
    return %arg0, %c0_i32, %c0_i32_0 : i32, i32, i32
  }
  func.func @transform_1(%arg0: i32) -> (i32, i32) {
    %c0_i32 = arith.constant 0 : i32
    %c0_i32_0 = arith.constant 0 : i32
    %c0_i32_1 = arith.constant 0 : i32
    return %c0_i32, %c0_i32_0 : i32, i32
  }
  func.func @transform_2(%arg0: i32) -> (i32, i32) {
    %c0_i32 = arith.constant 0 : i32
    %c0_i32_0 = arith.constant 0 : i32
    %c0_i32_1 = arith.constant 0 : i32
    return %c0_i32, %c0_i32_0 : i32, i32
  }
  func.func @transform_3(%arg0: i32) -> (i32, i32, i32) {
    %c0_i32 = arith.constant 0 : i32
    %c0_i32_0 = arith.constant 0 : i32
    %c0_i32_1 = arith.constant 0 : i32
    return %arg0, %c0_i32, %c0_i32_0 : i32, i32, i32
  }
}

</mosaic_0001>

<llo_original>
// kernel: deep_cnn_forward.1
$region0: #{deep_cnn_forward.1}
  #allocation0 [shape = 'u32[]', space=smem, size = 0x4, offset = 0x4, fixed_abs, tag = 'smem constant byte address 0x4 - core index']
  #allocation1 [shape = 'u32[144,128]{1,0:T(1,128)}', space=vmem, size = 0x12000, scoped, tag = 'internal scratch']
  #allocation2 [shape = 'f32[32,290]{1,0:T(8,128)}', space=vmem, size = 0xc000, scoped, tag = 'scratch operand']
  #allocation3 [shape = 'f32[288,256]{1,0:T(8,128)}', space=vmem, size = 0x48000, scoped, tag = 'scratch operand']
  %s0 = inlined_call_operand.vmem [shape: f32[2,3,256], index: 0, kind: input, shape index: {}]
  %s1 = inlined_call_operand.vmem [shape: bf16[32,936], index: 1, kind: input, shape index: {}]
  %s2 = inlined_call_operand.vmem [shape: f32[32,8], index: 2, kind: input, shape index: {}]
  %s3 = inlined_call_operand.vmem [shape: f32[2,3,256], index: 3, kind: output, shape index: {}]
  %s4 = sld [smem:[#allocation0]]
  $region45: #{deep_cnn_forward.1} parent=0
    _
  %s6 = ssub.s32 1, %s4
  %s7 = scalar_select 0, %s6, %s4
  loop: start=0, step=1, limit=4
  $region2: #{deep_cnn_forward.1} parent=0 // loop_pre_header
    _
  $region3: #{deep_cnn_forward.1} parent=0 // loop_header
    %s9 = sphi 0, %s13
    %p10 = scmp.ge.s32.totalorder %s9, 4
    %s19 = sphi 0, %s21
    %s22 = sphi 0, %s19
    %s23 = sphi 0, %s22
    %s39 = sphi 0, %s23
    %s43 = sphi 0, %s43
    %s45 = sphi 0, %s43
    %s46 = sphi 0, %s45
    %s60 = sphi 0, %s46
    %s64 = sphi 0, %s64
    %s66 = sphi 0, %s64
    %s67 = sphi 0, %s66
    %s81 = sphi 0, %s67
    %s87 = sphi 0, %s89
    %s90 = sphi 0, %s87
    %s91 = sphi 0, %s90
    %s107 = sphi 0, %s91
  $region4: #{deep_cnn_forward.1} parent=0 // loop_header_branch
    %12 = sbr.rel (%p10) target = $region8
  $region5: #{deep_cnn_forward.1} parent=0 // loop_body
    %s14 = ssub.s32 %s9, 1
    %s15 = ssub.s32 %s9, 2
    %s16 = sadd.s32 %s9, 1
    %s17 = ssub.s32 %s9, %s16
    %p18 = scmp.eq.s32.totalorder %s17, 0
    %s20 = sadd.s32 %s19, 1
    %s21 = scalar_select %p18, %s19, %s20
    %p24 = pneg %p18
    %p25 = scmp.eq.s32.totalorder %s9, 1
    %p26 = por %p24, %p25
    %p27 = scmp.ne.s32.totalorder %s19, %s22
    %p28 = scmp.eq.s32.totalorder %s9, 0
    %p29 = por %p27, %p28
    %p30 = scmp.ne.s32.totalorder %s19, %s22
    %p31 = scmp.eq.s32.totalorder %s14, 1
    %p32 = por %p30, %p31
    %p33 = scmp.ne.s32.totalorder %s22, %s23
    %p34 = scmp.eq.s32.totalorder %s14, 0
    %p35 = por %p33, %p34
    %p36 = scmp.ne.s32.totalorder %s22, %s23
    %p37 = scmp.eq.s32.totalorder %s15, 1
    %p38 = por %p36, %p37
    %p40 = scmp.ne.s32.totalorder %s23, %s39
    %p41 = scmp.eq.s32.totalorder %s15, 0
    %p42 = por %p40, %p41
    %s44 = sadd.s32 %s43, 1
    %p47 = scmp.eq.s32.totalorder %s9, 1
    %p48 = scmp.ne.s32.totalorder %s43, %s45
    %p49 = scmp.eq.s32.totalorder %s9, 0
    %p50 = por %p48, %p49
    %p51 = scmp.ne.s32.totalorder %s43, %s45
    %p52 = scmp.eq.s32.totalorder %s14, 1
    %p53 = por %p51, %p52
    %p54 = scmp.ne.s32.totalorder %s45, %s46
    %p55 = scmp.eq.s32.totalorder %s14, 0
    %p56 = por %p54, %p55
    %p57 = scmp.ne.s32.totalorder %s45, %s46
    %p58 = scmp.eq.s32.totalorder %s15, 1
    %p59 = por %p57, %p58
    %p61 = scmp.ne.s32.totalorder %s46, %s60
    %p62 = scmp.eq.s32.totalorder %s15, 0
    %p63 = por %p61, %p62
    %s65 = sadd.s32 %s64, 1
    %p68 = scmp.eq.s32.totalorder %s9, 1
    %p69 = scmp.ne.s32.totalorder %s64, %s66
    %p70 = scmp.eq.s32.totalorder %s9, 0
    %p71 = por %p69, %p70
    %p72 = scmp.ne.s32.totalorder %s64, %s66
    %p73 = scmp.eq.s32.totalorder %s14, 1
    %p74 = por %p72, %p73
    %p75 = scmp.ne.s32.totalorder %s66, %s67
    %p76 = scmp.eq.s32.totalorder %s14, 0
    %p77 = por %p75, %p76
    %p78 = scmp.ne.s32.totalorder %s66, %s67
    %p79 = scmp.eq.s32.totalorder %s15, 1
    %p80 = por %p78, %p79
    %p82 = scmp.ne.s32.totalorder %s67, %s81
    %p83 = scmp.eq.s32.totalorder %s15, 0
    %p84 = por %p82, %p83
    %s85 = ssub.s32 %s9, %s16
    %p86 = scmp.eq.s32.totalorder %s85, 0
    %s88 = sadd.s32 %s87, 1
    %s89 = scalar_select %p86, %s87, %s88
    %p92 = pneg %p86
    %p93 = scmp.eq.s32.totalorder %s9, 1
    %p94 = por %p92, %p93
    %p95 = scmp.ne.s32.totalorder %s87, %s90
    %p96 = scmp.eq.s32.totalorder %s9, 0
    %p97 = por %p95, %p96
    %p98 = scmp.ne.s32.totalorder %s87, %s90
    %p99 = scmp.eq.s32.totalorder %s14, 1
    %p100 = por %p98, %p99
    %p101 = scmp.ne.s32.totalorder %s90, %s91
    %p102 = scmp.eq.s32.totalorder %s14, 0
    %p103 = por %p101, %p102
    %p104 = scmp.ne.s32.totalorder %s90, %s91
    %p105 = scmp.eq.s32.totalorder %s15, 1
    %p106 = por %p104, %p105
    %p108 = scmp.ne.s32.totalorder %s91, %s107
    %p109 = scmp.eq.s32.totalorder %s15, 0
    %p110 = por %p108, %p109
    %p111 = scmp.le.s32.totalorder 1, %s9
    %p112 = scmp.lt.s32.totalorder %s9, 3
    %p113 = pnand %p111, %p112
    %p114 = pneg %p113
    // Predicated region
    $region9: #{deep_cnn_forward.1} parent=5 // pred_check
      _
    $region10: #{deep_cnn_forward.1} parent=5 // pred_check_branch
      %116 = sbr.rel (%p113) target = $region12
    $region11: #{deep_cnn_forward.1} parent=5 // pred_region
      %s117 = ssub.s32 %s9, 1
      // Predicated region
      $region13: #{deep_cnn_forward.1} parent=11 // pred_check
        %p118 = pneg %p56
      $region14: #{deep_cnn_forward.1} parent=11 // pred_check_branch
        %120 = sbr.rel (%p118) target = $region16
      $region15: #{deep_cnn_forward.1} parent=11 // pred_region
        _
      $region16: #{deep_cnn_forward.1} parent=11 // pred_fallthru
        _
      // Predicated region
      $region17: #{deep_cnn_forward.1} parent=11 // pred_check
        %p121 = pneg %p77
      $region18: #{deep_cnn_forward.1} parent=11 // pred_check_branch
        %123 = sbr.rel (%p121) target = $region20
      $region19: #{deep_cnn_forward.1} parent=11 // pred_region
        _
      $region20: #{deep_cnn_forward.1} parent=11 // pred_fallthru
        _
    $region12: #{deep_cnn_forward.1} parent=5 // pred_fallthru
      _
    %p124 = scmp.lt.s32.totalorder %s9, 2
    // Predicated region
    $region21: #{deep_cnn_forward.1} parent=5 // pred_check
      %p125 = pneg %p124
    $region22: #{deep_cnn_forward.1} parent=5 // pred_check_branch
      %127 = sbr.rel (%p125) target = $region24
    $region23: #{deep_cnn_forward.1} parent=5 // pred_region
      // Predicated region
      $region25: #{deep_cnn_forward.1} parent=23 // pred_check
        %p128 = pneg %p29
      $region26: #{deep_cnn_forward.1} parent=23 // pred_check_branch
        %130 = sbr.rel (%p128) target = $region28
      $region27: #{deep_cnn_forward.1} parent=23 // pred_region
        %p131 = scmp.lt.s32.totalorder %s9, 1
        %s132 = scalar_select %p131, %s9, 1
        %s133 = smul.addr %s132, 2
        %s134 = smul.addr %s133, 4
        %s135 = scalar_lea.vmem %s0, %s134
      $region28: #{deep_cnn_forward.1} parent=23 // pred_fallthru
        _
    $region24: #{deep_cnn_forward.1} parent=5 // pred_fallthru
      _
    %p136 = scmp.le.s32.totalorder 1, %s9
    %p137 = scmp.lt.s32.totalorder %s9, 3
    %p138 = pnand %p136, %p137
    %p139 = pneg %p138
    // Predicated region
    $region29: #{deep_cnn_forward.1} parent=5 // pred_check
      _
    $region30: #{deep_cnn_forward.1} parent=5 // pred_check_branch
      %141 = sbr.rel (%p138) target = $region32
    $region31: #{deep_cnn_forward.1} parent=5 // pred_region
      %s142 = ssub.s32 %s9, 1
      %p143 = scmp.lt.s32.totalorder %s14, 1
      %s144 = scalar_select %p143, %s14, 1
      %s145 = smul.addr %s144, 2
      %s146 = smul.addr %s145, 4
      %s147 = scalar_lea.vmem %s0, %s146
      %p148 = pneg %p35
      %p149 = pneg %p32
      %p150 = pneg %p56
      %p151 = pneg %p53
      %p152 = pneg %p77
      %p153 = pneg %p74
      %p154 = pneg %p103
      %p155 = pneg %p100
      %p156 = scmp.lt.s32.totalorder %s14, 1
      %s157 = scalar_select %p156, %s14, 1
      %s158 = smul.addr %s157, 2
      %s159 = smul.addr %s158, 4
      %s160 = scalar_lea.vmem %s3, %s159
      %p161 = scmp.lt.s32.totalorder %s14, 1
      %s162 = scalar_select %p161, %s14, 1
      %s163 = smul.addr %s162, 2
      %s164 = smul.addr %s163, 4
      %s165 = scalar_lea.vmem %s0, %s164
      %p166 = scmp.lt.s32.totalorder %s14, 1
      %s167 = scalar_select %p166, %s14, 1
      %s168 = smul.addr %s167, 2
      %s169 = smul.addr %s168, 4
      %s170 = scalar_lea.vmem %s3, %s169
      %vm172 = vcmask 138240
      %173 = vst.msk [vmem:[#allocation2] sm:$0xff] %vm172, 0.0
      %174 = vst.msk [vmem:[#allocation2 + $0x18] sm:$0xff] %vm172, 0.0
      %175 = vst.msk [vmem:[#allocation2 + $0x30] sm:$0xff] %vm172, 0.0
      %176 = vst.msk [vmem:[#allocation2 + $0x48] sm:$0xff] %vm172, 0.0
      %vm177 = vcmask 277640
      %178 = vst.msk [vmem:[#allocation2 + $0x10] sm:$0xff] %vm177, 0.0
      %179 = vst.msk [vmem:[#allocation2 + $0x28] sm:$0xff] %vm177, 0.0
      %180 = vst.msk [vmem:[#allocation2 + $0x40] sm:$0xff] %vm177, 0.0
      %181 = vst.msk [vmem:[#allocation2 + $0x58] sm:$0xff] %vm177, 0.0
      %182 = vst [vmem:[#allocation3] sm:$0xff] 0.0
      %183 = vst [vmem:[#allocation3 + $0x8] sm:$0xff] 0.0
      %184 = vst [vmem:[#allocation3 + $0x10] sm:$0xff] 0.0
      %185 = vst [vmem:[#allocation3 + $0x18] sm:$0xff] 0.0
      %186 = vst [vmem:[#allocation3 + $0x20] sm:$0xff] 0.0
      %187 = vst [vmem:[#allocation3 + $0x28] sm:$0xff] 0.0
      %188 = vst [vmem:[#allocation3 + $0x30] sm:$0xff] 0.0
      %189 = vst [vmem:[#allocation3 + $0x38] sm:$0xff] 0.0
      %190 = vst [vmem:[#allocation3 + $0x40] sm:$0xff] 0.0
      %191 = vst [vmem:[#allocation3 + $0x48] sm:$0xff] 0.0
      %192 = vst [vmem:[#allocation3 + $0x50] sm:$0xff] 0.0
      %193 = vst [vmem:[#allocation3 + $0x58] sm:$0xff] 0.0
      %194 = vst [vmem:[#allocation3 + $0x60] sm:$0xff] 0.0
      %195 = vst [vmem:[#allocation3 + $0x68] sm:$0xff] 0.0
      %196 = vst [vmem:[#allocation3 + $0x70] sm:$0xff] 0.0
      %197 = vst [vmem:[#allocation3 + $0x78] sm:$0xff] 0.0
      %198 = vst [vmem:[#allocation3 + $0x80] sm:$0xff] 0.0
      %199 = vst [vmem:[#allocation3 + $0x88] sm:$0xff] 0.0
      %200 = vst [vmem:[#allocation3 + $0x90] sm:$0xff] 0.0
      %201 = vst [vmem:[#allocation3 + $0x98] sm:$0xff] 0.0
      %202 = vst [vmem:[#allocation3 + $0xa0] sm:$0xff] 0.0
      %203 = vst [vmem:[#allocation3 + $0xa8] sm:$0xff] 0.0
      %204 = vst [vmem:[#allocation3 + $0xb0] sm:$0xff] 0.0
      %205 = vst [vmem:[#allocation3 + $0xb8] sm:$0xff] 0.0
      %206 = vst [vmem:[#allocation3 + $0xc0] sm:$0xff] 0.0
      %207 = vst [vmem:[#allocation3 + $0xc8] sm:$0xff] 0.0
      %208 = vst [vmem:[#allocation3 + $0xd0] sm:$0xff] 0.0
      %209 = vst [vmem:[#allocation3 + $0xd8] sm:$0xff] 0.0
      %210 = vst [vmem:[#allocation3 + $0xe0] sm:$0xff] 0.0
      %211 = vst [vmem:[#allocation3 + $0xe8] sm:$0xff] 0.0
      %212 = vst [vmem:[#allocation3 + $0xf0] sm:$0xff] 0.0
      %213 = vst [vmem:[#allocation3 + $0xf8] sm:$0xff] 0.0
      %214 = vst [vmem:[#allocation3 + $0x100] sm:$0xff] 0.0
      %215 = vst [vmem:[#allocation3 + $0x108] sm:$0xff] 0.0
      %216 = vst [vmem:[#allocation3 + $0x110] sm:$0xff] 0.0
      %217 = vst [vmem:[#allocation3 + $0x118] sm:$0xff] 0.0
      %218 = vst [vmem:[#allocation3 + $0x120] sm:$0xff] 0.0
      %219 = vst [vmem:[#allocation3 + $0x128] sm:$0xff] 0.0
      %220 = vst [vmem:[#allocation3 + $0x130] sm:$0xff] 0.0
      %221 = vst [vmem:[#allocation3 + $0x138] sm:$0xff] 0.0
      %222 = vst [vmem:[#allocation3 + $0x140] sm:$0xff] 0.0
      %223 = vst [vmem:[#allocation3 + $0x148] sm:$0xff] 0.0
      %224 = vst [vmem:[#allocation3 + $0x150] sm:$0xff] 0.0
      %225 = vst [vmem:[#allocation3 + $0x158] sm:$0xff] 0.0
      %226 = vst [vmem:[#allocation3 + $0x160] sm:$0xff] 0.0
      %227 = vst [vmem:[#allocation3 + $0x168] sm:$0xff] 0.0
      %228 = vst [vmem:[#allocation3 + $0x170] sm:$0xff] 0.0
      %229 = vst [vmem:[#allocation3 + $0x178] sm:$0xff] 0.0
      %230 = vst [vmem:[#allocation3 + $0x180] sm:$0xff] 0.0
      %231 = vst [vmem:[#allocation3 + $0x188] sm:$0xff] 0.0
      %232 = vst [vmem:[#allocation3 + $0x190] sm:$0xff] 0.0
      %233 = vst [vmem:[#allocation3 + $0x198] sm:$0xff] 0.0
      %234 = vst [vmem:[#allocation3 + $0x1a0] sm:$0xff] 0.0
      %235 = vst [vmem:[#allocation3 + $0x1a8] sm:$0xff] 0.0
      %236 = vst [vmem:[#allocation3 + $0x1b0] sm:$0xff] 0.0
      %237 = vst [vmem:[#allocation3 + $0x1b8] sm:$0xff] 0.0
      %238 = vst [vmem:[#allocation3 + $0x1c0] sm:$0xff] 0.0
      %239 = vst [vmem:[#allocation3 + $0x1c8] sm:$0xff] 0.0
      %240 = vst [vmem:[#allocation3 + $0x1d0] sm:$0xff] 0.0
      %241 = vst [vmem:[#allocation3 + $0x1d8] sm:$0xff] 0.0
      %242 = vst [vmem:[#allocation3 + $0x1e0] sm:$0xff] 0.0
      %243 = vst [vmem:[#allocation3 + $0x1e8] sm:$0xff] 0.0
      %244 = vst [vmem:[#allocation3 + $0x1f0] sm:$0xff] 0.0
      %245 = vst [vmem:[#allocation3 + $0x1f8] sm:$0xff] 0.0
      %246 = vst [vmem:[#allocation3 + $0x200] sm:$0xff] 0.0
      %247 = vst [vmem:[#allocation3 + $0x208] sm:$0xff] 0.0
      %248 = vst [vmem:[#allocation3 + $0x210] sm:$0xff] 0.0
      %249 = vst [vmem:[#allocation3 + $0x218] sm:$0xff] 0.0
      %250 = vst [vmem:[#allocation3 + $0x220] sm:$0xff] 0.0
      %251 = vst [vmem:[#allocation3 + $0x228] sm:$0xff] 0.0
      %252 = vst [vmem:[#allocation3 + $0x230] sm:$0xff] 0.0
      %253 = vst [vmem:[#allocation3 + $0x238] sm:$0xff] 0.0
      %v254 = vlaneseq
      %v255 = vand.u32 %v254, 127
      %v256 = vadd.s32 %v255, 128
      %vm257 = vcmp.lt.s32.totalorder %v255, 0
      %v258 = vsub.s32 0, %v255
      %v259 = vsel %vm257, %v258, %v255
      %v260 = vshrl.u32 %v259, 4
      %v261 = vand.u32 %v259, 15
      %v262 = vsub.s32 0, %v261
      %v263 = vsel %vm257, %v262, %v261
      %vm264 = vcmp.lt.s32.totalorder %v256, 0
      %v265 = vsub.s32 0, %v256
      %v266 = vsel %vm264, %v265, %v256
      %v267 = vshrl.u32 %v266, 4
      %v268 = vand.u32 %v266, 15
      %v269 = vsub.s32 0, %v268
      %v270 = vsel %vm264, %v269, %v268
      %vm271 = vcmp.ne.s32.totalorder %v263, 0
      %vm272 = vcmp.ne.s32.totalorder %v270, 0
      %vm273 = vcmp.lt.s32.totalorder %v263, 0
      %vm274 = vcmp.lt.s32.totalorder %v270, 0
      %vm275 = vmand %vm273, %vm271
      %vm276 = vmand %vm274, %vm272
      %v277 = vadd.s32 %v263, 16
      %v278 = vadd.s32 %v270, 16
      %v279 = vsel %vm275, %v277, %v263
      %v280 = vsel %vm276, %v278, %v270
      %vm281 = vcmp.ge.s32.totalorder %v279, 1
      %vm282 = vcmp.ge.s32.totalorder %v280, 1
      %vm283 = vcmp.le.s32.totalorder %v279, 14
      %vm284 = vcmp.le.s32.totalorder %v280, 14
      %v285 = vld [vmem:[%s165] sm:$0x77]
      %v287 = vcombine.high %v285, %v285
      %288 = vrot.lane.b32.xlu0 %v285, 17
      %v289 = vpop.permute.xlu0 %288
      %290 = vrot.lane.b32.xlu0 %v287, 17
      %v291 = vpop.permute.xlu0 %290
      %v292 = vsel %vm172, %v289, %v291
      %vm296 = vcmask 1042568
      %297 = vst.msk [vmem:[#allocation2] sm:$0x7] %vm296, %v289
      %298 = vst [vmem:[#allocation2 + $0x8] sm:$0x7] %v292
      %vm299 = vcmask 133120
      %300 = vst.msk [vmem:[#allocation2 + $0x10] sm:$0x7] %vm299, %v291
      %v301 = vld [vmem:[#allocation2] sm:$0x7]
      %v302 = vld [vmem:[#allocation2 + $0x8] sm:$0x7]
      %v303 = vsel %vm281, 1, 0
      %v304 = vsel %vm282, 1, 0
      %vm305 = vcmp.eq.s32.totalorder %v303, 1
      %vm306 = vcmp.eq.s32.totalorder %v304, 1
      %v307 = vsel %vm305, %v301, 0.0
      %v308 = vsel %vm306, %v302, 0.0
      %309 = vst [vmem:[#allocation3] sm:$0x7] %v307
      %310 = vst [vmem:[#allocation3 + $0x8] sm:$0x7] %v308
      %v311 = vld [vmem:[#allocation2] sm:$0x7]
      %v312 = vld [vmem:[#allocation2 + $0x8] sm:$0x7]
      %v313 = vld [vmem:[#allocation2 + $0x10] sm:$0x7]
      %317 = vrot.lane.b32.xlu0 %v311, 127
      %v318 = vpop.permute.xlu0 %317
      %319 = vrot.lane.b32.xlu0 %v312, 127
      %v320 = vpop.permute.xlu0 %319
      %321 = vrot.lane.b32.xlu0 %v313, 127
      %v322 = vpop.permute.xlu0 %321
      %vm323 = vcmask 1039360
      %v324 = vsel %vm323, %v318, %v320
      %v325 = vsel %vm323, %v320, %v322
      %328 = vst [vmem:[#allocation3 + $0x10] sm:$0x7] %v324
      %329 = vst [vmem:[#allocation3 + $0x18] sm:$0x7] %v325
      %v330 = vld [vmem:[#allocation2] sm:$0x7]
      %v331 = vld [vmem:[#allocation2 + $0x8] sm:$0x7]
      %v332 = vld [vmem:[#allocation2 + $0x10] sm:$0x7]
      %v333 = vsel %vm283, 1, 0
      %v334 = vsel %vm284, 1, 0
      %vm335 = vcmp.eq.s32.totalorder %v333, 1
      %vm336 = vcmp.eq.s32.totalorder %v334, 1
      %340 = vrot.lane.b32.xlu0 %v330, 126
      %v341 = vpop.permute.xlu0 %340
      %342 = vrot.lane.b32.xlu0 %v331, 126
      %v343 = vpop.permute.xlu0 %342
      %344 = vrot.lane.b32.xlu0 %v332, 126
      %v345 = vpop.permute.xlu0 %344
      %vm346 = vcmask 1031168
      %v347 = vsel %vm346, %v341, %v343
      %v348 = vsel %vm346, %v343, %v345
      %v351 = vsel %vm335, %v347, 0.0
      %v352 = vsel %vm336, %v348, 0.0
      %353 = vst [vmem:[#allocation3 + $0x20] sm:$0x7] %v351
      %354 = vst [vmem:[#allocation3 + $0x28] sm:$0x7] %v352
      %v355 = vld [vmem:[#allocation2] sm:$0x7]
      %v356 = vld [vmem:[#allocation2 + $0x8] sm:$0x7]
      %v357 = vld [vmem:[#allocation2 + $0x10] sm:$0x7]
      %361 = vrot.lane.b32.xlu0 %v355, 112
      %v362 = vpop.permute.xlu0 %361
      %363 = vrot.lane.b32.xlu0 %v356, 112
      %v364 = vpop.permute.xlu0 %363
      %365 = vrot.lane.b32.xlu0 %v357, 112
      %v366 = vpop.permute.xlu0 %365
      %vm367 = vcmask 916480
      %v368 = vsel %vm367, %v362, %v364
      %v369 = vsel %vm367, %v364, %v366
      %v372 = vsel %vm305, %v368, 0.0
      %v373 = vsel %vm306, %v369, 0.0
      %374 = vst [vmem:[#allocation3 + $0x30] sm:$0x7] %v372
      %375 = vst [vmem:[#allocation3 + $0x38] sm:$0x7] %v373
      %v376 = vld [vmem:[#allocation2] sm:$0x7]
      %v377 = vld [vmem:[#allocation2 + $0x8] sm:$0x7]
      %v378 = vld [vmem:[#allocation2 + $0x10] sm:$0x7]
      %382 = vrot.lane.b32.xlu0 %v376, 111
      %v383 = vpop.permute.xlu0 %382
      %384 = vrot.lane.b32.xlu0 %v377, 111
      %v385 = vpop.permute.xlu0 %384
      %386 = vrot.lane.b32.xlu0 %v378, 111
      %v387 = vpop.permute.xlu0 %386
      %vm388 = vcmask 908288
      %v389 = vsel %vm388, %v383, %v385
      %v390 = vsel %vm388, %v385, %v387
      %393 = vst [vmem:[#allocation3 + $0x40] sm:$0x7] %v389
      %394 = vst [vmem:[#allocation3 + $0x48] sm:$0x7] %v390
      %v395 = vld [vmem:[#allocation2] sm:$0x7]
      %v396 = vld [vmem:[#allocation2 + $0x8] sm:$0x7]
      %v397 = vld [vmem:[#allocation2 + $0x10] sm:$0x7]
      %401 = vrot.lane.b32.xlu0 %v395, 110
      %v402 = vpop.permute.xlu0 %401
      %403 = vrot.lane.b32.xlu0 %v396, 110
      %v404 = vpop.permute.xlu0 %403
      %405 = vrot.lane.b32.xlu0 %v397, 110
      %v406 = vpop.permute.xlu0 %405
      %vm407 = vcmask 900096
      %v408 = vsel %vm407, %v402, %v404
      %v409 = vsel %vm407, %v404, %v406
      %v412 = vsel %vm335, %v408, 0.0
      %v413 = vsel %vm336, %v409, 0.0
      %414 = vst [vmem:[#allocation3 + $0x50] sm:$0x7] %v412
      %415 = vst [vmem:[#allocation3 + $0x58] sm:$0x7] %v413
      %v416 = vld [vmem:[#allocation2] sm:$0x7]
      %v417 = vld [vmem:[#allocation2 + $0x8] sm:$0x7]
      %v418 = vld [vmem:[#allocation2 + $0x10] sm:$0x7]
      %422 = vrot.lane.b32.xlu0 %v416, 96
      %v423 = vpop.permute.xlu0 %422
      %424 = vrot.lane.b32.xlu0 %v417, 96
      %v425 = vpop.permute.xlu0 %424
      %426 = vrot.lane.b32.xlu0 %v418, 96
      %v427 = vpop.permute.xlu0 %426
      %vm428 = vcmask 785408
      %v429 = vsel %vm428, %v423, %v425
      %v430 = vsel %vm428, %v425, %v427
      %v433 = vsel %vm305, %v429, 0.0
      %v434 = vsel %vm306, %v430, 0.0
      %435 = vst [vmem:[#allocation3 + $0x60] sm:$0x7] %v433
      %436 = vst [vmem:[#allocation3 + $0x68] sm:$0x7] %v434
      %v437 = vld [vmem:[#allocation2] sm:$0x7]
      %v438 = vld [vmem:[#allocation2 + $0x8] sm:$0x7]
      %v439 = vld [vmem:[#allocation2 + $0x10] sm:$0x7]
      %443 = vrot.lane.b32.xlu0 %v437, 95
      %v444 = vpop.permute.xlu0 %443
      %445 = vrot.lane.b32.xlu0 %v438, 95
      %v446 = vpop.permute.xlu0 %445
      %447 = vrot.lane.b32.xlu0 %v439, 95
      %v448 = vpop.permute.xlu0 %447
      %vm449 = vcmask 777216
      %v450 = vsel %vm449, %v444, %v446
      %v451 = vsel %vm449, %v446, %v448
      %454 = vst [vmem:[#allocation3 + $0x70] sm:$0x7] %v450
      %455 = vst [vmem:[#allocation3 + $0x78] sm:$0x7] %v451
      %v456 = vld [vmem:[#allocation2] sm:$0x7]
      %v457 = vld [vmem:[#allocation2 + $0x8] sm:$0x7]
      %v458 = vld [vmem:[#allocation2 + $0x10] sm:$0x7]
      %462 = vrot.lane.b32.xlu0 %v456, 94
      %v463 = vpop.permute.xlu0 %462
      %464 = vrot.lane.b32.xlu0 %v457, 94
      %v465 = vpop.permute.xlu0 %464
      %466 = vrot.lane.b32.xlu0 %v458, 94
      %v467 = vpop.permute.xlu0 %466
      %vm468 = vcmask 769024
      %v469 = vsel %vm468, %v463, %v465
      %v470 = vsel %vm468, %v465, %v467
      %v473 = vsel %vm335, %v469, 0.0
      %v474 = vsel %vm336, %v470, 0.0
      %475 = vst [vmem:[#allocation3 + $0x80] sm:$0x7] %v473
      %476 = vst [vmem:[#allocation3 + $0x88] sm:$0x7] %v474
      %v477 = vld [vmem:[%s1] sm:$0x3]
      %v478 = vld [vmem:[#allocation3] sm:$0xff]
      %v479 = vld [vmem:[#allocation3 + $0x8] sm:$0xff]
      %v480 = vld [vmem:[#allocation3 + $0x10] sm:$0xff]
      %v481 = vld [vmem:[#allocation3 + $0x18] sm:$0xff]
      %v482 = vld [vmem:[#allocation3 + $0x20] sm:$0xff]
      %v483 = vld [vmem:[#allocation3 + $0x28] sm:$0xff]
      %v484 = vld [vmem:[#allocation3 + $0x30] sm:$0xff]
      %v485 = vld [vmem:[#allocation3 + $0x38] sm:$0xff]
      %v486 = vld [vmem:[#allocation3 + $0x40] sm:$0xff]
      %v487 = vld [vmem:[#allocation3 + $0x48] sm:$0xff]
      %v488 = vld [vmem:[#allocation3 + $0x50] sm:$0xff]
      %v489 = vld [vmem:[#allocation3 + $0x58] sm:$0xff]
      %v490 = vld [vmem:[#allocation3 + $0x60] sm:$0xff]
      %v491 = vld [vmem:[#allocation3 + $0x68] sm:$0xff]
      %v492 = vld [vmem:[#allocation3 + $0x70] sm:$0xff]
      %v493 = vld [vmem:[#allocation3 + $0x78] sm:$0xff]
      %v494 = vld [vmem:[#allocation3 + $0x80] sm:$0xff]
      %v495 = vld [vmem:[#allocation3 + $0x88] sm:$0xff]
      %v496 = vpack.c.bf16 %v480, %v478
      %v497 = vpack.c.bf16 %v481, %v479
      %v498 = vpack.c.bf16 %v484, %v482
      %v499 = vpack.c.bf16 %v485, %v483
      %v500 = vpack.c.bf16 %v488, %v486
      %v501 = vpack.c.bf16 %v489, %v487
      %v502 = vpack.c.bf16 %v492, %v490
      %v503 = vpack.c.bf16 %v493, %v491
      %v504 = vpack.c.bf16 %v494, %v494
      %v505 = vpack.c.bf16 %v495, %v495
      %v506 = vld [vmem:[%s2] sm:$0xf]
      %508 = vset.pattern.permute.xlu0 0
      %509 = vperm.xlu0 %508, %v506
      %v510 = vpop.permute.xlu0 %509
      %vm512 = vcmask 588800
      %v514 = vsel %vm512, %v477, 0
      %vm516 = vcmask 1043456
      %v518 = vsel %vm516, %v504, 0
      %v521 = vsel %vm516, %v505, 0
      %523 = vmatprep.subr.bf16.mxu0 %v497
      %524 = vmatpush1.bf16.msra.mxu0 %v496
      %525 = vmatprep.subr.bf16.mxu0 %v499
      %526 = vmatpush1.bf16.msra.mxu0 %v498
      %527 = vmatprep.subr.bf16.mxu0 %v501
      %528 = vmatpush1.bf16.msra.mxu0 %v500
      %529 = vmatprep.subr.bf16.mxu0 %v503
      %530 = vmatpush1.bf16.msra.mxu0 %v502
      %531 = vmatprep.subr.bf16.mxu0 %v521
      %532 = vmatpush1.bf16.msra.mxu0 %v518
      %533 = vmatprep.subr.bf16.mxu0 0
      %534 = vmatpush1.bf16.msra.mxu0 0
      %535 = vmatprep.subr.bf16.mxu0 0
      %536 = vmatpush1.bf16.msra.mxu0 0
      %537 = vmatprep.subr.bf16.mxu0 0
      %538 = vmatpush1.bf16.msra.mxu0 0
      %539 = vmatprep.subr.bf16.mxu0 0
      %540 = vmatpush1.bf16.msra.mxu0 0
      %541 = vmatprep.subr.bf16.mxu0 0
      %542 = vmatpush1.bf16.msra.mxu0 0
      %543 = vmatprep.subr.bf16.mxu0 0
      %544 = vmatpush1.bf16.msra.mxu0 0
      %545 = vmatprep.subr.bf16.mxu0 0
      %546 = vmatpush1.bf16.msra.mxu0 0
      %547 = vmatprep.subr.bf16.mxu0 0
      %548 = vmatpush1.bf16.msra.mxu0 0
      %549 = vmatprep.subr.bf16.mxu0 0
      %550 = vmatpush1.bf16.msra.mxu0 0
      %551 = vmatprep.subr.bf16.mxu0 0
      %552 = vmatpush1.bf16.msra.mxu0 0
      %553 = vmatprep.subr.bf16.mxu0 0
      %554 = vmatpush1.bf16.msra.mxu0 0
      %555 = vmatprep.mubr.bf16.mxu0 0
      %556 = vmatmul.mubr.bf16.gmra.mrb[0].mxu0 %v514
      %v557 = vpop.f32.mrb[0].mxu0
      %v558 = vadd.f32 %v510, %v557
      %v559 = vpop.f32.mrb[0].mxu0
      %v560 = vadd.f32 %v510, %v559
      %v561 = vpop.f32.mrb[0].mxu0
      %v562 = vpop.f32.mrb[0].mxu0
      %563 = vdwg.mxu0
      %566 = vrot.lane.b32.xlu0 %v558, 17
      %v567 = vpop.permute.xlu0 %566
      %568 = vrot.lane.b32.xlu0 %v560, 17
      %v569 = vpop.permute.xlu0 %568
      %v570 = vsel %vm172, %v567, %v569
      %vm574 = vcmask 1043592
      %575 = vst.msk [vmem:[#allocation2] sm:$0xf] %vm574, %v567
      %576 = vst [vmem:[#allocation2 + $0x8] sm:$0xf] %v570
      %vm577 = vcmask 134144
      %578 = vst.msk [vmem:[#allocation2 + $0x10] sm:$0xf] %vm577, %v569
      %v579 = vld [vmem:[#allocation2] sm:$0xf]
      %v580 = vld [vmem:[#allocation2 + $0x8] sm:$0xf]
      %v581 = vsel %vm305, %v579, 0.0
      %v582 = vsel %vm306, %v580, 0.0
      %583 = vst [vmem:[#allocation3] sm:$0xf] %v581
      %584 = vst [vmem:[#allocation3 + $0x8] sm:$0xf] %v582
      %v585 = vld [vmem:[#allocation2] sm:$0xf]
      %v586 = vld [vmem:[#allocation2 + $0x8] sm:$0xf]
      %v587 = vld [vmem:[#allocation2 + $0x10] sm:$0xf]
      %591 = vrot.lane.b32.xlu0 %v585, 127
      %v592 = vpop.permute.xlu0 %591
      %593 = vrot.lane.b32.xlu0 %v586, 127
      %v594 = vpop.permute.xlu0 %593
      %595 = vrot.lane.b32.xlu0 %v587, 127
      %v596 = vpop.permute.xlu0 %595
      %v597 = vsel %vm323, %v592, %v594
      %v598 = vsel %vm323, %v594, %v596
      %601 = vst [vmem:[#allocation3 + $0x10] sm:$0xf] %v597
      %602 = vst [vmem:[#allocation3 + $0x18] sm:$0xf] %v598
      %v603 = vld [vmem:[#allocation2] sm:$0xf]
      %v604 = vld [vmem:[#allocation2 + $0x8] sm:$0xf]
      %v605 = vld [vmem:[#allocation2 + $0x10] sm:$0xf]
      %609 = vrot.lane.b32.xlu0 %v603, 126
      %v610 = vpop.permute.xlu0 %609
      %611 = vrot.lane.b32.xlu0 %v604, 126
      %v612 = vpop.permute.xlu0 %611
      %613 = vrot.lane.b32.xlu0 %v605, 126
      %v614 = vpop.permute.xlu0 %613
      %v615 = vsel %vm346, %v610, %v612
      %v616 = vsel %vm346, %v612, %v614
      %v619 = vsel %vm335, %v615, 0.0
      %v620 = vsel %vm336, %v616, 0.0
      %621 = vst [vmem:[#allocation3 + $0x20] sm:$0xf] %v619
      %622 = vst [vmem:[#allocation3 + $0x28] sm:$0xf] %v620
      %v623 = vld [vmem:[#allocation2] sm:$0xf]
      %v624 = vld [vmem:[#allocation2 + $0x8] sm:$0xf]
      %v625 = vld [vmem:[#allocation2 + $0x10] sm:$0xf]
      %629 = vrot.lane.b32.xlu0 %v623, 112
      %v630 = vpop.permute.xlu0 %629
      %631 = vrot.lane.b32.xlu0 %v624, 112
      %v632 = vpop.permute.xlu0 %631
      %633 = vrot.lane.b32.xlu0 %v625, 112
      %v634 = vpop.permute.xlu0 %633
      %v635 = vsel %vm367, %v630, %v632
      %v636 = vsel %vm367, %v632, %v634
      %v639 = vsel %vm305, %v635, 0.0
      %v640 = vsel %vm306, %v636, 0.0
      %641 = vst [vmem:[#allocation3 + $0x30] sm:$0xf] %v639
      %642 = vst [vmem:[#allocation3 + $0x38] sm:$0xf] %v640
      %v643 = vld [vmem:[#allocation2] sm:$0xf]
      %v644 = vld [vmem:[#allocation2 + $0x8] sm:$0xf]
      %v645 = vld [vmem:[#allocation2 + $0x10] sm:$0xf]
      %649 = vrot.lane.b32.xlu0 %v643, 111
      %v650 = vpop.permute.xlu0 %649
      %651 = vrot.lane.b32.xlu0 %v644, 111
      %v652 = vpop.permute.xlu0 %651
      %653 = vrot.lane.b32.xlu0 %v645, 111
      %v654 = vpop.permute.xlu0 %653
      %v655 = vsel %vm388, %v650, %v652
      %v656 = vsel %vm388, %v652, %v654
      %659 = vst [vmem:[#allocation3 + $0x40] sm:$0xf] %v655
      %660 = vst [vmem:[#allocation3 + $0x48] sm:$0xf] %v656
      %v661 = vld [vmem:[#allocation2] sm:$0xf]
      %v662 = vld [vmem:[#allocation2 + $0x8] sm:$0xf]
      %v663 = vld [vmem:[#allocation2 + $0x10] sm:$0xf]
      %667 = vrot.lane.b32.xlu0 %v661, 110
      %v668 = vpop.permute.xlu0 %667
      %669 = vrot.lane.b32.xlu0 %v662, 110
      %v670 = vpop.permute.xlu0 %669
      %671 = vrot.lane.b32.xlu0 %v663, 110
      %v672 = vpop.permute.xlu0 %671
      %v673 = vsel %vm407, %v668, %v670
      %v674 = vsel %vm407, %v670, %v672
      %v677 = vsel %vm335, %v673, 0.0
      %v678 = vsel %vm336, %v674, 0.0
      %679 = vst [vmem:[#allocation3 + $0x50] sm:$0xf] %v677
      %680 = vst [vmem:[#allocation3 + $0x58] sm:$0xf] %v678
      %v681 = vld [vmem:[#allocation2] sm:$0xf]
      %v682 = vld [vmem:[#allocation2 + $0x8] sm:$0xf]
      %v683 = vld [vmem:[#allocation2 + $0x10] sm:$0xf]
      %687 = vrot.lane.b32.xlu0 %v681, 96
      %v688 = vpop.permute.xlu0 %687
      %689 = vrot.lane.b32.xlu0 %v682, 96
      %v690 = vpop.permute.xlu0 %689
      %691 = vrot.lane.b32.xlu0 %v683, 96
      %v692 = vpop.permute.xlu0 %691
      %v693 = vsel %vm428, %v688, %v690
      %v694 = vsel %vm428, %v690, %v692
      %v697 = vsel %vm305, %v693, 0.0
      %v698 = vsel %vm306, %v694, 0.0
      %699 = vst [vmem:[#allocation3 + $0x60] sm:$0xf] %v697
      %700 = vst [vmem:[#allocation3 + $0x68] sm:$0xf] %v698
      %v701 = vld [vmem:[#allocation2] sm:$0xf]
      %v702 = vld [vmem:[#allocation2 + $0x8] sm:$0xf]
      %v703 = vld [vmem:[#allocation2 + $0x10] sm:$0xf]
      %707 = vrot.lane.b32.xlu0 %v701, 95
      %v708 = vpop.permute.xlu0 %707
      %709 = vrot.lane.b32.xlu0 %v702, 95
      %v710 = vpop.permute.xlu0 %709
      %711 = vrot.lane.b32.xlu0 %v703, 95
      %v712 = vpop.permute.xlu0 %711
      %v713 = vsel %vm449, %v708, %v710
      %v714 = vsel %vm449, %v710, %v712
      %717 = vst [vmem:[#allocation3 + $0x70] sm:$0xf] %v713
      %718 = vst [vmem:[#allocation3 + $0x78] sm:$0xf] %v714
      %v719 = vld [vmem:[#allocation2] sm:$0xf]
      %v720 = vld [vmem:[#allocation2 + $0x8] sm:$0xf]
      %v721 = vld [vmem:[#allocation2 + $0x10] sm:$0xf]
      %725 = vrot.lane.b32.xlu0 %v719, 94
      %v726 = vpop.permute.xlu0 %725
      %727 = vrot.lane.b32.xlu0 %v720, 94
      %v728 = vpop.permute.xlu0 %727
      %729 = vrot.lane.b32.xlu0 %v721, 94
      %v730 = vpop.permute.xlu0 %729
      %v731 = vsel %vm468, %v726, %v728
      %v732 = vsel %vm468, %v728, %v730
      %v735 = vsel %vm335, %v731, 0.0
      %v736 = vsel %vm336, %v732, 0.0
      %737 = vst [vmem:[#allocation3 + $0x80] sm:$0xf] %v735
      %738 = vst [vmem:[#allocation3 + $0x88] sm:$0xf] %v736
      %v739 = vld [vmem:[%s1] sm:$0xff]
      %v740 = vld [vmem:[#allocation3] sm:$0xff]
      %v741 = vld [vmem:[#allocation3 + $0x8] sm:$0xff]
      %v742 = vld [vmem:[#allocation3 + $0x10] sm:$0xff]
      %v743 = vld [vmem:[#allocation3 + $0x18] sm:$0xff]
      %v744 = vld [vmem:[#allocation3 + $0x20] sm:$0xff]
      %v745 = vld [vmem:[#allocation3 + $0x28] sm:$0xff]
      %v746 = vld [vmem:[#allocation3 + $0x30] sm:$0xff]
      %v747 = vld [vmem:[#allocation3 + $0x38] sm:$0xff]
      %v748 = vld [vmem:[#allocation3 + $0x40] sm:$0xff]
      %v749 = vld [vmem:[#allocation3 + $0x48] sm:$0xff]
      %v750 = vld [vmem:[#allocation3 + $0x50] sm:$0xff]
      %v751 = vld [vmem:[#allocation3 + $0x58] sm:$0xff]
      %v752 = vld [vmem:[#allocation3 + $0x60] sm:$0xff]
      %v753 = vld [vmem:[#allocation3 + $0x68] sm:$0xff]
      %v754 = vld [vmem:[#allocation3 + $0x70] sm:$0xff]
      %v755 = vld [vmem:[#allocation3 + $0x78] sm:$0xff]
      %v756 = vld [vmem:[#allocation3 + $0x80] sm:$0xff]
      %v757 = vld [vmem:[#allocation3 + $0x88] sm:$0xff]
      %v758 = vpack.c.bf16 %v742, %v740
      %v759 = vpack.c.bf16 %v743, %v741
      %v760 = vpack.c.bf16 %v746, %v744
      %v761 = vpack.c.bf16 %v747, %v745
      %v762 = vpack.c.bf16 %v750, %v748
      %v763 = vpack.c.bf16 %v751, %v749
      %v764 = vpack.c.bf16 %v754, %v752
      %v765 = vpack.c.bf16 %v755, %v753
      %v766 = vpack.c.bf16 %v756, %v756
      %v767 = vpack.c.bf16 %v757, %v757
      %v768 = vld [vmem:[%s2] sm:$0xff]
      %770 = vset.pattern.permute.xlu0 1
      %771 = vperm.xlu0 %770, %v768
      %v772 = vpop.permute.xlu0 %771
      %v775 = vunpack.c.l.b16 %v739
      %v776 = vunpack.c.h.b16 %v739
      %v777 = vpack.c.b16 %v775, %v775
      %v778 = vpack.c.b16 %v776, %v776
      %779 = vrot.lane.b32.xlu0 %v777, 56
      %v780 = vpop.permute.xlu0 %779
      %781 = vrot.lane.b32.xlu0 %v778, 56
      %v782 = vpop.permute.xlu0 %781
      %vm783 = vcmask 457728
      %v784 = vsel %vm783, %v780, %v782
      %v786 = vsel %vm512, %v784, 0
      %v789 = vsel %vm516, %v766, 0
      %v792 = vsel %vm516, %v767, 0
      %794 = vmatprep.subr.bf16.mxu0 %v759
      %795 = vmatpush1.bf16.msra.mxu0 %v758
      %796 = vmatprep.subr.bf16.mxu0 %v761
      %797 = vmatpush1.bf16.msra.mxu0 %v760
      %798 = vmatprep.subr.bf16.mxu0 %v763
      %799 = vmatpush1.bf16.msra.mxu0 %v762
      %800 = vmatprep.subr.bf16.mxu0 %v765
      %801 = vmatpush1.bf16.msra.mxu0 %v764
      %802 = vmatprep.subr.bf16.mxu0 %v792
      %803 = vmatpush1.bf16.msra.mxu0 %v789
      %804 = vmatprep.subr.bf16.mxu0 0
      %805 = vmatpush1.bf16.msra.mxu0 0
      %806 = vmatprep.subr.bf16.mxu0 0
      %807 = vmatpush1.bf16.msra.mxu0 0
      %808 = vmatprep.subr.bf16.mxu0 0
      %809 = vmatpush1.bf16.msra.mxu0 0
      %810 = vmatprep.subr.bf16.mxu0 0
      %811 = vmatpush1.bf16.msra.mxu0 0
      %812 = vmatprep.subr.bf16.mxu0 0
      %813 = vmatpush1.bf16.msra.mxu0 0
      %814 = vmatprep.subr.bf16.mxu0 0
      %815 = vmatpush1.bf16.msra.mxu0 0
      %816 = vmatprep.subr.bf16.mxu0 0
      %817 = vmatpush1.bf16.msra.mxu0 0
      %818 = vmatprep.subr.bf16.mxu0 0
      %819 = vmatpush1.bf16.msra.mxu0 0
      %820 = vmatprep.subr.bf16.mxu0 0
      %821 = vmatpush1.bf16.msra.mxu0 0
      %822 = vmatprep.subr.bf16.mxu0 0
      %823 = vmatpush1.bf16.msra.mxu0 0
      %824 = vmatprep.subr.bf16.mxu0 0
      %825 = vmatpush1.bf16.msra.mxu0 0
      %826 = vmatprep.mubr.bf16.mxu0 0
      %827 = vmatmul.mubr.bf16.gmra.mrb[0].mxu0 %v786
      %v828 = vpop.f32.mrb[0].mxu0
      %v829 = vadd.f32 %v772, %v828
      %v830 = vpop.f32.mrb[0].mxu0
      %v831 = vadd.f32 %v772, %v830
      %v832 = vpop.f32.mrb[0].mxu0
      %v833 = vpop.f32.mrb[0].mxu0
      %834 = vdwg.mxu0
      %v835 = vmax.f32 %v829, 0.0
      %v836 = vmax.f32 %v831, 0.0
      %839 = vrot.lane.b32.xlu0 %v835, 17
      %v840 = vpop.permute.xlu0 %839
      %841 = vrot.lane.b32.xlu0 %v836, 17
      %v842 = vpop.permute.xlu0 %841
      %v843 = vsel %vm172, %v840, %v842
      %vm847 = vcmask 1047688
      %848 = vst.msk [vmem:[#allocation2] sm:$0xff] %vm847, %v840
      %849 = vst [vmem:[#allocation2 + $0x8] sm:$0xff] %v843
      %850 = vst.msk [vmem:[#allocation2 + $0x10] sm:$0xff] %vm172, %v842
      %v851 = vld [vmem:[#allocation2] sm:$0xff]
      %v852 = vld [vmem:[#allocation2 + $0x8] sm:$0xff]
      %v853 = vsel %vm305, %v851, 0.0
      %v854 = vsel %vm306, %v852, 0.0
      %855 = vst [vmem:[#allocation3] sm:$0xff] %v853
      %856 = vst [vmem:[#allocation3 + $0x8] sm:$0xff] %v854
      %v857 = vld [vmem:[#allocation2] sm:$0xff]
      %v858 = vld [vmem:[#allocation2 + $0x8] sm:$0xff]
      %v859 = vld [vmem:[#allocation2 + $0x10] sm:$0xff]
      %863 = vrot.lane.b32.xlu0 %v857, 127
      %v864 = vpop.permute.xlu0 %863
      %865 = vrot.lane.b32.xlu0 %v858, 127
      %v866 = vpop.permute.xlu0 %865
      %867 = vrot.lane.b32.xlu0 %v859, 127
      %v868 = vpop.permute.xlu0 %867
      %v869 = vsel %vm323, %v864, %v866
      %v870 = vsel %vm323, %v866, %v868
      %873 = vst [vmem:[#allocation3 + $0x10] sm:$0xff] %v869
      %874 = vst [vmem:[#allocation3 + $0x18] sm:$0xff] %v870
      %v875 = vld [vmem:[#allocation2] sm:$0xff]
      %v876 = vld [vmem:[#allocation2 + $0x8] sm:$0xff]
      %v877 = vld [vmem:[#allocation2 + $0x10] sm:$0xff]
      %881 = vrot.lane.b32.xlu0 %v875, 126
      %v882 = vpop.permute.xlu0 %881
      %883 = vrot.lane.b32.xlu0 %v876, 126
      %v884 = vpop.permute.xlu0 %883
      %885 = vrot.lane.b32.xlu0 %v877, 126
      %v886 = vpop.permute.xlu0 %885
      %v887 = vsel %vm346, %v882, %v884
      %v888 = vsel %vm346, %v884, %v886
      %v891 = vsel %vm335, %v887, 0.0
      %v892 = vsel %vm336, %v888, 0.0
      %893 = vst [vmem:[#allocation3 + $0x20] sm:$0xff] %v891
      %894 = vst [vmem:[#allocation3 + $0x28] sm:$0xff] %v892
      %v895 = vld [vmem:[#allocation2] sm:$0xff]
      %v896 = vld [vmem:[#allocation2 + $0x8] sm:$0xff]
      %v897 = vld [vmem:[#allocation2 + $0x10] sm:$0xff]
      %901 = vrot.lane.b32.xlu0 %v895, 112
      %v902 = vpop.permute.xlu0 %901
      %903 = vrot.lane.b32.xlu0 %v896, 112
      %v904 = vpop.permute.xlu0 %903
      %905 = vrot.lane.b32.xlu0 %v897, 112
      %v906 = vpop.permute.xlu0 %905
      %v907 = vsel %vm367, %v902, %v904
      %v908 = vsel %vm367, %v904, %v906
      %v911 = vsel %vm305, %v907, 0.0
      %v912 = vsel %vm306, %v908, 0.0
      %913 = vst [vmem:[#allocation3 + $0x30] sm:$0xff] %v911
      %914 = vst [vmem:[#allocation3 + $0x38] sm:$0xff] %v912
      %v915 = vld [vmem:[#allocation2] sm:$0xff]
      %v916 = vld [vmem:[#allocation2 + $0x8] sm:$0xff]
      %v917 = vld [vmem:[#allocation2 + $0x10] sm:$0xff]
      %921 = vrot.lane.b32.xlu0 %v915, 111
      %v922 = vpop.permute.xlu0 %921
      %923 = vrot.lane.b32.xlu0 %v916, 111
      %v924 = vpop.permute.xlu0 %923
      %925 = vrot.lane.b32.xlu0 %v917, 111
      %v926 = vpop.permute.xlu0 %925
      %v927 = vsel %vm388, %v922, %v924
      %v928 = vsel %vm388, %v924, %v926
      %931 = vst [vmem:[#allocation3 + $0x40] sm:$0xff] %v927
      %932 = vst [vmem:[#allocation3 + $0x48] sm:$0xff] %v928
      %v933 = vld [vmem:[#allocation2] sm:$0xff]
      %v934 = vld [vmem:[#allocation2 + $0x8] sm:$0xff]
      %v935 = vld [vmem:[#allocation2 + $0x10] sm:$0xff]
      %939 = vrot.lane.b32.xlu0 %v933, 110
      %v940 = vpop.permute.xlu0 %939
      %941 = vrot.lane.b32.xlu0 %v934, 110
      %v942 = vpop.permute.xlu0 %941
      %943 = vrot.lane.b32.xlu0 %v935, 110
      %v944 = vpop.permute.xlu0 %943
      %v945 = vsel %vm407, %v940, %v942
      %v946 = vsel %vm407, %v942, %v944
      %v949 = vsel %vm335, %v945, 0.0
      %v950 = vsel %vm336, %v946, 0.0
      %951 = vst [vmem:[#allocation3 + $0x50] sm:$0xff] %v949
      %952 = vst [vmem:[#allocation3 + $0x58] sm:$0xff] %v950
      %v953 = vld [vmem:[#allocation2] sm:$0xff]
      %v954 = vld [vmem:[#allocation2 + $0x8] sm:$0xff]
      %v955 = vld [vmem:[#allocation2 + $0x10] sm:$0xff]
      %959 = vrot.lane.b32.xlu0 %v953, 96
      %v960 = vpop.permute.xlu0 %959
      %961 = vrot.lane.b32.xlu0 %v954, 96
      %v962 = vpop.permute.xlu0 %961
      %963 = vrot.lane.b32.xlu0 %v955, 96
      %v964 = vpop.permute.xlu0 %963
      %v965 = vsel %vm428, %v960, %v962
      %v966 = vsel %vm428, %v962, %v964
      %v969 = vsel %vm305, %v965, 0.0
      %v970 = vsel %vm306, %v966, 0.0
      %971 = vst [vmem:[#allocation3 + $0x60] sm:$0xff] %v969
      %972 = vst [vmem:[#allocation3 + $0x68] sm:$0xff] %v970
      %v973 = vld [vmem:[#allocation2] sm:$0xff]
      %v974 = vld [vmem:[#allocation2 + $0x8] sm:$0xff]
      %v975 = vld [vmem:[#allocation2 + $0x10] sm:$0xff]
      %979 = vrot.lane.b32.xlu0 %v973, 95
      %v980 = vpop.permute.xlu0 %979
      %981 = vrot.lane.b32.xlu0 %v974, 95
      %v982 = vpop.permute.xlu0 %981
      %983 = vrot.lane.b32.xlu0 %v975, 95
      %v984 = vpop.permute.xlu0 %983
      %v985 = vsel %vm449, %v980, %v982
      %v986 = vsel %vm449, %v982, %v984
      %989 = vst [vmem:[#allocation3 + $0x70] sm:$0xff] %v985
      %990 = vst [vmem:[#allocation3 + $0x78] sm:$0xff] %v986
      %v991 = vld [vmem:[#allocation2] sm:$0xff]
      %v992 = vld [vmem:[#allocation2 + $0x8] sm:$0xff]
      %v993 = vld [vmem:[#allocation2 + $0x10] sm:$0xff]
      %997 = vrot.lane.b32.xlu0 %v991, 94
      %v998 = vpop.permute.xlu0 %997
      %999 = vrot.lane.b32.xlu0 %v992, 94
      %v1000 = vpop.permute.xlu0 %999
      %1001 = vrot.lane.b32.xlu0 %v993, 94
      %v1002 = vpop.permute.xlu0 %1001
      %v1003 = vsel %vm468, %v998, %v1000
      %v1004 = vsel %vm468, %v1000, %v1002
      %v1007 = vsel %vm335, %v1003, 0.0
      %v1008 = vsel %vm336, %v1004, 0.0
      %1009 = vst [vmem:[#allocation3 + $0x80] sm:$0xff] %v1007
      %1010 = vst [vmem:[#allocation3 + $0x88] sm:$0xff] %v1008
      %v1011 = vld [vmem:[%s1 + $0x4] sm:$0xf]
      %v1012 = vld [vmem:[%s1 + $0x24] sm:$0xf]
      %v1013 = vld [vmem:[#allocation3] sm:$0xff]
      %v1014 = vld [vmem:[#allocation3 + $0x8] sm:$0xff]
      %v1015 = vld [vmem:[#allocation3 + $0x10] sm:$0xff]
      %v1016 = vld [vmem:[#allocation3 + $0x18] sm:$0xff]
      %v1017 = vld [vmem:[#allocation3 + $0x20] sm:$0xff]
      %v1018 = vld [vmem:[#allocation3 + $0x28] sm:$0xff]
      %v1019 = vld [vmem:[#allocation3 + $0x30] sm:$0xff]
      %v1020 = vld [vmem:[#allocation3 + $0x38] sm:$0xff]
      %v1021 = vld [vmem:[#allocation3 + $0x40] sm:$0xff]
      %v1022 = vld [vmem:[#allocation3 + $0x48] sm:$0xff]
      %v1023 = vld [vmem:[#allocation3 + $0x50] sm:$0xff]
      %v1024 = vld [vmem:[#allocation3 + $0x58] sm:$0xff]
      %v1025 = vld [vmem:[#allocation3 + $0x60] sm:$0xff]
      %v1026 = vld [vmem:[#allocation3 + $0x68] sm:$0xff]
      %v1027 = vld [vmem:[#allocation3 + $0x70] sm:$0xff]
      %v1028 = vld [vmem:[#allocation3 + $0x78] sm:$0xff]
      %v1029 = vld [vmem:[#allocation3 + $0x80] sm:$0xff]
      %v1030 = vld [vmem:[#allocation3 + $0x88] sm:$0xff]
      %v1031 = vpack.c.bf16 %v1015, %v1013
      %v1032 = vpack.c.bf16 %v1016, %v1014
      %v1033 = vpack.c.bf16 %v1019, %v1017
      %v1034 = vpack.c.bf16 %v1020, %v1018
      %v1035 = vpack.c.bf16 %v1023, %v1021
      %v1036 = vpack.c.bf16 %v1024, %v1022
      %v1037 = vpack.c.bf16 %v1027, %v1025
      %v1038 = vpack.c.bf16 %v1028, %v1026
      %v1039 = vpack.c.bf16 %v1029, %v1029
      %v1040 = vpack.c.bf16 %v1030, %v1030
      %v1041 = vld [vmem:[%s2] sm:$0xff]
      %v1042 = vld [vmem:[%s2 + $0x8] sm:$0xff]
      %1044 = vset.pattern.permute.xlu0 2
      %1045 = vperm.xlu0 %1044, %v1041
      %v1046 = vpop.permute.xlu0 %1045
      %1049 = vset.pattern.permute.xlu0 2
      %1050 = vperm.xlu0 %1049, %v1042
      %v1051 = vpop.permute.xlu0 %1050
      %v1055 = vunpack.c.l.b16 %v1011
      %v1056 = vunpack.c.l.b16 %v1012
      %v1057 = vpack.c.b16 %v1056, %v1055
      %1058 = vrot.lane.b32.xlu0 %v1057, 112
      %v1059 = vpop.permute.xlu0 %1058
      %v1061 = vsel %vm512, %v1059, 0
      %v1064 = vsel %vm516, %v1039, 0
      %v1067 = vsel %vm516, %v1040, 0
      %1069 = vmatprep.subr.bf16.mxu0 %v1032
      %1070 = vmatpush1.bf16.msra.mxu0 %v1031
      %1071 = vmatprep.subr.bf16.mxu0 %v1034
      %1072 = vmatpush1.bf16.msra.mxu0 %v1033
      %1073 = vmatprep.subr.bf16.mxu0 %v1036
      %1074 = vmatpush1.bf16.msra.mxu0 %v1035
      %1075 = vmatprep.subr.bf16.mxu0 %v1038
      %1076 = vmatpush1.bf16.msra.mxu0 %v1037
      %1077 = vmatprep.subr.bf16.mxu0 %v1067
      %1078 = vmatpush1.bf16.msra.mxu0 %v1064
      %1079 = vmatprep.subr.bf16.mxu0 0
      %1080 = vmatpush1.bf16.msra.mxu0 0
      %1081 = vmatprep.subr.bf16.mxu0 0
      %1082 = vmatpush1.bf16.msra.mxu0 0
      %1083 = vmatprep.subr.bf16.mxu0 0
      %1084 = vmatpush1.bf16.msra.mxu0 0
      %1085 = vmatprep.subr.bf16.mxu0 0
      %1086 = vmatpush1.bf16.msra.mxu0 0
      %1087 = vmatprep.subr.bf16.mxu0 0
      %1088 = vmatpush1.bf16.msra.mxu0 0
      %1089 = vmatprep.subr.bf16.mxu0 0
      %1090 = vmatpush1.bf16.msra.mxu0 0
      %1091 = vmatprep.subr.bf16.mxu0 0
      %1092 = vmatpush1.bf16.msra.mxu0 0
      %1093 = vmatprep.subr.bf16.mxu0 0
      %1094 = vmatpush1.bf16.msra.mxu0 0
      %1095 = vmatprep.subr.bf16.mxu0 0
      %1096 = vmatpush1.bf16.msra.mxu0 0
      %1097 = vmatprep.subr.bf16.mxu0 0
      %1098 = vmatpush1.bf16.msra.mxu0 0
      %1099 = vmatprep.subr.bf16.mxu0 0
      %1100 = vmatpush1.bf16.msra.mxu0 0
      %1101 = vmatprep.mubr.bf16.mxu0 0
      %1102 = vmatmul.mubr.bf16.gmra.mrb[0].mxu0 %v1061
      %v1103 = vpop.f32.mrb[0].mxu0
      %v1104 = vadd.f32 %v1046, %v1103
      %v1105 = vpop.f32.mrb[0].mxu0
      %v1106 = vadd.f32 %v1046, %v1105
      %v1107 = vpop.f32.mrb[0].mxu0
      %v1108 = vadd.f32 %v1051, %v1107
      %v1109 = vpop.f32.mrb[0].mxu0
      %v1110 = vadd.f32 %v1051, %v1109
      %1111 = vdwg.mxu0
      %v1112 = vmax.f32 %v1104, 0.0
      %v1113 = vmax.f32 %v1106, 0.0
      %v1114 = vmax.f32 %v1108, 0.0
      %v1115 = vmax.f32 %v1110, 0.0
      %1120 = vrot.lane.b32.xlu0 %v1112, 17
      %v1121 = vpop.permute.xlu0 %1120
      %1122 = vrot.lane.b32.xlu0 %v1113, 17
      %v1123 = vpop.permute.xlu0 %1122
      %1124 = vrot.lane.b32.xlu0 %v1114, 17
      %v1125 = vpop.permute.xlu0 %1124
      %1126 = vrot.lane.b32.xlu0 %v1115, 17
      %v1127 = vpop.permute.xlu0 %1126
      %v1128 = vsel %vm172, %v1121, %v1123
      %v1129 = vsel %vm172, %v1125, %v1127
      %1136 = vst.msk [vmem:[#allocation2] sm:$0xff] %vm847, %v1121
      %1137 = vst [vmem:[#allocation2 + $0x8] sm:$0xff] %v1128
      %1138 = vst.msk [vmem:[#allocation2 + $0x10] sm:$0xff] %vm172, %v1123
      %1139 = vst.msk [vmem:[#allocation2 + $0x18] sm:$0xff] %vm847, %v1125
      %1140 = vst [vmem:[#allocation2 + $0x20] sm:$0xff] %v1129
      %1141 = vst.msk [vmem:[#allocation2 + $0x28] sm:$0xff] %vm172, %v1127
      %v1142 = vld [vmem:[#allocation2] sm:$0xff]
      %v1143 = vld [vmem:[#allocation2 + $0x8] sm:$0xff]
      %v1144 = vld [vmem:[#allocation2 + $0x18] sm:$0xff]
      %v1145 = vld [vmem:[#allocation2 + $0x20] sm:$0xff]
      %v1146 = vsel %vm305, %v1142, 0.0
      %v1147 = vsel %vm306, %v1143, 0.0
      %v1148 = vsel %vm305, %v1144, 0.0
      %v1149 = vsel %vm306, %v1145, 0.0
      %1150 = vst [vmem:[#allocation3] sm:$0xff] %v1146
      %1151 = vst [vmem:[#allocation3 + $0x8] sm:$0xff] %v1147
      %1152 = vst [vmem:[#allocation3 + $0x10] sm:$0xff] %v1148
      %1153 = vst [vmem:[#allocation3 + $0x18] sm:$0xff] %v1149
      %v1154 = vld [vmem:[#allocation2] sm:$0xff]
      %v1155 = vld [vmem:[#allocation2 + $0x8] sm:$0xff]
      %v1156 = vld [vmem:[#allocation2 + $0x10] sm:$0xff]
      %v1157 = vld [vmem:[#allocation2 + $0x18] sm:$0xff]
      %v1158 = vld [vmem:[#allocation2 + $0x20] sm:$0xff]
      %v1159 = vld [vmem:[#allocation2 + $0x28] sm:$0xff]
      %1166 = vrot.lane.b32.xlu0 %v1154, 127
      %v1167 = vpop.permute.xlu0 %1166
      %1168 = vrot.lane.b32.xlu0 %v1155, 127
      %v1169 = vpop.permute.xlu0 %1168
      %1170 = vrot.lane.b32.xlu0 %v1156, 127
      %v1171 = vpop.permute.xlu0 %1170
      %1172 = vrot.lane.b32.xlu0 %v1157, 127
      %v1173 = vpop.permute.xlu0 %1172
      %1174 = vrot.lane.b32.xlu0 %v1158, 127
      %v1175 = vpop.permute.xlu0 %1174
      %1176 = vrot.lane.b32.xlu0 %v1159, 127
      %v1177 = vpop.permute.xlu0 %1176
      %v1178 = vsel %vm323, %v1167, %v1169
      %v1179 = vsel %vm323, %v1169, %v1171
      %v1180 = vsel %vm323, %v1173, %v1175
      %v1181 = vsel %vm323, %v1175, %v1177
      %1186 = vst [vmem:[#allocation3 + $0x20] sm:$0xff] %v1178
      %1187 = vst [vmem:[#allocation3 + $0x28] sm:$0xff] %v1179
      %1188 = vst [vmem:[#allocation3 + $0x30] sm:$0xff] %v1180
      %1189 = vst [vmem:[#allocation3 + $0x38] sm:$0xff] %v1181
      %v1190 = vld [vmem:[#allocation2] sm:$0xff]
      %v1191 = vld [vmem:[#allocation2 + $0x8] sm:$0xff]
      %v1192 = vld [vmem:[#allocation2 + $0x10] sm:$0xff]
      %v1193 = vld [vmem:[#allocation2 + $0x18] sm:$0xff]
      %v1194 = vld [vmem:[#allocation2 + $0x20] sm:$0xff]
      %v1195 = vld [vmem:[#allocation2 + $0x28] sm:$0xff]
      %1202 = vrot.lane.b32.xlu0 %v1190, 126
      %v1203 = vpop.permute.xlu0 %1202
      %1204 = vrot.lane.b32.xlu0 %v1191, 126
      %v1205 = vpop.permute.xlu0 %1204
      %1206 = vrot.lane.b32.xlu0 %v1192, 126
      %v1207 = vpop.permute.xlu0 %1206
      %1208 = vrot.lane.b32.xlu0 %v1193, 126
      %v1209 = vpop.permute.xlu0 %1208
      %1210 = vrot.lane.b32.xlu0 %v1194, 126
      %v1211 = vpop.permute.xlu0 %1210
      %1212 = vrot.lane.b32.xlu0 %v1195, 126
      %v1213 = vpop.permute.xlu0 %1212
      %v1214 = vsel %vm346, %v1203, %v1205
      %v1215 = vsel %vm346, %v1205, %v1207
      %v1216 = vsel %vm346, %v1209, %v1211
      %v1217 = vsel %vm346, %v1211, %v1213
      %v1222 = vsel %vm335, %v1214, 0.0
      %v1223 = vsel %vm336, %v1215, 0.0
      %v1224 = vsel %vm335, %v1216, 0.0
      %v1225 = vsel %vm336, %v1217, 0.0
      %1226 = vst [vmem:[#allocation3 + $0x40] sm:$0xff] %v1222
      %1227 = vst [vmem:[#allocation3 + $0x48] sm:$0xff] %v1223
      %1228 = vst [vmem:[#allocation3 + $0x50] sm:$0xff] %v1224
      %1229 = vst [vmem:[#allocation3 + $0x58] sm:$0xff] %v1225
      %v1230 = vld [vmem:[#allocation2] sm:$0xff]
      %v1231 = vld [vmem:[#allocation2 + $0x8] sm:$0xff]
      %v1232 = vld [vmem:[#allocation2 + $0x10] sm:$0xff]
      %v1233 = vld [vmem:[#allocation2 + $0x18] sm:$0xff]
      %v1234 = vld [vmem:[#allocation2 + $0x20] sm:$0xff]
      %v1235 = vld [vmem:[#allocation2 + $0x28] sm:$0xff]
      %1242 = vrot.lane.b32.xlu0 %v1230, 112
      %v1243 = vpop.permute.xlu0 %1242
      %1244 = vrot.lane.b32.xlu0 %v1231, 112
      %v1245 = vpop.permute.xlu0 %1244
      %1246 = vrot.lane.b32.xlu0 %v1232, 112
      %v1247 = vpop.permute.xlu0 %1246
      %1248 = vrot.lane.b32.xlu0 %v1233, 112
      %v1249 = vpop.permute.xlu0 %1248
      %1250 = vrot.lane.b32.xlu0 %v1234, 112
      %v1251 = vpop.permute.xlu0 %1250
      %1252 = vrot.lane.b32.xlu0 %v1235, 112
      %v1253 = vpop.permute.xlu0 %1252
      %v1254 = vsel %vm367, %v1243, %v1245
      %v1255 = vsel %vm367, %v1245, %v1247
      %v1256 = vsel %vm367, %v1249, %v1251
      %v1257 = vsel %vm367, %v1251, %v1253
      %v1262 = vsel %vm305, %v1254, 0.0
      %v1263 = vsel %vm306, %v1255, 0.0
      %v1264 = vsel %vm305, %v1256, 0.0
      %v1265 = vsel %vm306, %v1257, 0.0
      %1266 = vst [vmem:[#allocation3 + $0x60] sm:$0xff] %v1262
      %1267 = vst [vmem:[#allocation3 + $0x68] sm:$0xff] %v1263
      %1268 = vst [vmem:[#allocation3 + $0x70] sm:$0xff] %v1264
      %1269 = vst [vmem:[#allocation3 + $0x78] sm:$0xff] %v1265
      %v1270 = vld [vmem:[#allocation2] sm:$0xff]
      %v1271 = vld [vmem:[#allocation2 + $0x8] sm:$0xff]
      %v1272 = vld [vmem:[#allocation2 + $0x10] sm:$0xff]
      %v1273 = vld [vmem:[#allocation2 + $0x18] sm:$0xff]
      %v1274 = vld [vmem:[#allocation2 + $0x20] sm:$0xff]
      %v1275 = vld [vmem:[#allocation2 + $0x28] sm:$0xff]
      %1282 = vrot.lane.b32.xlu0 %v1270, 111
      %v1283 = vpop.permute.xlu0 %1282
      %1284 = vrot.lane.b32.xlu0 %v1271, 111
      %v1285 = vpop.permute.xlu0 %1284
      %1286 = vrot.lane.b32.xlu0 %v1272, 111
      %v1287 = vpop.permute.xlu0 %1286
      %1288 = vrot.lane.b32.xlu0 %v1273, 111
      %v1289 = vpop.permute.xlu0 %1288
      %1290 = vrot.lane.b32.xlu0 %v1274, 111
      %v1291 = vpop.permute.xlu0 %1290
      %1292 = vrot.lane.b32.xlu0 %v1275, 111
      %v1293 = vpop.permute.xlu0 %1292
      %v1294 = vsel %vm388, %v1283, %v1285
      %v1295 = vsel %vm388, %v1285, %v1287
      %v1296 = vsel %vm388, %v1289, %v1291
      %v1297 = vsel %vm388, %v1291, %v1293
      %1302 = vst [vmem:[#allocation3 + $0x80] sm:$0xff] %v1294
      %1303 = vst [vmem:[#allocation3 + $0x88] sm:$0xff] %v1295
      %1304 = vst [vmem:[#allocation3 + $0x90] sm:$0xff] %v1296
      %1305 = vst [vmem:[#allocation3 + $0x98] sm:$0xff] %v1297
      %v1306 = vld [vmem:[#allocation2] sm:$0xff]
      %v1307 = vld [vmem:[#allocation2 + $0x8] sm:$0xff]
      %v1308 = vld [vmem:[#allocation2 + $0x10] sm:$0xff]
      %v1309 = vld [vmem:[#allocation2 + $0x18] sm:$0xff]
      %v1310 = vld [vmem:[#allocation2 + $0x20] sm:$0xff]
      %v1311 = vld [vmem:[#allocation2 + $0x28] sm:$0xff]
      %1318 = vrot.lane.b32.xlu0 %v1306, 110
      %v1319 = vpop.permute.xlu0 %1318
      %1320 = vrot.lane.b32.xlu0 %v1307, 110
      %v1321 = vpop.permute.xlu0 %1320
      %1322 = vrot.lane.b32.xlu0 %v1308, 110
      %v1323 = vpop.permute.xlu0 %1322
      %1324 = vrot.lane.b32.xlu0 %v1309, 110
      %v1325 = vpop.permute.xlu0 %1324
      %1326 = vrot.lane.b32.xlu0 %v1310, 110
      %v1327 = vpop.permute.xlu0 %1326
      %1328 = vrot.lane.b32.xlu0 %v1311, 110
      %v1329 = vpop.permute.xlu0 %1328
      %v1330 = vsel %vm407, %v1319, %v1321
      %v1331 = vsel %vm407, %v1321, %v1323
      %v1332 = vsel %vm407, %v1325, %v1327
      %v1333 = vsel %vm407, %v1327, %v1329
      %v1338 = vsel %vm335, %v1330, 0.0
      %v1339 = vsel %vm336, %v1331, 0.0
      %v1340 = vsel %vm335, %v1332, 0.0
      %v1341 = vsel %vm336, %v1333, 0.0
      %1342 = vst [vmem:[#allocation3 + $0xa0] sm:$0xff] %v1338
      %1343 = vst [vmem:[#allocation3 + $0xa8] sm:$0xff] %v1339
      %1344 = vst [vmem:[#allocation3 + $0xb0] sm:$0xff] %v1340
      %1345 = vst [vmem:[#allocation3 + $0xb8] sm:$0xff] %v1341
      %v1346 = vld [vmem:[#allocation2] sm:$0xff]
      %v1347 = vld [vmem:[#allocation2 + $0x8] sm:$0xff]
      %v1348 = vld [vmem:[#allocation2 + $0x10] sm:$0xff]
      %v1349 = vld [vmem:[#allocation2 + $0x18] sm:$0xff]
      %v1350 = vld [vmem:[#allocation2 + $0x20] sm:$0xff]
      %v1351 = vld [vmem:[#allocation2 + $0x28] sm:$0xff]
      %1358 = vrot.lane.b32.xlu0 %v1346, 96
      %v1359 = vpop.permute.xlu0 %1358
      %1360 = vrot.lane.b32.xlu0 %v1347, 96
      %v1361 = vpop.permute.xlu0 %1360
      %1362 = vrot.lane.b32.xlu0 %v1348, 96
      %v1363 = vpop.permute.xlu0 %1362
      %1364 = vrot.lane.b32.xlu0 %v1349, 96
      %v1365 = vpop.permute.xlu0 %1364
      %1366 = vrot.lane.b32.xlu0 %v1350, 96
      %v1367 = vpop.permute.xlu0 %1366
      %1368 = vrot.lane.b32.xlu0 %v1351, 96
      %v1369 = vpop.permute.xlu0 %1368
      %v1370 = vsel %vm428, %v1359, %v1361
      %v1371 = vsel %vm428, %v1361, %v1363
      %v1372 = vsel %vm428, %v1365, %v1367
      %v1373 = vsel %vm428, %v1367, %v1369
      %v1378 = vsel %vm305, %v1370, 0.0
      %v1379 = vsel %vm306, %v1371, 0.0
      %v1380 = vsel %vm305, %v1372, 0.0
      %v1381 = vsel %vm306, %v1373, 0.0
      %1382 = vst [vmem:[#allocation3 + $0xc0] sm:$0xff] %v1378
      %1383 = vst [vmem:[#allocation3 + $0xc8] sm:$0xff] %v1379
      %1384 = vst [vmem:[#allocation3 + $0xd0] sm:$0xff] %v1380
      %1385 = vst [vmem:[#allocation3 + $0xd8] sm:$0xff] %v1381
      %v1386 = vld [vmem:[#allocation2] sm:$0xff]
      %v1387 = vld [vmem:[#allocation2 + $0x8] sm:$0xff]
      %v1388 = vld [vmem:[#allocation2 + $0x10] sm:$0xff]
      %v1389 = vld [vmem:[#allocation2 + $0x18] sm:$0xff]
      %v1390 = vld [vmem:[#allocation2 + $0x20] sm:$0xff]
      %v1391 = vld [vmem:[#allocation2 + $0x28] sm:$0xff]
      %1398 = vrot.lane.b32.xlu0 %v1386, 95
      %v1399 = vpop.permute.xlu0 %1398
      %1400 = vrot.lane.b32.xlu0 %v1387, 95
      %v1401 = vpop.permute.xlu0 %1400
      %1402 = vrot.lane.b32.xlu0 %v1388, 95
      %v1403 = vpop.permute.xlu0 %1402
      %1404 = vrot.lane.b32.xlu0 %v1389, 95
      %v1405 = vpop.permute.xlu0 %1404
      %1406 = vrot.lane.b32.xlu0 %v1390, 95
      %v1407 = vpop.permute.xlu0 %1406
      %1408 = vrot.lane.b32.xlu0 %v1391, 95
      %v1409 = vpop.permute.xlu0 %1408
      %v1410 = vsel %vm449, %v1399, %v1401
      %v1411 = vsel %vm449, %v1401, %v1403
      %v1412 = vsel %vm449, %v1405, %v1407
      %v1413 = vsel %vm449, %v1407, %v1409
      %1418 = vst [vmem:[#allocation3 + $0xe0] sm:$0xff] %v1410
      %1419 = vst [vmem:[#allocation3 + $0xe8] sm:$0xff] %v1411
      %1420 = vst [vmem:[#allocation3 + $0xf0] sm:$0xff] %v1412
      %1421 = vst [vmem:[#allocation3 + $0xf8] sm:$0xff] %v1413
      %v1422 = vld [vmem:[#allocation2] sm:$0xff]
      %v1423 = vld [vmem:[#allocation2 + $0x8] sm:$0xff]
      %v1424 = vld [vmem:[#allocation2 + $0x10] sm:$0xff]
      %v1425 = vld [vmem:[#allocation2 + $0x18] sm:$0xff]
      %v1426 = vld [vmem:[#allocation2 + $0x20] sm:$0xff]
      %v1427 = vld [vmem:[#allocation2 + $0x28] sm:$0xff]
      %1434 = vrot.lane.b32.xlu0 %v1422, 94
      %v1435 = vpop.permute.xlu0 %1434
      %1436 = vrot.lane.b32.xlu0 %v1423, 94
      %v1437 = vpop.permute.xlu0 %1436
      %1438 = vrot.lane.b32.xlu0 %v1424, 94
      %v1439 = vpop.permute.xlu0 %1438
      %1440 = vrot.lane.b32.xlu0 %v1425, 94
      %v1441 = vpop.permute.xlu0 %1440
      %1442 = vrot.lane.b32.xlu0 %v1426, 94
      %v1443 = vpop.permute.xlu0 %1442
      %1444 = vrot.lane.b32.xlu0 %v1427, 94
      %v1445 = vpop.permute.xlu0 %1444
      %v1446 = vsel %vm468, %v1435, %v1437
      %v1447 = vsel %vm468, %v1437, %v1439
      %v1448 = vsel %vm468, %v1441, %v1443
      %v1449 = vsel %vm468, %v1443, %v1445
      %v1454 = vsel %vm335, %v1446, 0.0
      %v1455 = vsel %vm336, %v1447, 0.0
      %v1456 = vsel %vm335, %v1448, 0.0
      %v1457 = vsel %vm336, %v1449, 0.0
      %1458 = vst [vmem:[#allocation3 + $0x100] sm:$0xff] %v1454
      %1459 = vst [vmem:[#allocation3 + $0x108] sm:$0xff] %v1455
      %1460 = vst [vmem:[#allocation3 + $0x110] sm:$0xff] %v1456
      %1461 = vst [vmem:[#allocation3 + $0x118] sm:$0xff] %v1457
      %v1462 = vld [vmem:[%s1 + $0x4] sm:$0xff]
      %v1463 = vld [vmem:[%s1 + $0x24] sm:$0xff]
      %v1464 = vld [vmem:[%s1 + $0x44] sm:$0xff]
      %v1465 = vld [vmem:[%s1 + $0x64] sm:$0xff]
      %v1466 = vld [vmem:[#allocation3] sm:$0xff]
      %v1467 = vld [vmem:[#allocation3 + $0x8] sm:$0xff]
      %v1468 = vld [vmem:[#allocation3 + $0x10] sm:$0xff]
      %v1469 = vld [vmem:[#allocation3 + $0x18] sm:$0xff]
      %v1470 = vld [vmem:[#allocation3 + $0x20] sm:$0xff]
      %v1471 = vld [vmem:[#allocation3 + $0x28] sm:$0xff]
      %v1472 = vld [vmem:[#allocation3 + $0x30] sm:$0xff]
      %v1473 = vld [vmem:[#allocation3 + $0x38] sm:$0xff]
      %v1474 = vld [vmem:[#allocation3 + $0x40] sm:$0xff]
      %v1475 = vld [vmem:[#allocation3 + $0x48] sm:$0xff]
      %v1476 = vld [vmem:[#allocation3 + $0x50] sm:$0xff]
      %v1477 = vld [vmem:[#allocation3 + $0x58] sm:$0xff]
      %v1478 = vld [vmem:[#allocation3 + $0x60] sm:$0xff]
      %v1479 = vld [vmem:[#allocation3 + $0x68] sm:$0xff]
      %v1480 = vld [vmem:[#allocation3 + $0x70] sm:$0xff]
      %v1481 = vld [vmem:[#allocation3 + $0x78] sm:$0xff]
      %v1482 = vld [vmem:[#allocation3 + $0x80] sm:$0xff]
      %v1483 = vld [vmem:[#allocation3 + $0x88] sm:$0xff]
      %v1484 = vld [vmem:[#allocation3 + $0x90] sm:$0xff]
      %v1485 = vld [vmem:[#allocation3 + $0x98] sm:$0xff]
      %v1486 = vld [vmem:[#allocation3 + $0xa0] sm:$0xff]
      %v1487 = vld [vmem:[#allocation3 + $0xa8] sm:$0xff]
      %v1488 = vld [vmem:[#allocation3 + $0xb0] sm:$0xff]
      %v1489 = vld [vmem:[#allocation3 + $0xb8] sm:$0xff]
      %v1490 = vld [vmem:[#allocation3 + $0xc0] sm:$0xff]
      %v1491 = vld [vmem:[#allocation3 + $0xc8] sm:$0xff]
      %v1492 = vld [vmem:[#allocation3 + $0xd0] sm:$0xff]
      %v1493 = vld [vmem:[#allocation3 + $0xd8] sm:$0xff]
      %v1494 = vld [vmem:[#allocation3 + $0xe0] sm:$0xff]
      %v1495 = vld [vmem:[#allocation3 + $0xe8] sm:$0xff]
      %v1496 = vld [vmem:[#allocation3 + $0xf0] sm:$0xff]
      %v1497 = vld [vmem:[#allocation3 + $0xf8] sm:$0xff]
      %v1498 = vld [vmem:[#allocation3 + $0x100] sm:$0xff]
      %v1499 = vld [vmem:[#allocation3 + $0x108] sm:$0xff]
      %v1500 = vld [vmem:[#allocation3 + $0x110] sm:$0xff]
      %v1501 = vld [vmem:[#allocation3 + $0x118] sm:$0xff]
      %v1502 = vpack.c.bf16 %v1468, %v1466
      %v1503 = vpack.c.bf16 %v1469, %v1467
      %v1504 = vpack.c.bf16 %v1472, %v1470
      %v1505 = vpack.c.bf16 %v1473, %v1471
      %v1506 = vpack.c.bf16 %v1476, %v1474
      %v1507 = vpack.c.bf16 %v1477, %v1475
      %v1508 = vpack.c.bf16 %v1480, %v1478
      %v1509 = vpack.c.bf16 %v1481, %v1479
      %v1510 = vpack.c.bf16 %v1484, %v1482
      %v1511 = vpack.c.bf16 %v1485, %v1483
      %v1512 = vpack.c.bf16 %v1488, %v1486
      %v1513 = vpack.c.bf16 %v1489, %v1487
      %v1514 = vpack.c.bf16 %v1492, %v1490
      %v1515 = vpack.c.bf16 %v1493, %v1491
      %v1516 = vpack.c.bf16 %v1496, %v1494
      %v1517 = vpack.c.bf16 %v1497, %v1495
      %v1518 = vpack.c.bf16 %v1500, %v1498
      %v1519 = vpack.c.bf16 %v1501, %v1499
      %v1520 = vld [vmem:[%s2] sm:$0xff]
      %v1521 = vld [vmem:[%s2 + $0x8] sm:$0xff]
      %v1522 = vld [vmem:[%s2 + $0x10] sm:$0xff]
      %v1523 = vld [vmem:[%s2 + $0x18] sm:$0xff]
      %1525 = vset.pattern.permute.xlu0 3
      %1526 = vperm.xlu0 %1525, %v1520
      %v1527 = vpop.permute.xlu0 %1526
      %1530 = vset.pattern.permute.xlu0 3
      %1531 = vperm.xlu0 %1530, %v1521
      %v1532 = vpop.permute.xlu0 %1531
      %1535 = vset.pattern.permute.xlu0 3
      %1536 = vperm.xlu0 %1535, %v1522
      %v1537 = vpop.permute.xlu0 %1536
      %1540 = vset.pattern.permute.xlu0 3
      %1541 = vperm.xlu0 %1540, %v1523
      %v1542 = vpop.permute.xlu0 %1541
      %v1548 = vunpack.c.l.b16 %v1462
      %v1549 = vunpack.c.h.b16 %v1462
      %v1550 = vunpack.c.l.b16 %v1463
      %v1551 = vunpack.c.h.b16 %v1463
      %v1552 = vunpack.c.l.b16 %v1464
      %v1553 = vunpack.c.h.b16 %v1464
      %v1554 = vunpack.c.l.b16 %v1465
      %v1555 = vunpack.c.h.b16 %v1465
      %v1556 = vpack.c.b16 %v1550, %v1548
      %v1557 = vpack.c.b16 %v1551, %v1549
      %v1558 = vpack.c.b16 %v1554, %v1552
      %v1559 = vpack.c.b16 %v1555, %v1553
      %1560 = vrot.lane.b32.xlu0 %v1556, 40
      %v1561 = vpop.permute.xlu0 %1560
      %1562 = vrot.lane.b32.xlu0 %v1557, 40
      %v1563 = vpop.permute.xlu0 %1562
      %1564 = vrot.lane.b32.xlu0 %v1558, 40
      %v1565 = vpop.permute.xlu0 %1564
      %1566 = vrot.lane.b32.xlu0 %v1559, 40
      %v1567 = vpop.permute.xlu0 %1566
      %vm1568 = vcmask 326656
      %v1569 = vsel %vm1568, %v1561, %v1563
      %v1570 = vsel %vm1568, %v1565, %v1567
      %vm1573 = vcmask 130048
      %v1575 = vsel %vm1573, %v1563, 0
      %v1578 = vsel %vm1573, %v1567, 0
      %1580 = vmatprep.subr.bf16.mxu0 %v1503
      %1581 = vmatpush1.bf16.msra.mxu0 %v1502
      %1582 = vmatprep.subr.bf16.mxu0 %v1505
      %1583 = vmatpush1.bf16.msra.mxu0 %v1504
      %1584 = vmatprep.subr.bf16.mxu0 %v1507
      %1585 = vmatpush1.bf16.msra.mxu0 %v1506
      %1586 = vmatprep.subr.bf16.mxu0 %v1509
      %1587 = vmatpush1.bf16.msra.mxu0 %v1508
      %1588 = vmatprep.subr.bf16.mxu0 %v1511
      %1589 = vmatpush1.bf16.msra.mxu0 %v1510
      %1590 = vmatprep.subr.bf16.mxu0 %v1513
      %1591 = vmatpush1.bf16.msra.mxu0 %v1512
      %1592 = vmatprep.subr.bf16.mxu0 %v1515
      %1593 = vmatpush1.bf16.msra.mxu0 %v1514
      %1594 = vmatprep.subr.bf16.mxu0 %v1517
      %1595 = vmatpush1.bf16.msra.mxu0 %v1516
      %1596 = vmatprep.subr.bf16.mxu0 %v1519
      %1597 = vmatpush1.bf16.msra.mxu0 %v1518
      %1598 = vmatprep.subr.bf16.mxu0 0
      %1599 = vmatpush1.bf16.msra.mxu0 0
      %1600 = vmatprep.subr.bf16.mxu0 0
      %1601 = vmatpush1.bf16.msra.mxu0 0
      %1602 = vmatprep.subr.bf16.mxu0 0
      %1603 = vmatpush1.bf16.msra.mxu0 0
      %1604 = vmatprep.subr.bf16.mxu0 0
      %1605 = vmatpush1.bf16.msra.mxu0 0
      %1606 = vmatprep.subr.bf16.mxu0 0
      %1607 = vmatpush1.bf16.msra.mxu0 0
      %1608 = vmatprep.subr.bf16.mxu0 0
      %1609 = vmatpush1.bf16.msra.mxu0 0
      %1610 = vmatprep.subr.bf16.mxu0 0
      %1611 = vmatpush1.bf16.msra.mxu0 0
      %1612 = vmatprep.mubr.bf16.mxu0 %v1575
      %1613 = vmatmul.mubr.bf16.gmra.mrb[0].mxu0 %v1569
      %v1614 = vpop.f32.mrb[0].mxu0
      %v1615 = vadd.f32 %v1527, %v1614
      %v1616 = vpop.f32.mrb[0].mxu0
      %v1617 = vadd.f32 %v1527, %v1616
      %v1618 = vpop.f32.mrb[0].mxu0
      %v1619 = vadd.f32 %v1532, %v1618
      %v1620 = vpop.f32.mrb[0].mxu0
      %v1621 = vadd.f32 %v1532, %v1620
      %1622 = vmatprep.mubr.bf16.mxu0 %v1578
      %1623 = vmatmul.mubr.bf16.gmra.mrb[0].mxu0 %v1570
      %v1624 = vpop.f32.mrb[0].mxu0
      %v1625 = vadd.f32 %v1537, %v1624
      %v1626 = vpop.f32.mrb[0].mxu0
      %v1627 = vadd.f32 %v1537, %v1626
      %v1628 = vpop.f32.mrb[0].mxu0
      %v1629 = vadd.f32 %v1542, %v1628
      %v1630 = vpop.f32.mrb[0].mxu0
      %v1631 = vadd.f32 %v1542, %v1630
      %1632 = vdwg.mxu0
      %v1633 = vmax.f32 %v1615, 0.0
      %v1634 = vmax.f32 %v1617, 0.0
      %v1635 = vmax.f32 %v1619, 0.0
      %v1636 = vmax.f32 %v1621, 0.0
      %v1637 = vmax.f32 %v1625, 0.0
      %v1638 = vmax.f32 %v1627, 0.0
      %v1639 = vmax.f32 %v1629, 0.0
      %v1640 = vmax.f32 %v1631, 0.0
      %1649 = vrot.lane.b32.xlu0 %v1633, 17
      %v1650 = vpop.permute.xlu0 %1649
      %1651 = vrot.lane.b32.xlu0 %v1634, 17
      %v1652 = vpop.permute.xlu0 %1651
      %1653 = vrot.lane.b32.xlu0 %v1635, 17
      %v1654 = vpop.permute.xlu0 %1653
      %1655 = vrot.lane.b32.xlu0 %v1636, 17
      %v1656 = vpop.permute.xlu0 %1655
      %1657 = vrot.lane.b32.xlu0 %v1637, 17
      %v1658 = vpop.permute.xlu0 %1657
      %1659 = vrot.lane.b32.xlu0 %v1638, 17
      %v1660 = vpop.permute.xlu0 %1659
      %1661 = vrot.lane.b32.xlu0 %v1639, 17
      %v1662 = vpop.permute.xlu0 %1661
      %1663 = vrot.lane.b32.xlu0 %v1640, 17
      %v1664 = vpop.permute.xlu0 %1663
      %v1665 = vsel %vm172, %v1650, %v1652
      %v1666 = vsel %vm172, %v1654, %v1656
      %v1667 = vsel %vm172, %v1658, %v1660
      %v1668 = vsel %vm172, %v1662, %v1664
      %1681 = vst.msk [vmem:[#allocation2] sm:$0xff] %vm847, %v1650
      %1682 = vst [vmem:[#allocation2 + $0x8] sm:$0xff] %v1665
      %1683 = vst.msk [vmem:[#allocation2 + $0x10] sm:$0xff] %vm172, %v1652
      %1684 = vst.msk [vmem:[#allocation2 + $0x18] sm:$0xff] %vm847, %v1654
      %1685 = vst [vmem:[#allocation2 + $0x20] sm:$0xff] %v1666
      %1686 = vst.msk [vmem:[#allocation2 + $0x28] sm:$0xff] %vm172, %v1656
      %1687 = vst.msk [vmem:[#allocation2 + $0x30] sm:$0xff] %vm847, %v1658
      %1688 = vst [vmem:[#allocation2 + $0x38] sm:$0xff] %v1667
      %1689 = vst.msk [vmem:[#allocation2 + $0x40] sm:$0xff] %vm172, %v1660
      %1690 = vst.msk [vmem:[#allocation2 + $0x48] sm:$0xff] %vm847, %v1662
      %1691 = vst [vmem:[#allocation2 + $0x50] sm:$0xff] %v1668
      %1692 = vst.msk [vmem:[#allocation2 + $0x58] sm:$0xff] %vm172, %v1664
      %v1693 = vld [vmem:[#allocation2] sm:$0xff]
      %v1694 = vld [vmem:[#allocation2 + $0x8] sm:$0xff]
      %v1695 = vld [vmem:[#allocation2 + $0x18] sm:$0xff]
      %v1696 = vld [vmem:[#allocation2 + $0x20] sm:$0xff]
      %v1697 = vld [vmem:[#allocation2 + $0x30] sm:$0xff]
      %v1698 = vld [vmem:[#allocation2 + $0x38] sm:$0xff]
      %v1699 = vld [vmem:[#allocation2 + $0x48] sm:$0xff]
      %v1700 = vld [vmem:[#allocation2 + $0x50] sm:$0xff]
      %v1701 = vsel %vm305, %v1693, 0.0
      %v1702 = vsel %vm306, %v1694, 0.0
      %v1703 = vsel %vm305, %v1695, 0.0
      %v1704 = vsel %vm306, %v1696, 0.0
      %v1705 = vsel %vm305, %v1697, 0.0
      %v1706 = vsel %vm306, %v1698, 0.0
      %v1707 = vsel %vm305, %v1699, 0.0
      %v1708 = vsel %vm306, %v1700, 0.0
      %1709 = vst [vmem:[#allocation3] sm:$0xff] %v1701
      %1710 = vst [vmem:[#allocation3 + $0x8] sm:$0xff] %v1702
      %1711 = vst [vmem:[#allocation3 + $0x10] sm:$0xff] %v1703
      %1712 = vst [vmem:[#allocation3 + $0x18] sm:$0xff] %v1704
      %1713 = vst [vmem:[#allocation3 + $0x20] sm:$0xff] %v1705
      %1714 = vst [vmem:[#allocation3 + $0x28] sm:$0xff] %v1706
      %1715 = vst [vmem:[#allocation3 + $0x30] sm:$0xff] %v1707
      %1716 = vst [vmem:[#allocation3 + $0x38] sm:$0xff] %v1708
      %v1717 = vld [vmem:[#allocation2] sm:$0xff]
      %v1718 = vld [vmem:[#allocation2 + $0x8] sm:$0xff]
      %v1719 = vld [vmem:[#allocation2 + $0x10] sm:$0xff]
      %v1720 = vld [vmem:[#allocation2 + $0x18] sm:$0xff]
      %v1721 = vld [vmem:[#allocation2 + $0x20] sm:$0xff]
      %v1722 = vld [vmem:[#allocation2 + $0x28] sm:$0xff]
      %v1723 = vld [vmem:[#allocation2 + $0x30] sm:$0xff]
      %v1724 = vld [vmem:[#allocation2 + $0x38] sm:$0xff]
      %v1725 = vld [vmem:[#allocation2 + $0x40] sm:$0xff]
      %v1726 = vld [vmem:[#allocation2 + $0x48] sm:$0xff]
      %v1727 = vld [vmem:[#allocation2 + $0x50] sm:$0xff]
      %v1728 = vld [vmem:[#allocation2 + $0x58] sm:$0xff]
      %1741 = vrot.lane.b32.xlu0 %v1717, 127
      %v1742 = vpop.permute.xlu0 %1741
      %1743 = vrot.lane.b32.xlu0 %v1718, 127
      %v1744 = vpop.permute.xlu0 %1743
      %1745 = vrot.lane.b32.xlu0 %v1719, 127
      %v1746 = vpop.permute.xlu0 %1745
      %1747 = vrot.lane.b32.xlu0 %v1720, 127
      %v1748 = vpop.permute.xlu0 %1747
      %1749 = vrot.lane.b32.xlu0 %v1721, 127
      %v1750 = vpop.permute.xlu0 %1749
      %1751 = vrot.lane.b32.xlu0 %v1722, 127
      %v1752 = vpop.permute.xlu0 %1751
      %1753 = vrot.lane.b32.xlu0 %v1723, 127
      %v1754 = vpop.permute.xlu0 %1753
      %1755 = vrot.lane.b32.xlu0 %v1724, 127
      %v1756 = vpop.permute.xlu0 %1755
      %1757 = vrot.lane.b32.xlu0 %v1725, 127
      %v1758 = vpop.permute.xlu0 %1757
      %1759 = vrot.lane.b32.xlu0 %v1726, 127
      %v1760 = vpop.permute.xlu0 %1759
      %1761 = vrot.lane.b32.xlu0 %v1727, 127
      %v1762 = vpop.permute.xlu0 %1761
      %1763 = vrot.lane.b32.xlu0 %v1728, 127
      %v1764 = vpop.permute.xlu0 %1763
      %v1765 = vsel %vm323, %v1742, %v1744
      %v1766 = vsel %vm323, %v1744, %v1746
      %v1767 = vsel %vm323, %v1748, %v1750
      %v1768 = vsel %vm323, %v1750, %v1752
      %v1769 = vsel %vm323, %v1754, %v1756
      %v1770 = vsel %vm323, %v1756, %v1758
      %v1771 = vsel %vm323, %v1760, %v1762
      %v1772 = vsel %vm323, %v1762, %v1764
      %1781 = vst [vmem:[#allocation3 + $0x40] sm:$0xff] %v1765
      %1782 = vst [vmem:[#allocation3 + $0x48] sm:$0xff] %v1766
      %1783 = vst [vmem:[#allocation3 + $0x50] sm:$0xff] %v1767
      %1784 = vst [vmem:[#allocation3 + $0x58] sm:$0xff] %v1768
      %1785 = vst [vmem:[#allocation3 + $0x60] sm:$0xff] %v1769
      %1786 = vst [vmem:[#allocation3 + $0x68] sm:$0xff] %v1770
      %1787 = vst [vmem:[#allocation3 + $0x70] sm:$0xff] %v1771
      %1788 = vst [vmem:[#allocation3 + $0x78] sm:$0xff] %v1772
      %v1789 = vld [vmem:[#allocation2] sm:$0xff]
      %v1790 = vld [vmem:[#allocation2 + $0x8] sm:$0xff]
      %v1791 = vld [vmem:[#allocation2 + $0x10] sm:$0xff]
      %v1792 = vld [vmem:[#allocation2 + $0x18] sm:$0xff]
      %v1793 = vld [vmem:[#allocation2 + $0x20] sm:$0xff]
      %v1794 = vld [vmem:[#allocation2 + $0x28] sm:$0xff]
      %v1795 = vld [vmem:[#allocation2 + $0x30] sm:$0xff]
      %v1796 = vld [vmem:[#allocation2 + $0x38] sm:$0xff]
      %v1797 = vld [vmem:[#allocation2 + $0x40] sm:$0xff]
      %v1798 = vld [vmem:[#allocation2 + $0x48] sm:$0xff]
      %v1799 = vld [vmem:[#allocation2 + $0x50] sm:$0xff]
      %v1800 = vld [vmem:[#allocation2 + $0x58] sm:$0xff]
      %1813 = vrot.lane.b32.xlu0 %v1789, 126
      %v1814 = vpop.permute.xlu0 %1813
      %1815 = vrot.lane.b32.xlu0 %v1790, 126
      %v1816 = vpop.permute.xlu0 %1815
      %1817 = vrot.lane.b32.xlu0 %v1791, 126
      %v1818 = vpop.permute.xlu0 %1817
      %1819 = vrot.lane.b32.xlu0 %v1792, 126
      %v1820 = vpop.permute.xlu0 %1819
      %1821 = vrot.lane.b32.xlu0 %v1793, 126
      %v1822 = vpop.permute.xlu0 %1821
      %1823 = vrot.lane.b32.xlu0 %v1794, 126
      %v1824 = vpop.permute.xlu0 %1823
      %1825 = vrot.lane.b32.xlu0 %v1795, 126
      %v1826 = vpop.permute.xlu0 %1825
      %1827 = vrot.lane.b32.xlu0 %v1796, 126
      %v1828 = vpop.permute.xlu0 %1827
      %1829 = vrot.lane.b32.xlu0 %v1797, 126
      %v1830 = vpop.permute.xlu0 %1829
      %1831 = vrot.lane.b32.xlu0 %v1798, 126
      %v1832 = vpop.permute.xlu0 %1831
      %1833 = vrot.lane.b32.xlu0 %v1799, 126
      %v1834 = vpop.permute.xlu0 %1833
      %1835 = vrot.lane.b32.xlu0 %v1800, 126
      %v1836 = vpop.permute.xlu0 %1835
      %v1837 = vsel %vm346, %v1814, %v1816
      %v1838 = vsel %vm346, %v1816, %v1818
      %v1839 = vsel %vm346, %v1820, %v1822
      %v1840 = vsel %vm346, %v1822, %v1824
      %v1841 = vsel %vm346, %v1826, %v1828
      %v1842 = vsel %vm346, %v1828, %v1830
      %v1843 = vsel %vm346, %v1832, %v1834
      %v1844 = vsel %vm346, %v1834, %v1836
      %v1853 = vsel %vm335, %v1837, 0.0
      %v1854 = vsel %vm336, %v1838, 0.0
      %v1855 = vsel %vm335, %v1839, 0.0
      %v1856 = vsel %vm336, %v1840, 0.0
      %v1857 = vsel %vm335, %v1841, 0.0
      %v1858 = vsel %vm336, %v1842, 0.0
      %v1859 = vsel %vm335, %v1843, 0.0
      %v1860 = vsel %vm336, %v1844, 0.0
      %1861 = vst [vmem:[#allocation3 + $0x80] sm:$0xff] %v1853
      %1862 = vst [vmem:[#allocation3 + $0x88] sm:$0xff] %v1854
      %1863 = vst [vmem:[#allocation3 + $0x90] sm:$0xff] %v1855
      %1864 = vst [vmem:[#allocation3 + $0x98] sm:$0xff] %v1856
      %1865 = vst [vmem:[#allocation3 + $0xa0] sm:$0xff] %v1857
      %1866 = vst [vmem:[#allocation3 + $0xa8] sm:$0xff] %v1858
      %1867 = vst [vmem:[#allocation3 + $0xb0] sm:$0xff] %v1859
      %1868 = vst [vmem:[#allocation3 + $0xb8] sm:$0xff] %v1860
      %v1869 = vld [vmem:[#allocation2] sm:$0xff]
      %v1870 = vld [vmem:[#allocation2 + $0x8] sm:$0xff]
      %v1871 = vld [vmem:[#allocation2 + $0x10] sm:$0xff]
      %v1872 = vld [vmem:[#allocation2 + $0x18] sm:$0xff]
      %v1873 = vld [vmem:[#allocation2 + $0x20] sm:$0xff]
      %v1874 = vld [vmem:[#allocation2 + $0x28] sm:$0xff]
      %v1875 = vld [vmem:[#allocation2 + $0x30] sm:$0xff]
      %v1876 = vld [vmem:[#allocation2 + $0x38] sm:$0xff]
      %v1877 = vld [vmem:[#allocation2 + $0x40] sm:$0xff]
      %v1878 = vld [vmem:[#allocation2 + $0x48] sm:$0xff]
      %v1879 = vld [vmem:[#allocation2 + $0x50] sm:$0xff]
      %v1880 = vld [vmem:[#allocation2 + $0x58] sm:$0xff]
      %1893 = vrot.lane.b32.xlu0 %v1869, 112
      %v1894 = vpop.permute.xlu0 %1893
      %1895 = vrot.lane.b32.xlu0 %v1870, 112
      %v1896 = vpop.permute.xlu0 %1895
      %1897 = vrot.lane.b32.xlu0 %v1871, 112
      %v1898 = vpop.permute.xlu0 %1897
      %1899 = vrot.lane.b32.xlu0 %v1872, 112
      %v1900 = vpop.permute.xlu0 %1899
      %1901 = vrot.lane.b32.xlu0 %v1873, 112
      %v1902 = vpop.permute.xlu0 %1901
      %1903 = vrot.lane.b32.xlu0 %v1874, 112
      %v1904 = vpop.permute.xlu0 %1903
      %1905 = vrot.lane.b32.xlu0 %v1875, 112
      %v1906 = vpop.permute.xlu0 %1905
      %1907 = vrot.lane.b32.xlu0 %v1876, 112
      %v1908 = vpop.permute.xlu0 %1907
      %1909 = vrot.lane.b32.xlu0 %v1877, 112
      %v1910 = vpop.permute.xlu0 %1909
      %1911 = vrot.lane.b32.xlu0 %v1878, 112
      %v1912 = vpop.permute.xlu0 %1911
      %1913 = vrot.lane.b32.xlu0 %v1879, 112
      %v1914 = vpop.permute.xlu0 %1913
      %1915 = vrot.lane.b32.xlu0 %v1880, 112
      %v1916 = vpop.permute.xlu0 %1915
      %v1917 = vsel %vm367, %v1894, %v1896
      %v1918 = vsel %vm367, %v1896, %v1898
      %v1919 = vsel %vm367, %v1900, %v1902
      %v1920 = vsel %vm367, %v1902, %v1904
      %v1921 = vsel %vm367, %v1906, %v1908
      %v1922 = vsel %vm367, %v1908, %v1910
      %v1923 = vsel %vm367, %v1912, %v1914
      %v1924 = vsel %vm367, %v1914, %v1916
      %v1933 = vsel %vm305, %v1917, 0.0
      %v1934 = vsel %vm306, %v1918, 0.0
      %v1935 = vsel %vm305, %v1919, 0.0
      %v1936 = vsel %vm306, %v1920, 0.0
      %v1937 = vsel %vm305, %v1921, 0.0
      %v1938 = vsel %vm306, %v1922, 0.0
      %v1939 = vsel %vm305, %v1923, 0.0
      %v1940 = vsel %vm306, %v1924, 0.0
      %1941 = vst [vmem:[#allocation3 + $0xc0] sm:$0xff] %v1933
      %1942 = vst [vmem:[#allocation3 + $0xc8] sm:$0xff] %v1934
      %1943 = vst [vmem:[#allocation3 + $0xd0] sm:$0xff] %v1935
      %1944 = vst [vmem:[#allocation3 + $0xd8] sm:$0xff] %v1936
      %1945 = vst [vmem:[#allocation3 + $0xe0] sm:$0xff] %v1937
      %1946 = vst [vmem:[#allocation3 + $0xe8] sm:$0xff] %v1938
      %1947 = vst [vmem:[#allocation3 + $0xf0] sm:$0xff] %v1939
      %1948 = vst [vmem:[#allocation3 + $0xf8] sm:$0xff] %v1940
      %v1949 = vld [vmem:[#allocation2] sm:$0xff]
      %v1950 = vld [vmem:[#allocation2 + $0x8] sm:$0xff]
      %v1951 = vld [vmem:[#allocation2 + $0x10] sm:$0xff]
      %v1952 = vld [vmem:[#allocation2 + $0x18] sm:$0xff]
      %v1953 = vld [vmem:[#allocation2 + $0x20] sm:$0xff]
      %v1954 = vld [vmem:[#allocation2 + $0x28] sm:$0xff]
      %v1955 = vld [vmem:[#allocation2 + $0x30] sm:$0xff]
      %v1956 = vld [vmem:[#allocation2 + $0x38] sm:$0xff]
      %v1957 = vld [vmem:[#allocation2 + $0x40] sm:$0xff]
      %v1958 = vld [vmem:[#allocation2 + $0x48] sm:$0xff]
      %v1959 = vld [vmem:[#allocation2 + $0x50] sm:$0xff]
      %v1960 = vld [vmem:[#allocation2 + $0x58] sm:$0xff]
      %1973 = vrot.lane.b32.xlu0 %v1949, 111
      %v1974 = vpop.permute.xlu0 %1973
      %1975 = vrot.lane.b32.xlu0 %v1950, 111
      %v1976 = vpop.permute.xlu0 %1975
      %1977 = vrot.lane.b32.xlu0 %v1951, 111
      %v1978 = vpop.permute.xlu0 %1977
      %1979 = vrot.lane.b32.xlu0 %v1952, 111
      %v1980 = vpop.permute.xlu0 %1979
      %1981 = vrot.lane.b32.xlu0 %v1953, 111
      %v1982 = vpop.permute.xlu0 %1981
      %1983 = vrot.lane.b32.xlu0 %v1954, 111
      %v1984 = vpop.permute.xlu0 %1983
      %1985 = vrot.lane.b32.xlu0 %v1955, 111
      %v1986 = vpop.permute.xlu0 %1985
      %1987 = vrot.lane.b32.xlu0 %v1956, 111
      %v1988 = vpop.permute.xlu0 %1987
      %1989 = vrot.lane.b32.xlu0 %v1957, 111
      %v1990 = vpop.permute.xlu0 %1989
      %1991 = vrot.lane.b32.xlu0 %v1958, 111
      %v1992 = vpop.permute.xlu0 %1991
      %1993 = vrot.lane.b32.xlu0 %v1959, 111
      %v1994 = vpop.permute.xlu0 %1993
      %1995 = vrot.lane.b32.xlu0 %v1960, 111
      %v1996 = vpop.permute.xlu0 %1995
      %v1997 = vsel %vm388, %v1974, %v1976
      %v1998 = vsel %vm388, %v1976, %v1978
      %v1999 = vsel %vm388, %v1980, %v1982
      %v2000 = vsel %vm388, %v1982, %v1984
      %v2001 = vsel %vm388, %v1986, %v1988
      %v2002 = vsel %vm388, %v1988, %v1990
      %v2003 = vsel %vm388, %v1992, %v1994
      %v2004 = vsel %vm388, %v1994, %v1996
      %2013 = vst [vmem:[#allocation3 + $0x100] sm:$0xff] %v1997
      %2014 = vst [vmem:[#allocation3 + $0x108] sm:$0xff] %v1998
      %2015 = vst [vmem:[#allocation3 + $0x110] sm:$0xff] %v1999
      %2016 = vst [vmem:[#allocation3 + $0x118] sm:$0xff] %v2000
      %2017 = vst [vmem:[#allocation3 + $0x120] sm:$0xff] %v2001
      %2018 = vst [vmem:[#allocation3 + $0x128] sm:$0xff] %v2002
      %2019 = vst [vmem:[#allocation3 + $0x130] sm:$0xff] %v2003
      %2020 = vst [vmem:[#allocation3 + $0x138] sm:$0xff] %v2004
      %v2021 = vld [vmem:[#allocation2] sm:$0xff]
      %v2022 = vld [vmem:[#allocation2 + $0x8] sm:$0xff]
      %v2023 = vld [vmem:[#allocation2 + $0x10] sm:$0xff]
      %v2024 = vld [vmem:[#allocation2 + $0x18] sm:$0xff]
      %v2025 = vld [vmem:[#allocation2 + $0x20] sm:$0xff]
      %v2026 = vld [vmem:[#allocation2 + $0x28] sm:$0xff]
      %v2027 = vld [vmem:[#allocation2 + $0x30] sm:$0xff]
      %v2028 = vld [vmem:[#allocation2 + $0x38] sm:$0xff]
      %v2029 = vld [vmem:[#allocation2 + $0x40] sm:$0xff]
      %v2030 = vld [vmem:[#allocation2 + $0x48] sm:$0xff]
      %v2031 = vld [vmem:[#allocation2 + $0x50] sm:$0xff]
      %v2032 = vld [vmem:[#allocation2 + $0x58] sm:$0xff]
      %2045 = vrot.lane.b32.xlu0 %v2021, 110
      %v2046 = vpop.permute.xlu0 %2045
      %2047 = vrot.lane.b32.xlu0 %v2022, 110
      %v2048 = vpop.permute.xlu0 %2047
      %2049 = vrot.lane.b32.xlu0 %v2023, 110
      %v2050 = vpop.permute.xlu0 %2049
      %2051 = vrot.lane.b32.xlu0 %v2024, 110
      %v2052 = vpop.permute.xlu0 %2051
      %2053 = vrot.lane.b32.xlu0 %v2025, 110
      %v2054 = vpop.permute.xlu0 %2053
      %2055 = vrot.lane.b32.xlu0 %v2026, 110
      %v2056 = vpop.permute.xlu0 %2055
      %2057 = vrot.lane.b32.xlu0 %v2027, 110
      %v2058 = vpop.permute.xlu0 %2057
      %2059 = vrot.lane.b32.xlu0 %v2028, 110
      %v2060 = vpop.permute.xlu0 %2059
      %2061 = vrot.lane.b32.xlu0 %v2029, 110
      %v2062 = vpop.permute.xlu0 %2061
      %2063 = vrot.lane.b32.xlu0 %v2030, 110
      %v2064 = vpop.permute.xlu0 %2063
      %2065 = vrot.lane.b32.xlu0 %v2031, 110
      %v2066 = vpop.permute.xlu0 %2065
      %2067 = vrot.lane.b32.xlu0 %v2032, 110
      %v2068 = vpop.permute.xlu0 %2067
      %v2069 = vsel %vm407, %v2046, %v2048
      %v2070 = vsel %vm407, %v2048, %v2050
      %v2071 = vsel %vm407, %v2052, %v2054
      %v2072 = vsel %vm407, %v2054, %v2056
      %v2073 = vsel %vm407, %v2058, %v2060
      %v2074 = vsel %vm407, %v2060, %v2062
      %v2075 = vsel %vm407, %v2064, %v2066
      %v2076 = vsel %vm407, %v2066, %v2068
      %v2085 = vsel %vm335, %v2069, 0.0
      %v2086 = vsel %vm336, %v2070, 0.0
      %v2087 = vsel %vm335, %v2071, 0.0
      %v2088 = vsel %vm336, %v2072, 0.0
      %v2089 = vsel %vm335, %v2073, 0.0
      %v2090 = vsel %vm336, %v2074, 0.0
      %v2091 = vsel %vm335, %v2075, 0.0
      %v2092 = vsel %vm336, %v2076, 0.0
      %2093 = vst [vmem:[#allocation3 + $0x140] sm:$0xff] %v2085
      %2094 = vst [vmem:[#allocation3 + $0x148] sm:$0xff] %v2086
      %2095 = vst [vmem:[#allocation3 + $0x150] sm:$0xff] %v2087
      %2096 = vst [vmem:[#allocation3 + $0x158] sm:$0xff] %v2088
      %2097 = vst [vmem:[#allocation3 + $0x160] sm:$0xff] %v2089
      %2098 = vst [vmem:[#allocation3 + $0x168] sm:$0xff] %v2090
      %2099 = vst [vmem:[#allocation3 + $0x170] sm:$0xff] %v2091
      %2100 = vst [vmem:[#allocation3 + $0x178] sm:$0xff] %v2092
      %v2101 = vld [vmem:[#allocation2] sm:$0xff]
      %v2102 = vld [vmem:[#allocation2 + $0x8] sm:$0xff]
      %v2103 = vld [vmem:[#allocation2 + $0x10] sm:$0xff]
      %v2104 = vld [vmem:[#allocation2 + $0x18] sm:$0xff]
      %v2105 = vld [vmem:[#allocation2 + $0x20] sm:$0xff]
      %v2106 = vld [vmem:[#allocation2 + $0x28] sm:$0xff]
      %v2107 = vld [vmem:[#allocation2 + $0x30] sm:$0xff]
      %v2108 = vld [vmem:[#allocation2 + $0x38] sm:$0xff]
      %v2109 = vld [vmem:[#allocation2 + $0x40] sm:$0xff]
      %v2110 = vld [vmem:[#allocation2 + $0x48] sm:$0xff]
      %v2111 = vld [vmem:[#allocation2 + $0x50] sm:$0xff]
      %v2112 = vld [vmem:[#allocation2 + $0x58] sm:$0xff]
      %2125 = vrot.lane.b32.xlu0 %v2101, 96
      %v2126 = vpop.permute.xlu0 %2125
      %2127 = vrot.lane.b32.xlu0 %v2102, 96
      %v2128 = vpop.permute.xlu0 %2127
      %2129 = vrot.lane.b32.xlu0 %v2103, 96
      %v2130 = vpop.permute.xlu0 %2129
      %2131 = vrot.lane.b32.xlu0 %v2104, 96
      %v2132 = vpop.permute.xlu0 %2131
      %2133 = vrot.lane.b32.xlu0 %v2105, 96
      %v2134 = vpop.permute.xlu0 %2133
      %2135 = vrot.lane.b32.xlu0 %v2106, 96
      %v2136 = vpop.permute.xlu0 %2135
      %2137 = vrot.lane.b32.xlu0 %v2107, 96
      %v2138 = vpop.permute.xlu0 %2137
      %2139 = vrot.lane.b32.xlu0 %v2108, 96
      %v2140 = vpop.permute.xlu0 %2139
      %2141 = vrot.lane.b32.xlu0 %v2109, 96
      %v2142 = vpop.permute.xlu0 %2141
      %2143 = vrot.lane.b32.xlu0 %v2110, 96
      %v2144 = vpop.permute.xlu0 %2143
      %2145 = vrot.lane.b32.xlu0 %v2111, 96
      %v2146 = vpop.permute.xlu0 %2145
      %2147 = vrot.lane.b32.xlu0 %v2112, 96
      %v2148 = vpop.permute.xlu0 %2147
      %v2149 = vsel %vm428, %v2126, %v2128
      %v2150 = vsel %vm428, %v2128, %v2130
      %v2151 = vsel %vm428, %v2132, %v2134
      %v2152 = vsel %vm428, %v2134, %v2136
      %v2153 = vsel %vm428, %v2138, %v2140
      %v2154 = vsel %vm428, %v2140, %v2142
      %v2155 = vsel %vm428, %v2144, %v2146
      %v2156 = vsel %vm428, %v2146, %v2148
      %v2165 = vsel %vm305, %v2149, 0.0
      %v2166 = vsel %vm306, %v2150, 0.0
      %v2167 = vsel %vm305, %v2151, 0.0
      %v2168 = vsel %vm306, %v2152, 0.0
      %v2169 = vsel %vm305, %v2153, 0.0
      %v2170 = vsel %vm306, %v2154, 0.0
      %v2171 = vsel %vm305, %v2155, 0.0
      %v2172 = vsel %vm306, %v2156, 0.0
      %2173 = vst [vmem:[#allocation3 + $0x180] sm:$0xff] %v2165
      %2174 = vst [vmem:[#allocation3 + $0x188] sm:$0xff] %v2166
      %2175 = vst [vmem:[#allocation3 + $0x190] sm:$0xff] %v2167
      %2176 = vst [vmem:[#allocation3 + $0x198] sm:$0xff] %v2168
      %2177 = vst [vmem:[#allocation3 + $0x1a0] sm:$0xff] %v2169
      %2178 = vst [vmem:[#allocation3 + $0x1a8] sm:$0xff] %v2170
      %2179 = vst [vmem:[#allocation3 + $0x1b0] sm:$0xff] %v2171
      %2180 = vst [vmem:[#allocation3 + $0x1b8] sm:$0xff] %v2172
      %v2181 = vld [vmem:[#allocation2] sm:$0xff]
      %v2182 = vld [vmem:[#allocation2 + $0x8] sm:$0xff]
      %v2183 = vld [vmem:[#allocation2 + $0x10] sm:$0xff]
      %v2184 = vld [vmem:[#allocation2 + $0x18] sm:$0xff]
      %v2185 = vld [vmem:[#allocation2 + $0x20] sm:$0xff]
      %v2186 = vld [vmem:[#allocation2 + $0x28] sm:$0xff]
      %v2187 = vld [vmem:[#allocation2 + $0x30] sm:$0xff]
      %v2188 = vld [vmem:[#allocation2 + $0x38] sm:$0xff]
      %v2189 = vld [vmem:[#allocation2 + $0x40] sm:$0xff]
      %v2190 = vld [vmem:[#allocation2 + $0x48] sm:$0xff]
      %v2191 = vld [vmem:[#allocation2 + $0x50] sm:$0xff]
      %v2192 = vld [vmem:[#allocation2 + $0x58] sm:$0xff]
      %2205 = vrot.lane.b32.xlu0 %v2181, 95
      %v2206 = vpop.permute.xlu0 %2205
      %2207 = vrot.lane.b32.xlu0 %v2182, 95
      %v2208 = vpop.permute.xlu0 %2207
      %2209 = vrot.lane.b32.xlu0 %v2183, 95
      %v2210 = vpop.permute.xlu0 %2209
      %2211 = vrot.lane.b32.xlu0 %v2184, 95
      %v2212 = vpop.permute.xlu0 %2211
      %2213 = vrot.lane.b32.xlu0 %v2185, 95
      %v2214 = vpop.permute.xlu0 %2213
      %2215 = vrot.lane.b32.xlu0 %v2186, 95
      %v2216 = vpop.permute.xlu0 %2215
      %2217 = vrot.lane.b32.xlu0 %v2187, 95
      %v2218 = vpop.permute.xlu0 %2217
      %2219 = vrot.lane.b32.xlu0 %v2188, 95
      %v2220 = vpop.permute.xlu0 %2219
      %2221 = vrot.lane.b32.xlu0 %v2189, 95
      %v2222 = vpop.permute.xlu0 %2221
      %2223 = vrot.lane.b32.xlu0 %v2190, 95
      %v2224 = vpop.permute.xlu0 %2223
      %2225 = vrot.lane.b32.xlu0 %v2191, 95
      %v2226 = vpop.permute.xlu0 %2225
      %2227 = vrot.lane.b32.xlu0 %v2192, 95
      %v2228 = vpop.permute.xlu0 %2227
      %v2229 = vsel %vm449, %v2206, %v2208
      %v2230 = vsel %vm449, %v2208, %v2210
      %v2231 = vsel %vm449, %v2212, %v2214
      %v2232 = vsel %vm449, %v2214, %v2216
      %v2233 = vsel %vm449, %v2218, %v2220
      %v2234 = vsel %vm449, %v2220, %v2222
      %v2235 = vsel %vm449, %v2224, %v2226
      %v2236 = vsel %vm449, %v2226, %v2228
      %2245 = vst [vmem:[#allocation3 + $0x1c0] sm:$0xff] %v2229
      %2246 = vst [vmem:[#allocation3 + $0x1c8] sm:$0xff] %v2230
      %2247 = vst [vmem:[#allocation3 + $0x1d0] sm:$0xff] %v2231
      %2248 = vst [vmem:[#allocation3 + $0x1d8] sm:$0xff] %v2232
      %2249 = vst [vmem:[#allocation3 + $0x1e0] sm:$0xff] %v2233
      %2250 = vst [vmem:[#allocation3 + $0x1e8] sm:$0xff] %v2234
      %2251 = vst [vmem:[#allocation3 + $0x1f0] sm:$0xff] %v2235
      %2252 = vst [vmem:[#allocation3 + $0x1f8] sm:$0xff] %v2236
      %v2253 = vld [vmem:[#allocation2] sm:$0xff]
      %v2254 = vld [vmem:[#allocation2 + $0x8] sm:$0xff]
      %v2255 = vld [vmem:[#allocation2 + $0x10] sm:$0xff]
      %v2256 = vld [vmem:[#allocation2 + $0x18] sm:$0xff]
      %v2257 = vld [vmem:[#allocation2 + $0x20] sm:$0xff]
      %v2258 = vld [vmem:[#allocation2 + $0x28] sm:$0xff]
      %v2259 = vld [vmem:[#allocation2 + $0x30] sm:$0xff]
      %v2260 = vld [vmem:[#allocation2 + $0x38] sm:$0xff]
      %v2261 = vld [vmem:[#allocation2 + $0x40] sm:$0xff]
      %v2262 = vld [vmem:[#allocation2 + $0x48] sm:$0xff]
      %v2263 = vld [vmem:[#allocation2 + $0x50] sm:$0xff]
      %v2264 = vld [vmem:[#allocation2 + $0x58] sm:$0xff]
      %2277 = vrot.lane.b32.xlu0 %v2253, 94
      %v2278 = vpop.permute.xlu0 %2277
      %2279 = vrot.lane.b32.xlu0 %v2254, 94
      %v2280 = vpop.permute.xlu0 %2279
      %2281 = vrot.lane.b32.xlu0 %v2255, 94
      %v2282 = vpop.permute.xlu0 %2281
      %2283 = vrot.lane.b32.xlu0 %v2256, 94
      %v2284 = vpop.permute.xlu0 %2283
      %2285 = vrot.lane.b32.xlu0 %v2257, 94
      %v2286 = vpop.permute.xlu0 %2285
      %2287 = vrot.lane.b32.xlu0 %v2258, 94
      %v2288 = vpop.permute.xlu0 %2287
      %2289 = vrot.lane.b32.xlu0 %v2259, 94
      %v2290 = vpop.permute.xlu0 %2289
      %2291 = vrot.lane.b32.xlu0 %v2260, 94
      %v2292 = vpop.permute.xlu0 %2291
      %2293 = vrot.lane.b32.xlu0 %v2261, 94
      %v2294 = vpop.permute.xlu0 %2293
      %2295 = vrot.lane.b32.xlu0 %v2262, 94
      %v2296 = vpop.permute.xlu0 %2295
      %2297 = vrot.lane.b32.xlu0 %v2263, 94
      %v2298 = vpop.permute.xlu0 %2297
      %2299 = vrot.lane.b32.xlu0 %v2264, 94
      %v2300 = vpop.permute.xlu0 %2299
      %v2301 = vsel %vm468, %v2278, %v2280
      %v2302 = vsel %vm468, %v2280, %v2282
      %v2303 = vsel %vm468, %v2284, %v2286
      %v2304 = vsel %vm468, %v2286, %v2288
      %v2305 = vsel %vm468, %v2290, %v2292
      %v2306 = vsel %vm468, %v2292, %v2294
      %v2307 = vsel %vm468, %v2296, %v2298
      %v2308 = vsel %vm468, %v2298, %v2300
      %v2317 = vsel %vm335, %v2301, 0.0
      %v2318 = vsel %vm336, %v2302, 0.0
      %v2319 = vsel %vm335, %v2303, 0.0
      %v2320 = vsel %vm336, %v2304, 0.0
      %v2321 = vsel %vm335, %v2305, 0.0
      %v2322 = vsel %vm336, %v2306, 0.0
      %v2323 = vsel %vm335, %v2307, 0.0
      %v2324 = vsel %vm336, %v2308, 0.0
      %2325 = vst [vmem:[#allocation3 + $0x200] sm:$0xff] %v2317
      %2326 = vst [vmem:[#allocation3 + $0x208] sm:$0xff] %v2318
      %2327 = vst [vmem:[#allocation3 + $0x210] sm:$0xff] %v2319
      %2328 = vst [vmem:[#allocation3 + $0x218] sm:$0xff] %v2320
      %2329 = vst [vmem:[#allocation3 + $0x220] sm:$0xff] %v2321
      %2330 = vst [vmem:[#allocation3 + $0x228] sm:$0xff] %v2322
      %2331 = vst [vmem:[#allocation3 + $0x230] sm:$0xff] %v2323
      %2332 = vst [vmem:[#allocation3 + $0x238] sm:$0xff] %v2324
      %v2333 = vld [vmem:[%s1 + $0x8] sm:$0xff]
      %v2334 = vld [vmem:[%s1 + $0x10] sm:$0xff]
      %v2335 = vld [vmem:[%s1 + $0x28] sm:$0xff]
      %v2336 = vld [vmem:[%s1 + $0x30] sm:$0xff]
      %v2337 = vld [vmem:[#allocation3] sm:$0xff]
      %v2338 = vld [vmem:[#allocation3 + $0x8] sm:$0xff]
      %v2339 = vld [vmem:[#allocation3 + $0x10] sm:$0xff]
      %v2340 = vld [vmem:[#allocation3 + $0x18] sm:$0xff]
      %v2341 = vld [vmem:[#allocation3 + $0x20] sm:$0xff]
      %v2342 = vld [vmem:[#allocation3 + $0x28] sm:$0xff]
      %v2343 = vld [vmem:[#allocation3 + $0x30] sm:$0xff]
      %v2344 = vld [vmem:[#allocation3 + $0x38] sm:$0xff]
      %v2345 = vld [vmem:[#allocation3 + $0x40] sm:$0xff]
      %v2346 = vld [vmem:[#allocation3 + $0x48] sm:$0xff]
      %v2347 = vld [vmem:[#allocation3 + $0x50] sm:$0xff]
      %v2348 = vld [vmem:[#allocation3 + $0x58] sm:$0xff]
      %v2349 = vld [vmem:[#allocation3 + $0x60] sm:$0xff]
      %v2350 = vld [vmem:[#allocation3 + $0x68] sm:$0xff]
      %v2351 = vld [vmem:[#allocation3 + $0x70] sm:$0xff]
      %v2352 = vld [vmem:[#allocation3 + $0x78] sm:$0xff]
      %v2353 = vld [vmem:[#allocation3 + $0x80] sm:$0xff]
      %v2354 = vld [vmem:[#allocation3 + $0x88] sm:$0xff]
      %v2355 = vld [vmem:[#allocation3 + $0x90] sm:$0xff]
      %v2356 = vld [vmem:[#allocation3 + $0x98] sm:$0xff]
      %v2357 = vld [vmem:[#allocation3 + $0xa0] sm:$0xff]
      %v2358 = vld [vmem:[#allocation3 + $0xa8] sm:$0xff]
      %v2359 = vld [vmem:[#allocation3 + $0xb0] sm:$0xff]
      %v2360 = vld [vmem:[#allocation3 + $0xb8] sm:$0xff]
      %v2361 = vld [vmem:[#allocation3 + $0xc0] sm:$0xff]
      %v2362 = vld [vmem:[#allocation3 + $0xc8] sm:$0xff]
      %v2363 = vld [vmem:[#allocation3 + $0xd0] sm:$0xff]
      %v2364 = vld [vmem:[#allocation3 + $0xd8] sm:$0xff]
      %v2365 = vld [vmem:[#allocation3 + $0xe0] sm:$0xff]
      %v2366 = vld [vmem:[#allocation3 + $0xe8] sm:$0xff]
      %v2367 = vld [vmem:[#allocation3 + $0xf0] sm:$0xff]
      %v2368 = vld [vmem:[#allocation3 + $0xf8] sm:$0xff]
      %v2369 = vld [vmem:[#allocation3 + $0x100] sm:$0xff]
      %v2370 = vld [vmem:[#allocation3 + $0x108] sm:$0xff]
      %v2371 = vld [vmem:[#allocation3 + $0x110] sm:$0xff]
      %v2372 = vld [vmem:[#allocation3 + $0x118] sm:$0xff]
      %v2373 = vld [vmem:[#allocation3 + $0x120] sm:$0xff]
      %v2374 = vld [vmem:[#allocation3 + $0x128] sm:$0xff]
      %v2375 = vld [vmem:[#allocation3 + $0x130] sm:$0xff]
      %v2376 = vld [vmem:[#allocation3 + $0x138] sm:$0xff]
      %v2377 = vld [vmem:[#allocation3 + $0x140] sm:$0xff]
      %v2378 = vld [vmem:[#allocation3 + $0x148] sm:$0xff]
      %v2379 = vld [vmem:[#allocation3 + $0x150] sm:$0xff]
      %v2380 = vld [vmem:[#allocation3 + $0x158] sm:$0xff]
      %v2381 = vld [vmem:[#allocation3 + $0x160] sm:$0xff]
      %v2382 = vld [vmem:[#allocation3 + $0x168] sm:$0xff]
      %v2383 = vld [vmem:[#allocation3 + $0x170] sm:$0xff]
      %v2384 = vld [vmem:[#allocation3 + $0x178] sm:$0xff]
      %v2385 = vld [vmem:[#allocation3 + $0x180] sm:$0xff]
      %v2386 = vld [vmem:[#allocation3 + $0x188] sm:$0xff]
      %v2387 = vld [vmem:[#allocation3 + $0x190] sm:$0xff]
      %v2388 = vld [vmem:[#allocation3 + $0x198] sm:$0xff]
      %v2389 = vld [vmem:[#allocation3 + $0x1a0] sm:$0xff]
      %v2390 = vld [vmem:[#allocation3 + $0x1a8] sm:$0xff]
      %v2391 = vld [vmem:[#allocation3 + $0x1b0] sm:$0xff]
      %v2392 = vld [vmem:[#allocation3 + $0x1b8] sm:$0xff]
      %v2393 = vld [vmem:[#allocation3 + $0x1c0] sm:$0xff]
      %v2394 = vld [vmem:[#allocation3 + $0x1c8] sm:$0xff]
      %v2395 = vld [vmem:[#allocation3 + $0x1d0] sm:$0xff]
      %v2396 = vld [vmem:[#allocation3 + $0x1d8] sm:$0xff]
      %v2397 = vld [vmem:[#allocation3 + $0x1e0] sm:$0xff]
      %v2398 = vld [vmem:[#allocation3 + $0x1e8] sm:$0xff]
      %v2399 = vld [vmem:[#allocation3 + $0x1f0] sm:$0xff]
      %v2400 = vld [vmem:[#allocation3 + $0x1f8] sm:$0xff]
      %v2401 = vld [vmem:[#allocation3 + $0x200] sm:$0xff]
      %v2402 = vld [vmem:[#allocation3 + $0x208] sm:$0xff]
      %v2403 = vld [vmem:[#allocation3 + $0x210] sm:$0xff]
      %v2404 = vld [vmem:[#allocation3 + $0x218] sm:$0xff]
      %v2405 = vld [vmem:[#allocation3 + $0x220] sm:$0xff]
      %v2406 = vld [vmem:[#allocation3 + $0x228] sm:$0xff]
      %v2407 = vld [vmem:[#allocation3 + $0x230] sm:$0xff]
      %v2408 = vld [vmem:[#allocation3 + $0x238] sm:$0xff]
      %v2409 = vpack.c.bf16 %v2339, %v2337
      %v2410 = vpack.c.bf16 %v2340, %v2338
      %v2411 = vpack.c.bf16 %v2343, %v2341
      %v2412 = vpack.c.bf16 %v2344, %v2342
      %v2413 = vpack.c.bf16 %v2347, %v2345
      %v2414 = vpack.c.bf16 %v2348, %v2346
      %v2415 = vpack.c.bf16 %v2351, %v2349
      %v2416 = vpack.c.bf16 %v2352, %v2350
      %v2417 = vpack.c.bf16 %v2355, %v2353
      %v2418 = vpack.c.bf16 %v2356, %v2354
      %v2419 = vpack.c.bf16 %v2359, %v2357
      %v2420 = vpack.c.bf16 %v2360, %v2358
      %v2421 = vpack.c.bf16 %v2363, %v2361
      %v2422 = vpack.c.bf16 %v2364, %v2362
      %v2423 = vpack.c.bf16 %v2367, %v2365
      %v2424 = vpack.c.bf16 %v2368, %v2366
      %v2425 = vpack.c.bf16 %v2371, %v2369
      %v2426 = vpack.c.bf16 %v2372, %v2370
      %v2427 = vpack.c.bf16 %v2375, %v2373
      %v2428 = vpack.c.bf16 %v2376, %v2374
      %v2429 = vpack.c.bf16 %v2379, %v2377
      %v2430 = vpack.c.bf16 %v2380, %v2378
      %v2431 = vpack.c.bf16 %v2383, %v2381
      %v2432 = vpack.c.bf16 %v2384, %v2382
      %v2433 = vpack.c.bf16 %v2387, %v2385
      %v2434 = vpack.c.bf16 %v2388, %v2386
      %v2435 = vpack.c.bf16 %v2391, %v2389
      %v2436 = vpack.c.bf16 %v2392, %v2390
      %v2437 = vpack.c.bf16 %v2395, %v2393
      %v2438 = vpack.c.bf16 %v2396, %v2394
      %v2439 = vpack.c.bf16 %v2399, %v2397
      %v2440 = vpack.c.bf16 %v2400, %v2398
      %v2441 = vpack.c.bf16 %v2403, %v2401
      %v2442 = vpack.c.bf16 %v2404, %v2402
      %v2443 = vpack.c.bf16 %v2407, %v2405
      %v2444 = vpack.c.bf16 %v2408, %v2406
      %v2445 = vld [vmem:[%s2] sm:$0xff]
      %v2446 = vld [vmem:[%s2 + $0x8] sm:$0xff]
      %2448 = vset.pattern.permute.xlu0 4
      %2449 = vperm.xlu0 %2448, %v2445
      %v2450 = vpop.permute.xlu0 %2449
      %2453 = vset.pattern.permute.xlu0 4
      %2454 = vperm.xlu0 %2453, %v2446
      %v2455 = vpop.permute.xlu0 %2454
      %v2461 = vunpack.c.l.b16 %v2333
      %v2462 = vunpack.c.h.b16 %v2333
      %v2463 = vunpack.c.l.b16 %v2334
      %v2464 = vunpack.c.h.b16 %v2334
      %v2465 = vunpack.c.l.b16 %v2335
      %v2466 = vunpack.c.h.b16 %v2335
      %v2467 = vunpack.c.l.b16 %v2336
      %v2468 = vunpack.c.h.b16 %v2336
      %v2469 = vpack.c.b16 %v2465, %v2461
      %v2470 = vpack.c.b16 %v2466, %v2462
      %v2471 = vpack.c.b16 %v2467, %v2463
      %v2472 = vpack.c.b16 %v2468, %v2464
      %2473 = vrot.lane.b32.xlu0 %v2469, 24
      %v2474 = vpop.permute.xlu0 %2473
      %2475 = vrot.lane.b32.xlu0 %v2470, 24
      %v2476 = vpop.permute.xlu0 %2475
      %2477 = vrot.lane.b32.xlu0 %v2471, 24
      %v2478 = vpop.permute.xlu0 %2477
      %2479 = vrot.lane.b32.xlu0 %v2472, 24
      %v2480 = vpop.permute.xlu0 %2479
      %vm2481 = vcmask 195584
      %v2482 = vsel %vm2481, %v2474, %v2476
      %v2483 = vsel %vm2481, %v2476, %v2478
      %v2484 = vsel %vm2481, %v2478, %v2480
      %vm2487 = vcmask 261120
      %v2489 = vsel %vm2487, %v2484, 0
      %2491 = vmatprep.subr.bf16.mxu0 %v2410
      %2492 = vmatpush1.bf16.msra.mxu0 %v2409
      %2493 = vmatprep.subr.bf16.mxu0 %v2412
      %2494 = vmatpush1.bf16.msra.mxu0 %v2411
      %2495 = vmatprep.subr.bf16.mxu0 %v2414
      %2496 = vmatpush1.bf16.msra.mxu0 %v2413
      %2497 = vmatprep.subr.bf16.mxu0 %v2416
      %2498 = vmatpush1.bf16.msra.mxu0 %v2415
      %2499 = vmatprep.subr.bf16.mxu0 %v2418
      %2500 = vmatpush1.bf16.msra.mxu0 %v2417
      %2501 = vmatprep.subr.bf16.mxu0 %v2420
      %2502 = vmatpush1.bf16.msra.mxu0 %v2419
      %2503 = vmatprep.subr.bf16.mxu0 %v2422
      %2504 = vmatpush1.bf16.msra.mxu0 %v2421
      %2505 = vmatprep.subr.bf16.mxu0 %v2424
      %2506 = vmatpush1.bf16.msra.mxu0 %v2423
      %2507 = vmatprep.subr.bf16.mxu0 %v2426
      %2508 = vmatpush1.bf16.msra.mxu0 %v2425
      %2509 = vmatprep.subr.bf16.mxu0 %v2428
      %2510 = vmatpush1.bf16.msra.mxu0 %v2427
      %2511 = vmatprep.subr.bf16.mxu0 %v2430
      %2512 = vmatpush1.bf16.msra.mxu0 %v2429
      %2513 = vmatprep.subr.bf16.mxu0 %v2432
      %2514 = vmatpush1.bf16.msra.mxu0 %v2431
      %2515 = vmatprep.subr.bf16.mxu0 %v2434
      %2516 = vmatpush1.bf16.msra.mxu0 %v2433
      %2517 = vmatprep.subr.bf16.mxu0 %v2436
      %2518 = vmatpush1.bf16.msra.mxu0 %v2435
      %2519 = vmatprep.subr.bf16.mxu0 %v2438
      %2520 = vmatpush1.bf16.msra.mxu0 %v2437
      %2521 = vmatprep.subr.bf16.mxu0 %v2440
      %2522 = vmatpush1.bf16.msra.mxu0 %v2439
      %2523 = vmatprep.mubr.bf16.mxu0 %v2483
      %2524 = vmatmul.mubr.bf16.gmra.mrb[0].mxu0 %v2482
      %v2525 = vpop.f32.mrb[0].mxu0
      %v2526 = vadd.f32 %v2450, %v2525
      %v2527 = vpop.f32.mrb[0].mxu0
      %v2528 = vadd.f32 %v2450, %v2527
      %v2529 = vpop.f32.mrb[0].mxu0
      %v2530 = vadd.f32 %v2455, %v2529
      %v2531 = vpop.f32.mrb[0].mxu0
      %v2532 = vadd.f32 %v2455, %v2531
      %2533 = vdwg.mxu0
      %2534 = vmatprep.subr.bf16.mxu0 %v2442
      %2535 = vmatpush1.bf16.msra.mxu0 %v2441
      %2536 = vmatprep.subr.bf16.mxu0 %v2444
      %2537 = vmatpush1.bf16.msra.mxu0 %v2443
      %2538 = vmatprep.subr.bf16.mxu0 0
      %2539 = vmatpush1.bf16.msra.mxu0 0
      %2540 = vmatprep.subr.bf16.mxu0 0
      %2541 = vmatpush1.bf16.msra.mxu0 0
      %2542 = vmatprep.subr.bf16.mxu0 0
      %2543 = vmatpush1.bf16.msra.mxu0 0
      %2544 = vmatprep.subr.bf16.mxu0 0
      %2545 = vmatpush1.bf16.msra.mxu0 0
      %2546 = vmatprep.subr.bf16.mxu0 0
      %2547 = vmatpush1.bf16.msra.mxu0 0
      %2548 = vmatprep.subr.bf16.mxu0 0
      %2549 = vmatpush1.bf16.msra.mxu0 0
      %2550 = vmatprep.subr.bf16.mxu0 0
      %2551 = vmatpush1.bf16.msra.mxu0 0
      %2552 = vmatprep.subr.bf16.mxu0 0
      %2553 = vmatpush1.bf16.msra.mxu0 0
      %2554 = vmatprep.subr.bf16.mxu0 0
      %2555 = vmatpush1.bf16.msra.mxu0 0
      %2556 = vmatprep.subr.bf16.mxu0 0
      %2557 = vmatpush1.bf16.msra.mxu0 0
      %2558 = vmatprep.subr.bf16.mxu0 0
      %2559 = vmatpush1.bf16.msra.mxu0 0
      %2560 = vmatprep.subr.bf16.mxu0 0
      %2561 = vmatpush1.bf16.msra.mxu0 0
      %2562 = vmatprep.subr.bf16.mxu0 0
      %2563 = vmatpush1.bf16.msra.mxu0 0
      %2564 = vmatprep.subr.bf16.mxu0 0
      %2565 = vmatpush1.bf16.msra.mxu0 0
      %2566 = vmatprep.mubr.bf16.mxu0 0
      %2567 = vmatmul.mubr.bf16.gmra.mrb[0].mxu0 %v2489
      %v2568 = vpop.f32.mrb[0].mxu0
      %v2569 = vadd.f32 %v2526, %v2568
      %v2570 = vpop.f32.mrb[0].mxu0
      %v2571 = vadd.f32 %v2528, %v2570
      %v2572 = vpop.f32.mrb[0].mxu0
      %v2573 = vadd.f32 %v2530, %v2572
      %v2574 = vpop.f32.mrb[0].mxu0
      %v2575 = vadd.f32 %v2532, %v2574
      %2576 = vdwg.mxu0
      %v2577 = vmax.f32 %v2569, 0.0
      %v2578 = vmax.f32 %v2571, 0.0
      %v2579 = vmax.f32 %v2573, 0.0
      %v2580 = vmax.f32 %v2575, 0.0
      %2585 = vrot.lane.b32.xlu0 %v2577, 17
      %v2586 = vpop.permute.xlu0 %2585
      %2587 = vrot.lane.b32.xlu0 %v2578, 17
      %v2588 = vpop.permute.xlu0 %2587
      %2589 = vrot.lane.b32.xlu0 %v2579, 17
      %v2590 = vpop.permute.xlu0 %2589
      %2591 = vrot.lane.b32.xlu0 %v2580, 17
      %v2592 = vpop.permute.xlu0 %2591
      %v2593 = vsel %vm172, %v2586, %v2588
      %v2594 = vsel %vm172, %v2590, %v2592
      %2601 = vst.msk [vmem:[#allocation2] sm:$0xff] %vm847, %v2586
      %2602 = vst [vmem:[#allocation2 + $0x8] sm:$0xff] %v2593
      %2603 = vst.msk [vmem:[#allocation2 + $0x10] sm:$0xff] %vm172, %v2588
      %2604 = vst.msk [vmem:[#allocation2 + $0x18] sm:$0xff] %vm847, %v2590
      %2605 = vst [vmem:[#allocation2 + $0x20] sm:$0xff] %v2594
      %2606 = vst.msk [vmem:[#allocation2 + $0x28] sm:$0xff] %vm172, %v2592
      %v2607 = vld [vmem:[#allocation2] sm:$0xff]
      %v2608 = vld [vmem:[#allocation2 + $0x8] sm:$0xff]
      %v2609 = vld [vmem:[#allocation2 + $0x18] sm:$0xff]
      %v2610 = vld [vmem:[#allocation2 + $0x20] sm:$0xff]
      %v2611 = vsel %vm305, %v2607, 0.0
      %v2612 = vsel %vm306, %v2608, 0.0
      %v2613 = vsel %vm305, %v2609, 0.0
      %v2614 = vsel %vm306, %v2610, 0.0
      %2615 = vst [vmem:[#allocation3] sm:$0xff] %v2611
      %2616 = vst [vmem:[#allocation3 + $0x8] sm:$0xff] %v2612
      %2617 = vst [vmem:[#allocation3 + $0x10] sm:$0xff] %v2613
      %2618 = vst [vmem:[#allocation3 + $0x18] sm:$0xff] %v2614
      %v2619 = vld [vmem:[#allocation2] sm:$0xff]
      %v2620 = vld [vmem:[#allocation2 + $0x8] sm:$0xff]
      %v2621 = vld [vmem:[#allocation2 + $0x10] sm:$0xff]
      %v2622 = vld [vmem:[#allocation2 + $0x18] sm:$0xff]
      %v2623 = vld [vmem:[#allocation2 + $0x20] sm:$0xff]
      %v2624 = vld [vmem:[#allocation2 + $0x28] sm:$0xff]
      %2631 = vrot.lane.b32.xlu0 %v2619, 127
      %v2632 = vpop.permute.xlu0 %2631
      %2633 = vrot.lane.b32.xlu0 %v2620, 127
      %v2634 = vpop.permute.xlu0 %2633
      %2635 = vrot.lane.b32.xlu0 %v2621, 127
      %v2636 = vpop.permute.xlu0 %2635
      %2637 = vrot.lane.b32.xlu0 %v2622, 127
      %v2638 = vpop.permute.xlu0 %2637
      %2639 = vrot.lane.b32.xlu0 %v2623, 127
      %v2640 = vpop.permute.xlu0 %2639
      %2641 = vrot.lane.b32.xlu0 %v2624, 127
      %v2642 = vpop.permute.xlu0 %2641
      %v2643 = vsel %vm323, %v2632, %v2634
      %v2644 = vsel %vm323, %v2634, %v2636
      %v2645 = vsel %vm323, %v2638, %v2640
      %v2646 = vsel %vm323, %v2640, %v2642
      %2651 = vst [vmem:[#allocation3 + $0x20] sm:$0xff] %v2643
      %2652 = vst [vmem:[#allocation3 + $0x28] sm:$0xff] %v2644
      %2653 = vst [vmem:[#allocation3 + $0x30] sm:$0xff] %v2645
      %2654 = vst [vmem:[#allocation3 + $0x38] sm:$0xff] %v2646
      %v2655 = vld [vmem:[#allocation2] sm:$0xff]
      %v2656 = vld [vmem:[#allocation2 + $0x8] sm:$0xff]
      %v2657 = vld [vmem:[#allocation2 + $0x10] sm:$0xff]
      %v2658 = vld [vmem:[#allocation2 + $0x18] sm:$0xff]
      %v2659 = vld [vmem:[#allocation2 + $0x20] sm:$0xff]
      %v2660 = vld [vmem:[#allocation2 + $0x28] sm:$0xff]
      %2667 = vrot.lane.b32.xlu0 %v2655, 126
      %v2668 = vpop.permute.xlu0 %2667
      %2669 = vrot.lane.b32.xlu0 %v2656, 126
      %v2670 = vpop.permute.xlu0 %2669
      %2671 = vrot.lane.b32.xlu0 %v2657, 126
      %v2672 = vpop.permute.xlu0 %2671
      %2673 = vrot.lane.b32.xlu0 %v2658, 126
      %v2674 = vpop.permute.xlu0 %2673
      %2675 = vrot.lane.b32.xlu0 %v2659, 126
      %v2676 = vpop.permute.xlu0 %2675
      %2677 = vrot.lane.b32.xlu0 %v2660, 126
      %v2678 = vpop.permute.xlu0 %2677
      %v2679 = vsel %vm346, %v2668, %v2670
      %v2680 = vsel %vm346, %v2670, %v2672
      %v2681 = vsel %vm346, %v2674, %v2676
      %v2682 = vsel %vm346, %v2676, %v2678
      %v2687 = vsel %vm335, %v2679, 0.0
      %v2688 = vsel %vm336, %v2680, 0.0
      %v2689 = vsel %vm335, %v2681, 0.0
      %v2690 = vsel %vm336, %v2682, 0.0
      %2691 = vst [vmem:[#allocation3 + $0x40] sm:$0xff] %v2687
      %2692 = vst [vmem:[#allocation3 + $0x48] sm:$0xff] %v2688
      %2693 = vst [vmem:[#allocation3 + $0x50] sm:$0xff] %v2689
      %2694 = vst [vmem:[#allocation3 + $0x58] sm:$0xff] %v2690
      %v2695 = vld [vmem:[#allocation2] sm:$0xff]
      %v2696 = vld [vmem:[#allocation2 + $0x8] sm:$0xff]
      %v2697 = vld [vmem:[#allocation2 + $0x10] sm:$0xff]
      %v2698 = vld [vmem:[#allocation2 + $0x18] sm:$0xff]
      %v2699 = vld [vmem:[#allocation2 + $0x20] sm:$0xff]
      %v2700 = vld [vmem:[#allocation2 + $0x28] sm:$0xff]
      %2707 = vrot.lane.b32.xlu0 %v2695, 112
      %v2708 = vpop.permute.xlu0 %2707
      %2709 = vrot.lane.b32.xlu0 %v2696, 112
      %v2710 = vpop.permute.xlu0 %2709
      %2711 = vrot.lane.b32.xlu0 %v2697, 112
      %v2712 = vpop.permute.xlu0 %2711
      %2713 = vrot.lane.b32.xlu0 %v2698, 112
      %v2714 = vpop.permute.xlu0 %2713
      %2715 = vrot.lane.b32.xlu0 %v2699, 112
      %v2716 = vpop.permute.xlu0 %2715
      %2717 = vrot.lane.b32.xlu0 %v2700, 112
      %v2718 = vpop.permute.xlu0 %2717
      %v2719 = vsel %vm367, %v2708, %v2710
      %v2720 = vsel %vm367, %v2710, %v2712
      %v2721 = vsel %vm367, %v2714, %v2716
      %v2722 = vsel %vm367, %v2716, %v2718
      %v2727 = vsel %vm305, %v2719, 0.0
      %v2728 = vsel %vm306, %v2720, 0.0
      %v2729 = vsel %vm305, %v2721, 0.0
      %v2730 = vsel %vm306, %v2722, 0.0
      %2731 = vst [vmem:[#allocation3 + $0x60] sm:$0xff] %v2727
      %2732 = vst [vmem:[#allocation3 + $0x68] sm:$0xff] %v2728
      %2733 = vst [vmem:[#allocation3 + $0x70] sm:$0xff] %v2729
      %2734 = vst [vmem:[#allocation3 + $0x78] sm:$0xff] %v2730
      %v2735 = vld [vmem:[#allocation2] sm:$0xff]
      %v2736 = vld [vmem:[#allocation2 + $0x8] sm:$0xff]
      %v2737 = vld [vmem:[#allocation2 + $0x10] sm:$0xff]
      %v2738 = vld [vmem:[#allocation2 + $0x18] sm:$0xff]
      %v2739 = vld [vmem:[#allocation2 + $0x20] sm:$0xff]
      %v2740 = vld [vmem:[#allocation2 + $0x28] sm:$0xff]
      %2747 = vrot.lane.b32.xlu0 %v2735, 111
      %v2748 = vpop.permute.xlu0 %2747
      %2749 = vrot.lane.b32.xlu0 %v2736, 111
      %v2750 = vpop.permute.xlu0 %2749
      %2751 = vrot.lane.b32.xlu0 %v2737, 111
      %v2752 = vpop.permute.xlu0 %2751
      %2753 = vrot.lane.b32.xlu0 %v2738, 111
      %v2754 = vpop.permute.xlu0 %2753
      %2755 = vrot.lane.b32.xlu0 %v2739, 111
      %v2756 = vpop.permute.xlu0 %2755
      %2757 = vrot.lane.b32.xlu0 %v2740, 111
      %v2758 = vpop.permute.xlu0 %2757
      %v2759 = vsel %vm388, %v2748, %v2750
      %v2760 = vsel %vm388, %v2750, %v2752
      %v2761 = vsel %vm388, %v2754, %v2756
      %v2762 = vsel %vm388, %v2756, %v2758
      %2767 = vst [vmem:[#allocation3 + $0x80] sm:$0xff] %v2759
      %2768 = vst [vmem:[#allocation3 + $0x88] sm:$0xff] %v2760
      %2769 = vst [vmem:[#allocation3 + $0x90] sm:$0xff] %v2761
      %2770 = vst [vmem:[#allocation3 + $0x98] sm:$0xff] %v2762
      %v2771 = vld [vmem:[#allocation2] sm:$0xff]
      %v2772 = vld [vmem:[#allocation2 + $0x8] sm:$0xff]
      %v2773 = vld [vmem:[#allocation2 + $0x10] sm:$0xff]
      %v2774 = vld [vmem:[#allocation2 + $0x18] sm:$0xff]
      %v2775 = vld [vmem:[#allocation2 + $0x20] sm:$0xff]
      %v2776 = vld [vmem:[#allocation2 + $0x28] sm:$0xff]
      %2783 = vrot.lane.b32.xlu0 %v2771, 110
      %v2784 = vpop.permute.xlu0 %2783
      %2785 = vrot.lane.b32.xlu0 %v2772, 110
      %v2786 = vpop.permute.xlu0 %2785
      %2787 = vrot.lane.b32.xlu0 %v2773, 110
      %v2788 = vpop.permute.xlu0 %2787
      %2789 = vrot.lane.b32.xlu0 %v2774, 110
      %v2790 = vpop.permute.xlu0 %2789
      %2791 = vrot.lane.b32.xlu0 %v2775, 110
      %v2792 = vpop.permute.xlu0 %2791
      %2793 = vrot.lane.b32.xlu0 %v2776, 110
      %v2794 = vpop.permute.xlu0 %2793
      %v2795 = vsel %vm407, %v2784, %v2786
      %v2796 = vsel %vm407, %v2786, %v2788
      %v2797 = vsel %vm407, %v2790, %v2792
      %v2798 = vsel %vm407, %v2792, %v2794
      %v2803 = vsel %vm335, %v2795, 0.0
      %v2804 = vsel %vm336, %v2796, 0.0
      %v2805 = vsel %vm335, %v2797, 0.0
      %v2806 = vsel %vm336, %v2798, 0.0
      %2807 = vst [vmem:[#allocation3 + $0xa0] sm:$0xff] %v2803
      %2808 = vst [vmem:[#allocation3 + $0xa8] sm:$0xff] %v2804
      %2809 = vst [vmem:[#allocation3 + $0xb0] sm:$0xff] %v2805
      %2810 = vst [vmem:[#allocation3 + $0xb8] sm:$0xff] %v2806
      %v2811 = vld [vmem:[#allocation2] sm:$0xff]
      %v2812 = vld [vmem:[#allocation2 + $0x8] sm:$0xff]
      %v2813 = vld [vmem:[#allocation2 + $0x10] sm:$0xff]
      %v2814 = vld [vmem:[#allocation2 + $0x18] sm:$0xff]
      %v2815 = vld [vmem:[#allocation2 + $0x20] sm:$0xff]
      %v2816 = vld [vmem:[#allocation2 + $0x28] sm:$0xff]
      %2823 = vrot.lane.b32.xlu0 %v2811, 96
      %v2824 = vpop.permute.xlu0 %2823
      %2825 = vrot.lane.b32.xlu0 %v2812, 96
      %v2826 = vpop.permute.xlu0 %2825
      %2827 = vrot.lane.b32.xlu0 %v2813, 96
      %v2828 = vpop.permute.xlu0 %2827
      %2829 = vrot.lane.b32.xlu0 %v2814, 96
      %v2830 = vpop.permute.xlu0 %2829
      %2831 = vrot.lane.b32.xlu0 %v2815, 96
      %v2832 = vpop.permute.xlu0 %2831
      %2833 = vrot.lane.b32.xlu0 %v2816, 96
      %v2834 = vpop.permute.xlu0 %2833
      %v2835 = vsel %vm428, %v2824, %v2826
      %v2836 = vsel %vm428, %v2826, %v2828
      %v2837 = vsel %vm428, %v2830, %v2832
      %v2838 = vsel %vm428, %v2832, %v2834
      %v2843 = vsel %vm305, %v2835, 0.0
      %v2844 = vsel %vm306, %v2836, 0.0
      %v2845 = vsel %vm305, %v2837, 0.0
      %v2846 = vsel %vm306, %v2838, 0.0
      %2847 = vst [vmem:[#allocation3 + $0xc0] sm:$0xff] %v2843
      %2848 = vst [vmem:[#allocation3 + $0xc8] sm:$0xff] %v2844
      %2849 = vst [vmem:[#allocation3 + $0xd0] sm:$0xff] %v2845
      %2850 = vst [vmem:[#allocation3 + $0xd8] sm:$0xff] %v2846
      %v2851 = vld [vmem:[#allocation2] sm:$0xff]
      %v2852 = vld [vmem:[#allocation2 + $0x8] sm:$0xff]
      %v2853 = vld [vmem:[#allocation2 + $0x10] sm:$0xff]
      %v2854 = vld [vmem:[#allocation2 + $0x18] sm:$0xff]
      %v2855 = vld [vmem:[#allocation2 + $0x20] sm:$0xff]
      %v2856 = vld [vmem:[#allocation2 + $0x28] sm:$0xff]
      %2863 = vrot.lane.b32.xlu0 %v2851, 95
      %v2864 = vpop.permute.xlu0 %2863
      %2865 = vrot.lane.b32.xlu0 %v2852, 95
      %v2866 = vpop.permute.xlu0 %2865
      %2867 = vrot.lane.b32.xlu0 %v2853, 95
      %v2868 = vpop.permute.xlu0 %2867
      %2869 = vrot.lane.b32.xlu0 %v2854, 95
      %v2870 = vpop.permute.xlu0 %2869
      %2871 = vrot.lane.b32.xlu0 %v2855, 95
      %v2872 = vpop.permute.xlu0 %2871
      %2873 = vrot.lane.b32.xlu0 %v2856, 95
      %v2874 = vpop.permute.xlu0 %2873
      %v2875 = vsel %vm449, %v2864, %v2866
      %v2876 = vsel %vm449, %v2866, %v2868
      %v2877 = vsel %vm449, %v2870, %v2872
      %v2878 = vsel %vm449, %v2872, %v2874
      %2883 = vst [vmem:[#allocation3 + $0xe0] sm:$0xff] %v2875
      %2884 = vst [vmem:[#allocation3 + $0xe8] sm:$0xff] %v2876
      %2885 = vst [vmem:[#allocation3 + $0xf0] sm:$0xff] %v2877
      %2886 = vst [vmem:[#allocation3 + $0xf8] sm:$0xff] %v2878
      %v2887 = vld [vmem:[#allocation2] sm:$0xff]
      %v2888 = vld [vmem:[#allocation2 + $0x8] sm:$0xff]
      %v2889 = vld [vmem:[#allocation2 + $0x10] sm:$0xff]
      %v2890 = vld [vmem:[#allocation2 + $0x18] sm:$0xff]
      %v2891 = vld [vmem:[#allocation2 + $0x20] sm:$0xff]
      %v2892 = vld [vmem:[#allocation2 + $0x28] sm:$0xff]
      %2899 = vrot.lane.b32.xlu0 %v2887, 94
      %v2900 = vpop.permute.xlu0 %2899
      %2901 = vrot.lane.b32.xlu0 %v2888, 94
      %v2902 = vpop.permute.xlu0 %2901
      %2903 = vrot.lane.b32.xlu0 %v2889, 94
      %v2904 = vpop.permute.xlu0 %2903
      %2905 = vrot.lane.b32.xlu0 %v2890, 94
      %v2906 = vpop.permute.xlu0 %2905
      %2907 = vrot.lane.b32.xlu0 %v2891, 94
      %v2908 = vpop.permute.xlu0 %2907
      %2909 = vrot.lane.b32.xlu0 %v2892, 94
      %v2910 = vpop.permute.xlu0 %2909
      %v2911 = vsel %vm468, %v2900, %v2902
      %v2912 = vsel %vm468, %v2902, %v2904
      %v2913 = vsel %vm468, %v2906, %v2908
      %v2914 = vsel %vm468, %v2908, %v2910
      %v2919 = vsel %vm335, %v2911, 0.0
      %v2920 = vsel %vm336, %v2912, 0.0
      %v2921 = vsel %vm335, %v2913, 0.0
      %v2922 = vsel %vm336, %v2914, 0.0
      %2923 = vst [vmem:[#allocation3 + $0x100] sm:$0xff] %v2919
      %2924 = vst [vmem:[#allocation3 + $0x108] sm:$0xff] %v2920
      %2925 = vst [vmem:[#allocation3 + $0x110] sm:$0xff] %v2921
      %2926 = vst [vmem:[#allocation3 + $0x118] sm:$0xff] %v2922
      %v2927 = vld [vmem:[%s1 + $0x14] sm:$0xff]
      %v2928 = vld [vmem:[#allocation3] sm:$0xff]
      %v2929 = vld [vmem:[#allocation3 + $0x8] sm:$0xff]
      %v2930 = vld [vmem:[#allocation3 + $0x10] sm:$0xff]
      %v2931 = vld [vmem:[#allocation3 + $0x18] sm:$0xff]
      %v2932 = vld [vmem:[#allocation3 + $0x20] sm:$0xff]
      %v2933 = vld [vmem:[#allocation3 + $0x28] sm:$0xff]
      %v2934 = vld [vmem:[#allocation3 + $0x30] sm:$0xff]
      %v2935 = vld [vmem:[#allocation3 + $0x38] sm:$0xff]
      %v2936 = vld [vmem:[#allocation3 + $0x40] sm:$0xff]
      %v2937 = vld [vmem:[#allocation3 + $0x48] sm:$0xff]
      %v2938 = vld [vmem:[#allocation3 + $0x50] sm:$0xff]
      %v2939 = vld [vmem:[#allocation3 + $0x58] sm:$0xff]
      %v2940 = vld [vmem:[#allocation3 + $0x60] sm:$0xff]
      %v2941 = vld [vmem:[#allocation3 + $0x68] sm:$0xff]
      %v2942 = vld [vmem:[#allocation3 + $0x70] sm:$0xff]
      %v2943 = vld [vmem:[#allocation3 + $0x78] sm:$0xff]
      %v2944 = vld [vmem:[#allocation3 + $0x80] sm:$0xff]
      %v2945 = vld [vmem:[#allocation3 + $0x88] sm:$0xff]
      %v2946 = vld [vmem:[#allocation3 + $0x90] sm:$0xff]
      %v2947 = vld [vmem:[#allocation3 + $0x98] sm:$0xff]
      %v2948 = vld [vmem:[#allocation3 + $0xa0] sm:$0xff]
      %v2949 = vld [vmem:[#allocation3 + $0xa8] sm:$0xff]
      %v2950 = vld [vmem:[#allocation3 + $0xb0] sm:$0xff]
      %v2951 = vld [vmem:[#allocation3 + $0xb8] sm:$0xff]
      %v2952 = vld [vmem:[#allocation3 + $0xc0] sm:$0xff]
      %v2953 = vld [vmem:[#allocation3 + $0xc8] sm:$0xff]
      %v2954 = vld [vmem:[#allocation3 + $0xd0] sm:$0xff]
      %v2955 = vld [vmem:[#allocation3 + $0xd8] sm:$0xff]
      %v2956 = vld [vmem:[#allocation3 + $0xe0] sm:$0xff]
      %v2957 = vld [vmem:[#allocation3 + $0xe8] sm:$0xff]
      %v2958 = vld [vmem:[#allocation3 + $0xf0] sm:$0xff]
      %v2959 = vld [vmem:[#allocation3 + $0xf8] sm:$0xff]
      %v2960 = vld [vmem:[#allocation3 + $0x100] sm:$0xff]
      %v2961 = vld [vmem:[#allocation3 + $0x108] sm:$0xff]
      %v2962 = vld [vmem:[#allocation3 + $0x110] sm:$0xff]
      %v2963 = vld [vmem:[#allocation3 + $0x118] sm:$0xff]
      %v2964 = vpack.c.bf16 %v2930, %v2928
      %v2965 = vpack.c.bf16 %v2931, %v2929
      %v2966 = vpack.c.bf16 %v2934, %v2932
      %v2967 = vpack.c.bf16 %v2935, %v2933
      %v2968 = vpack.c.bf16 %v2938, %v2936
      %v2969 = vpack.c.bf16 %v2939, %v2937
      %v2970 = vpack.c.bf16 %v2942, %v2940
      %v2971 = vpack.c.bf16 %v2943, %v2941
      %v2972 = vpack.c.bf16 %v2946, %v2944
      %v2973 = vpack.c.bf16 %v2947, %v2945
      %v2974 = vpack.c.bf16 %v2950, %v2948
      %v2975 = vpack.c.bf16 %v2951, %v2949
      %v2976 = vpack.c.bf16 %v2954, %v2952
      %v2977 = vpack.c.bf16 %v2955, %v2953
      %v2978 = vpack.c.bf16 %v2958, %v2956
      %v2979 = vpack.c.bf16 %v2959, %v2957
      %v2980 = vpack.c.bf16 %v2962, %v2960
      %v2981 = vpack.c.bf16 %v2963, %v2961
      %v2982 = vld [vmem:[%s2] sm:$0xff]
      %2984 = vset.pattern.permute.xlu0 5
      %2985 = vperm.xlu0 %2984, %v2982
      %v2986 = vpop.permute.xlu0 %2985
      %v2989 = vunpack.c.l.b16 %v2927
      %v2990 = vunpack.c.h.b16 %v2927
      %v2991 = vpack.c.b16 %v2989, %v2989
      %v2992 = vpack.c.b16 %v2990, %v2990
      %2993 = vrot.lane.b32.xlu0 %v2991, 120
      %v2994 = vpop.permute.xlu0 %2993
      %2995 = vrot.lane.b32.xlu0 %v2992, 120
      %v2996 = vpop.permute.xlu0 %2995
      %vm2997 = vcmask 982016
      %v2998 = vsel %vm2997, %v2994, %v2996
      %v3001 = vsel %vm1573, %v2996, 0
      %3003 = vmatprep.subr.bf16.mxu0 %v2965
      %3004 = vmatpush1.bf16.msra.mxu0 %v2964
      %3005 = vmatprep.subr.bf16.mxu0 %v2967
      %3006 = vmatpush1.bf16.msra.mxu0 %v2966
      %3007 = vmatprep.subr.bf16.mxu0 %v2969
      %3008 = vmatpush1.bf16.msra.mxu0 %v2968
      %3009 = vmatprep.subr.bf16.mxu0 %v2971
      %3010 = vmatpush1.bf16.msra.mxu0 %v2970
      %3011 = vmatprep.subr.bf16.mxu0 %v2973
      %3012 = vmatpush1.bf16.msra.mxu0 %v2972
      %3013 = vmatprep.subr.bf16.mxu0 %v2975
      %3014 = vmatpush1.bf16.msra.mxu0 %v2974
      %3015 = vmatprep.subr.bf16.mxu0 %v2977
      %3016 = vmatpush1.bf16.msra.mxu0 %v2976
      %3017 = vmatprep.subr.bf16.mxu0 %v2979
      %3018 = vmatpush1.bf16.msra.mxu0 %v2978
      %3019 = vmatprep.subr.bf16.mxu0 %v2981
      %3020 = vmatpush1.bf16.msra.mxu0 %v2980
      %3021 = vmatprep.subr.bf16.mxu0 0
      %3022 = vmatpush1.bf16.msra.mxu0 0
      %3023 = vmatprep.subr.bf16.mxu0 0
      %3024 = vmatpush1.bf16.msra.mxu0 0
      %3025 = vmatprep.subr.bf16.mxu0 0
      %3026 = vmatpush1.bf16.msra.mxu0 0
      %3027 = vmatprep.subr.bf16.mxu0 0
      %3028 = vmatpush1.bf16.msra.mxu0 0
      %3029 = vmatprep.subr.bf16.mxu0 0
      %3030 = vmatpush1.bf16.msra.mxu0 0
      %3031 = vmatprep.subr.bf16.mxu0 0
      %3032 = vmatpush1.bf16.msra.mxu0 0
      %3033 = vmatprep.subr.bf16.mxu0 0
      %3034 = vmatpush1.bf16.msra.mxu0 0
      %3035 = vmatprep.mubr.bf16.mxu0 %v3001
      %3036 = vmatmul.mubr.bf16.gmra.mrb[0].mxu0 %v2998
      %v3037 = vpop.f32.mrb[0].mxu0
      %v3038 = vadd.f32 %v2986, %v3037
      %v3039 = vpop.f32.mrb[0].mxu0
      %v3040 = vadd.f32 %v2986, %v3039
      %v3041 = vpop.f32.mrb[0].mxu0
      %v3042 = vpop.f32.mrb[0].mxu0
      %3043 = vdwg.mxu0
      %v3044 = vmax.f32 %v3038, 0.0
      %v3045 = vmax.f32 %v3040, 0.0
      %3048 = vrot.lane.b32.xlu0 %v3044, 17
      %v3049 = vpop.permute.xlu0 %3048
      %3050 = vrot.lane.b32.xlu0 %v3045, 17
      %v3051 = vpop.permute.xlu0 %3050
      %v3052 = vsel %vm172, %v3049, %v3051
      %3056 = vst.msk [vmem:[#allocation2] sm:$0xff] %vm847, %v3049
      %3057 = vst [vmem:[#allocation2 + $0x8] sm:$0xff] %v3052
      %3058 = vst.msk [vmem:[#allocation2 + $0x10] sm:$0xff] %vm172, %v3051
      %v3059 = vld [vmem:[#allocation2] sm:$0xff]
      %v3060 = vld [vmem:[#allocation2 + $0x8] sm:$0xff]
      %v3061 = vsel %vm305, %v3059, 0.0
      %v3062 = vsel %vm306, %v3060, 0.0
      %3063 = vst [vmem:[#allocation3] sm:$0xff] %v3061
      %3064 = vst [vmem:[#allocation3 + $0x8] sm:$0xff] %v3062
      %v3065 = vld [vmem:[#allocation2] sm:$0xff]
      %v3066 = vld [vmem:[#allocation2 + $0x8] sm:$0xff]
      %v3067 = vld [vmem:[#allocation2 + $0x10] sm:$0xff]
      %3071 = vrot.lane.b32.xlu0 %v3065, 127
      %v3072 = vpop.permute.xlu0 %3071
      %3073 = vrot.lane.b32.xlu0 %v3066, 127
      %v3074 = vpop.permute.xlu0 %3073
      %3075 = vrot.lane.b32.xlu0 %v3067, 127
      %v3076 = vpop.permute.xlu0 %3075
      %v3077 = vsel %vm323, %v3072, %v3074
      %v3078 = vsel %vm323, %v3074, %v3076
      %3081 = vst [vmem:[#allocation3 + $0x10] sm:$0xff] %v3077
      %3082 = vst [vmem:[#allocation3 + $0x18] sm:$0xff] %v3078
      %v3083 = vld [vmem:[#allocation2] sm:$0xff]
      %v3084 = vld [vmem:[#allocation2 + $0x8] sm:$0xff]
      %v3085 = vld [vmem:[#allocation2 + $0x10] sm:$0xff]
      %3089 = vrot.lane.b32.xlu0 %v3083, 126
      %v3090 = vpop.permute.xlu0 %3089
      %3091 = vrot.lane.b32.xlu0 %v3084, 126
      %v3092 = vpop.permute.xlu0 %3091
      %3093 = vrot.lane.b32.xlu0 %v3085, 126
      %v3094 = vpop.permute.xlu0 %3093
      %v3095 = vsel %vm346, %v3090, %v3092
      %v3096 = vsel %vm346, %v3092, %v3094
      %v3099 = vsel %vm335, %v3095, 0.0
      %v3100 = vsel %vm336, %v3096, 0.0
      %3101 = vst [vmem:[#allocation3 + $0x20] sm:$0xff] %v3099
      %3102 = vst [vmem:[#allocation3 + $0x28] sm:$0xff] %v3100
      %v3103 = vld [vmem:[#allocation2] sm:$0xff]
      %v3104 = vld [vmem:[#allocation2 + $0x8] sm:$0xff]
      %v3105 = vld [vmem:[#allocation2 + $0x10] sm:$0xff]
      %3109 = vrot.lane.b32.xlu0 %v3103, 112
      %v3110 = vpop.permute.xlu0 %3109
      %3111 = vrot.lane.b32.xlu0 %v3104, 112
      %v3112 = vpop.permute.xlu0 %3111
      %3113 = vrot.lane.b32.xlu0 %v3105, 112
      %v3114 = vpop.permute.xlu0 %3113
      %v3115 = vsel %vm367, %v3110, %v3112
      %v3116 = vsel %vm367, %v3112, %v3114
      %v3119 = vsel %vm305, %v3115, 0.0
      %v3120 = vsel %vm306, %v3116, 0.0
      %3121 = vst [vmem:[#allocation3 + $0x30] sm:$0xff] %v3119
      %3122 = vst [vmem:[#allocation3 + $0x38] sm:$0xff] %v3120
      %v3123 = vld [vmem:[#allocation2] sm:$0xff]
      %v3124 = vld [vmem:[#allocation2 + $0x8] sm:$0xff]
      %v3125 = vld [vmem:[#allocation2 + $0x10] sm:$0xff]
      %3129 = vrot.lane.b32.xlu0 %v3123, 111
      %v3130 = vpop.permute.xlu0 %3129
      %3131 = vrot.lane.b32.xlu0 %v3124, 111
      %v3132 = vpop.permute.xlu0 %3131
      %3133 = vrot.lane.b32.xlu0 %v3125, 111
      %v3134 = vpop.permute.xlu0 %3133
      %v3135 = vsel %vm388, %v3130, %v3132
      %v3136 = vsel %vm388, %v3132, %v3134
      %3139 = vst [vmem:[#allocation3 + $0x40] sm:$0xff] %v3135
      %3140 = vst [vmem:[#allocation3 + $0x48] sm:$0xff] %v3136
      %v3141 = vld [vmem:[#allocation2] sm:$0xff]
      %v3142 = vld [vmem:[#allocation2 + $0x8] sm:$0xff]
      %v3143 = vld [vmem:[#allocation2 + $0x10] sm:$0xff]
      %3147 = vrot.lane.b32.xlu0 %v3141, 110
      %v3148 = vpop.permute.xlu0 %3147
      %3149 = vrot.lane.b32.xlu0 %v3142, 110
      %v3150 = vpop.permute.xlu0 %3149
      %3151 = vrot.lane.b32.xlu0 %v3143, 110
      %v3152 = vpop.permute.xlu0 %3151
      %v3153 = vsel %vm407, %v3148, %v3150
      %v3154 = vsel %vm407, %v3150, %v3152
      %v3157 = vsel %vm335, %v3153, 0.0
      %v3158 = vsel %vm336, %v3154, 0.0
      %3159 = vst [vmem:[#allocation3 + $0x50] sm:$0xff] %v3157
      %3160 = vst [vmem:[#allocation3 + $0x58] sm:$0xff] %v3158
      %v3161 = vld [vmem:[#allocation2] sm:$0xff]
      %v3162 = vld [vmem:[#allocation2 + $0x8] sm:$0xff]
      %v3163 = vld [vmem:[#allocation2 + $0x10] sm:$0xff]
      %3167 = vrot.lane.b32.xlu0 %v3161, 96
      %v3168 = vpop.permute.xlu0 %3167
      %3169 = vrot.lane.b32.xlu0 %v3162, 96
      %v3170 = vpop.permute.xlu0 %3169
      %3171 = vrot.lane.b32.xlu0 %v3163, 96
      %v3172 = vpop.permute.xlu0 %3171
      %v3173 = vsel %vm428, %v3168, %v3170
      %v3174 = vsel %vm428, %v3170, %v3172
      %v3177 = vsel %vm305, %v3173, 0.0
      %v3178 = vsel %vm306, %v3174, 0.0
      %3179 = vst [vmem:[#allocation3 + $0x60] sm:$0xff] %v3177
      %3180 = vst [vmem:[#allocation3 + $0x68] sm:$0xff] %v3178
      %v3181 = vld [vmem:[#allocation2] sm:$0xff]
      %v3182 = vld [vmem:[#allocation2 + $0x8] sm:$0xff]
      %v3183 = vld [vmem:[#allocation2 + $0x10] sm:$0xff]
      %3187 = vrot.lane.b32.xlu0 %v3181, 95
      %v3188 = vpop.permute.xlu0 %3187
      %3189 = vrot.lane.b32.xlu0 %v3182, 95
      %v3190 = vpop.permute.xlu0 %3189
      %3191 = vrot.lane.b32.xlu0 %v3183, 95
      %v3192 = vpop.permute.xlu0 %3191
      %v3193 = vsel %vm449, %v3188, %v3190
      %v3194 = vsel %vm449, %v3190, %v3192
      %3197 = vst [vmem:[#allocation3 + $0x70] sm:$0xff] %v3193
      %3198 = vst [vmem:[#allocation3 + $0x78] sm:$0xff] %v3194
      %v3199 = vld [vmem:[#allocation2] sm:$0xff]
      %v3200 = vld [vmem:[#allocation2 + $0x8] sm:$0xff]
      %v3201 = vld [vmem:[#allocation2 + $0x10] sm:$0xff]
      %3205 = vrot.lane.b32.xlu0 %v3199, 94
      %v3206 = vpop.permute.xlu0 %3205
      %3207 = vrot.lane.b32.xlu0 %v3200, 94
      %v3208 = vpop.permute.xlu0 %3207
      %3209 = vrot.lane.b32.xlu0 %v3201, 94
      %v3210 = vpop.permute.xlu0 %3209
      %v3211 = vsel %vm468, %v3206, %v3208
      %v3212 = vsel %vm468, %v3208, %v3210
      %v3215 = vsel %vm335, %v3211, 0.0
      %v3216 = vsel %vm336, %v3212, 0.0
      %3217 = vst [vmem:[#allocation3 + $0x80] sm:$0xff] %v3215
      %3218 = vst [vmem:[#allocation3 + $0x88] sm:$0xff] %v3216
      %v3219 = vld [vmem:[%s1 + $0x18] sm:$0x3]
      %v3220 = vld [vmem:[#allocation3] sm:$0xff]
      %v3221 = vld [vmem:[#allocation3 + $0x8] sm:$0xff]
      %v3222 = vld [vmem:[#allocation3 + $0x10] sm:$0xff]
      %v3223 = vld [vmem:[#allocation3 + $0x18] sm:$0xff]
      %v3224 = vld [vmem:[#allocation3 + $0x20] sm:$0xff]
      %v3225 = vld [vmem:[#allocation3 + $0x28] sm:$0xff]
      %v3226 = vld [vmem:[#allocation3 + $0x30] sm:$0xff]
      %v3227 = vld [vmem:[#allocation3 + $0x38] sm:$0xff]
      %v3228 = vld [vmem:[#allocation3 + $0x40] sm:$0xff]
      %v3229 = vld [vmem:[#allocation3 + $0x48] sm:$0xff]
      %v3230 = vld [vmem:[#allocation3 + $0x50] sm:$0xff]
      %v3231 = vld [vmem:[#allocation3 + $0x58] sm:$0xff]
      %v3232 = vld [vmem:[#allocation3 + $0x60] sm:$0xff]
      %v3233 = vld [vmem:[#allocation3 + $0x68] sm:$0xff]
      %v3234 = vld [vmem:[#allocation3 + $0x70] sm:$0xff]
      %v3235 = vld [vmem:[#allocation3 + $0x78] sm:$0xff]
      %v3236 = vld [vmem:[#allocation3 + $0x80] sm:$0xff]
      %v3237 = vld [vmem:[#allocation3 + $0x88] sm:$0xff]
      %v3238 = vpack.c.bf16 %v3222, %v3220
      %v3239 = vpack.c.bf16 %v3223, %v3221
      %v3240 = vpack.c.bf16 %v3226, %v3224
      %v3241 = vpack.c.bf16 %v3227, %v3225
      %v3242 = vpack.c.bf16 %v3230, %v3228
      %v3243 = vpack.c.bf16 %v3231, %v3229
      %v3244 = vpack.c.bf16 %v3234, %v3232
      %v3245 = vpack.c.bf16 %v3235, %v3233
      %v3246 = vpack.c.bf16 %v3236, %v3236
      %v3247 = vpack.c.bf16 %v3237, %v3237
      %v3248 = vld [vmem:[%s2] sm:$0xf]
      %3250 = vset.pattern.permute.xlu0 6
      %3251 = vperm.xlu0 %3250, %v3248
      %v3252 = vpop.permute.xlu0 %3251
      %v3255 = vunpack.c.l.b16 %v3219
      %v3256 = vpack.c.b16 %v3255, %v3255
      %3257 = vrot.lane.b32.xlu0 %v3256, 104
      %v3258 = vpop.permute.xlu0 %3257
      %v3260 = vsel %vm512, %v3258, 0
      %v3263 = vsel %vm516, %v3246, 0
      %v3266 = vsel %vm516, %v3247, 0
      %3268 = vmatprep.subr.bf16.mxu0 %v3239
      %3269 = vmatpush1.bf16.msra.mxu0 %v3238
      %3270 = vmatprep.subr.bf16.mxu0 %v3241
      %3271 = vmatpush1.bf16.msra.mxu0 %v3240
      %3272 = vmatprep.subr.bf16.mxu0 %v3243
      %3273 = vmatpush1.bf16.msra.mxu0 %v3242
      %3274 = vmatprep.subr.bf16.mxu0 %v3245
      %3275 = vmatpush1.bf16.msra.mxu0 %v3244
      %3276 = vmatprep.subr.bf16.mxu0 %v3266
      %3277 = vmatpush1.bf16.msra.mxu0 %v3263
      %3278 = vmatprep.subr.bf16.mxu0 0
      %3279 = vmatpush1.bf16.msra.mxu0 0
      %3280 = vmatprep.subr.bf16.mxu0 0
      %3281 = vmatpush1.bf16.msra.mxu0 0
      %3282 = vmatprep.subr.bf16.mxu0 0
      %3283 = vmatpush1.bf16.msra.mxu0 0
      %3284 = vmatprep.subr.bf16.mxu0 0
      %3285 = vmatpush1.bf16.msra.mxu0 0
      %3286 = vmatprep.subr.bf16.mxu0 0
      %3287 = vmatpush1.bf16.msra.mxu0 0
      %3288 = vmatprep.subr.bf16.mxu0 0
      %3289 = vmatpush1.bf16.msra.mxu0 0
      %3290 = vmatprep.subr.bf16.mxu0 0
      %3291 = vmatpush1.bf16.msra.mxu0 0
      %3292 = vmatprep.subr.bf16.mxu0 0
      %3293 = vmatpush1.bf16.msra.mxu0 0
      %3294 = vmatprep.subr.bf16.mxu0 0
      %3295 = vmatpush1.bf16.msra.mxu0 0
      %3296 = vmatprep.subr.bf16.mxu0 0
      %3297 = vmatpush1.bf16.msra.mxu0 0
      %3298 = vmatprep.subr.bf16.mxu0 0
      %3299 = vmatpush1.bf16.msra.mxu0 0
      %3300 = vmatprep.mubr.bf16.mxu0 0
      %3301 = vmatmul.mubr.bf16.gmra.mrb[0].mxu0 %v3260
      %v3302 = vpop.f32.mrb[0].mxu0
      %v3303 = vadd.f32 %v3252, %v3302
      %v3304 = vpop.f32.mrb[0].mxu0
      %v3305 = vadd.f32 %v3252, %v3304
      %v3306 = vpop.f32.mrb[0].mxu0
      %v3307 = vpop.f32.mrb[0].mxu0
      %3308 = vdwg.mxu0
      %v3309 = vmax.f32 %v3303, 0.0
      %v3310 = vmax.f32 %v3305, 0.0
      %3313 = vrot.lane.b32.xlu0 %v3309, 17
      %v3314 = vpop.permute.xlu0 %3313
      %3315 = vrot.lane.b32.xlu0 %v3310, 17
      %v3316 = vpop.permute.xlu0 %3315
      %v3317 = vsel %vm172, %v3314, %v3316
      %3321 = vst.msk [vmem:[#allocation2] sm:$0xf] %vm574, %v3314
      %3322 = vst [vmem:[#allocation2 + $0x8] sm:$0xf] %v3317
      %3323 = vst.msk [vmem:[#allocation2 + $0x10] sm:$0xf] %vm577, %v3316
      %v3324 = vld [vmem:[#allocation2] sm:$0xf]
      %v3325 = vld [vmem:[#allocation2 + $0x8] sm:$0xf]
      %v3326 = vsel %vm305, %v3324, 0.0
      %v3327 = vsel %vm306, %v3325, 0.0
      %3328 = vst [vmem:[#allocation3] sm:$0xf] %v3326
      %3329 = vst [vmem:[#allocation3 + $0x8] sm:$0xf] %v3327
      %v3330 = vld [vmem:[#allocation2] sm:$0xf]
      %v3331 = vld [vmem:[#allocation2 + $0x8] sm:$0xf]
      %v3332 = vld [vmem:[#allocation2 + $0x10] sm:$0xf]
      %3336 = vrot.lane.b32.xlu0 %v3330, 127
      %v3337 = vpop.permute.xlu0 %3336
      %3338 = vrot.lane.b32.xlu0 %v3331, 127
      %v3339 = vpop.permute.xlu0 %3338
      %3340 = vrot.lane.b32.xlu0 %v3332, 127
      %v3341 = vpop.permute.xlu0 %3340
      %v3342 = vsel %vm323, %v3337, %v3339
      %v3343 = vsel %vm323, %v3339, %v3341
      %3346 = vst [vmem:[#allocation3 + $0x10] sm:$0xf] %v3342
      %3347 = vst [vmem:[#allocation3 + $0x18] sm:$0xf] %v3343
      %v3348 = vld [vmem:[#allocation2] sm:$0xf]
      %v3349 = vld [vmem:[#allocation2 + $0x8] sm:$0xf]
      %v3350 = vld [vmem:[#allocation2 + $0x10] sm:$0xf]
      %3354 = vrot.lane.b32.xlu0 %v3348, 126
      %v3355 = vpop.permute.xlu0 %3354
      %3356 = vrot.lane.b32.xlu0 %v3349, 126
      %v3357 = vpop.permute.xlu0 %3356
      %3358 = vrot.lane.b32.xlu0 %v3350, 126
      %v3359 = vpop.permute.xlu0 %3358
      %v3360 = vsel %vm346, %v3355, %v3357
      %v3361 = vsel %vm346, %v3357, %v3359
      %v3364 = vsel %vm335, %v3360, 0.0
      %v3365 = vsel %vm336, %v3361, 0.0
      %3366 = vst [vmem:[#allocation3 + $0x20] sm:$0xf] %v3364
      %3367 = vst [vmem:[#allocation3 + $0x28] sm:$0xf] %v3365
      %v3368 = vld [vmem:[#allocation2] sm:$0xf]
      %v3369 = vld [vmem:[#allocation2 + $0x8] sm:$0xf]
      %v3370 = vld [vmem:[#allocation2 + $0x10] sm:$0xf]
      %3374 = vrot.lane.b32.xlu0 %v3368, 112
      %v3375 = vpop.permute.xlu0 %3374
      %3376 = vrot.lane.b32.xlu0 %v3369, 112
      %v3377 = vpop.permute.xlu0 %3376
      %3378 = vrot.lane.b32.xlu0 %v3370, 112
      %v3379 = vpop.permute.xlu0 %3378
      %v3380 = vsel %vm367, %v3375, %v3377
      %v3381 = vsel %vm367, %v3377, %v3379
      %v3384 = vsel %vm305, %v3380, 0.0
      %v3385 = vsel %vm306, %v3381, 0.0
      %3386 = vst [vmem:[#allocation3 + $0x30] sm:$0xf] %v3384
      %3387 = vst [vmem:[#allocation3 + $0x38] sm:$0xf] %v3385
      %v3388 = vld [vmem:[#allocation2] sm:$0xf]
      %v3389 = vld [vmem:[#allocation2 + $0x8] sm:$0xf]
      %v3390 = vld [vmem:[#allocation2 + $0x10] sm:$0xf]
      %3394 = vrot.lane.b32.xlu0 %v3388, 111
      %v3395 = vpop.permute.xlu0 %3394
      %3396 = vrot.lane.b32.xlu0 %v3389, 111
      %v3397 = vpop.permute.xlu0 %3396
      %3398 = vrot.lane.b32.xlu0 %v3390, 111
      %v3399 = vpop.permute.xlu0 %3398
      %v3400 = vsel %vm388, %v3395, %v3397
      %v3401 = vsel %vm388, %v3397, %v3399
      %3404 = vst [vmem:[#allocation3 + $0x40] sm:$0xf] %v3400
      %3405 = vst [vmem:[#allocation3 + $0x48] sm:$0xf] %v3401
      %v3406 = vld [vmem:[#allocation2] sm:$0xf]
      %v3407 = vld [vmem:[#allocation2 + $0x8] sm:$0xf]
      %v3408 = vld [vmem:[#allocation2 + $0x10] sm:$0xf]
      %3412 = vrot.lane.b32.xlu0 %v3406, 110
      %v3413 = vpop.permute.xlu0 %3412
      %3414 = vrot.lane.b32.xlu0 %v3407, 110
      %v3415 = vpop.permute.xlu0 %3414
      %3416 = vrot.lane.b32.xlu0 %v3408, 110
      %v3417 = vpop.permute.xlu0 %3416
      %v3418 = vsel %vm407, %v3413, %v3415
      %v3419 = vsel %vm407, %v3415, %v3417
      %v3422 = vsel %vm335, %v3418, 0.0
      %v3423 = vsel %vm336, %v3419, 0.0
      %3424 = vst [vmem:[#allocation3 + $0x50] sm:$0xf] %v3422
      %3425 = vst [vmem:[#allocation3 + $0x58] sm:$0xf] %v3423
      %v3426 = vld [vmem:[#allocation2] sm:$0xf]
      %v3427 = vld [vmem:[#allocation2 + $0x8] sm:$0xf]
      %v3428 = vld [vmem:[#allocation2 + $0x10] sm:$0xf]
      %3432 = vrot.lane.b32.xlu0 %v3426, 96
      %v3433 = vpop.permute.xlu0 %3432
      %3434 = vrot.lane.b32.xlu0 %v3427, 96
      %v3435 = vpop.permute.xlu0 %3434
      %3436 = vrot.lane.b32.xlu0 %v3428, 96
      %v3437 = vpop.permute.xlu0 %3436
      %v3438 = vsel %vm428, %v3433, %v3435
      %v3439 = vsel %vm428, %v3435, %v3437
      %v3442 = vsel %vm305, %v3438, 0.0
      %v3443 = vsel %vm306, %v3439, 0.0
      %3444 = vst [vmem:[#allocation3 + $0x60] sm:$0xf] %v3442
      %3445 = vst [vmem:[#allocation3 + $0x68] sm:$0xf] %v3443
      %v3446 = vld [vmem:[#allocation2] sm:$0xf]
      %v3447 = vld [vmem:[#allocation2 + $0x8] sm:$0xf]
      %v3448 = vld [vmem:[#allocation2 + $0x10] sm:$0xf]
      %3452 = vrot.lane.b32.xlu0 %v3446, 95
      %v3453 = vpop.permute.xlu0 %3452
      %3454 = vrot.lane.b32.xlu0 %v3447, 95
      %v3455 = vpop.permute.xlu0 %3454
      %3456 = vrot.lane.b32.xlu0 %v3448, 95
      %v3457 = vpop.permute.xlu0 %3456
      %v3458 = vsel %vm449, %v3453, %v3455
      %v3459 = vsel %vm449, %v3455, %v3457
      %3462 = vst [vmem:[#allocation3 + $0x70] sm:$0xf] %v3458
      %3463 = vst [vmem:[#allocation3 + $0x78] sm:$0xf] %v3459
      %v3464 = vld [vmem:[#allocation2] sm:$0xf]
      %v3465 = vld [vmem:[#allocation2 + $0x8] sm:$0xf]
      %v3466 = vld [vmem:[#allocation2 + $0x10] sm:$0xf]
      %3470 = vrot.lane.b32.xlu0 %v3464, 94
      %v3471 = vpop.permute.xlu0 %3470
      %3472 = vrot.lane.b32.xlu0 %v3465, 94
      %v3473 = vpop.permute.xlu0 %3472
      %3474 = vrot.lane.b32.xlu0 %v3466, 94
      %v3475 = vpop.permute.xlu0 %3474
      %v3476 = vsel %vm468, %v3471, %v3473
      %v3477 = vsel %vm468, %v3473, %v3475
      %v3480 = vsel %vm335, %v3476, 0.0
      %v3481 = vsel %vm336, %v3477, 0.0
      %3482 = vst [vmem:[#allocation3 + $0x80] sm:$0xf] %v3480
      %3483 = vst [vmem:[#allocation3 + $0x88] sm:$0xf] %v3481
      %v3484 = vld [vmem:[%s1 + $0x18] sm:$0x33]
      %v3485 = vld [vmem:[#allocation3] sm:$0xff]
      %v3486 = vld [vmem:[#allocation3 + $0x8] sm:$0xff]
      %v3487 = vld [vmem:[#allocation3 + $0x10] sm:$0xff]
      %v3488 = vld [vmem:[#allocation3 + $0x18] sm:$0xff]
      %v3489 = vld [vmem:[#allocation3 + $0x20] sm:$0xff]
      %v3490 = vld [vmem:[#allocation3 + $0x28] sm:$0xff]
      %v3491 = vld [vmem:[#allocation3 + $0x30] sm:$0xff]
      %v3492 = vld [vmem:[#allocation3 + $0x38] sm:$0xff]
      %v3493 = vld [vmem:[#allocation3 + $0x40] sm:$0xff]
      %v3494 = vld [vmem:[#allocation3 + $0x48] sm:$0xff]
      %v3495 = vld [vmem:[#allocation3 + $0x50] sm:$0xff]
      %v3496 = vld [vmem:[#allocation3 + $0x58] sm:$0xff]
      %v3497 = vld [vmem:[#allocation3 + $0x60] sm:$0xff]
      %v3498 = vld [vmem:[#allocation3 + $0x68] sm:$0xff]
      %v3499 = vld [vmem:[#allocation3 + $0x70] sm:$0xff]
      %v3500 = vld [vmem:[#allocation3 + $0x78] sm:$0xff]
      %v3501 = vld [vmem:[#allocation3 + $0x80] sm:$0xff]
      %v3502 = vld [vmem:[#allocation3 + $0x88] sm:$0xff]
      %v3503 = vpack.c.bf16 %v3487, %v3485
      %v3504 = vpack.c.bf16 %v3488, %v3486
      %v3505 = vpack.c.bf16 %v3491, %v3489
      %v3506 = vpack.c.bf16 %v3492, %v3490
      %v3507 = vpack.c.bf16 %v3495, %v3493
      %v3508 = vpack.c.bf16 %v3496, %v3494
      %v3509 = vpack.c.bf16 %v3499, %v3497
      %v3510 = vpack.c.bf16 %v3500, %v3498
      %v3511 = vpack.c.bf16 %v3501, %v3501
      %v3512 = vpack.c.bf16 %v3502, %v3502
      %v3513 = vld [vmem:[%s2] sm:$0x7]
      %3515 = vset.pattern.permute.xlu0 7
      %3516 = vperm.xlu0 %3515, %v3513
      %v3517 = vpop.permute.xlu0 %3516
      %v3520 = vunpack.c.l.b16 %v3484
      %v3521 = vunpack.c.h.b16 %v3484
      %v3522 = vpack.c.b16 %v3520, %v3520
      %v3523 = vpack.c.b16 %v3521, %v3521
      %3524 = vrot.lane.b32.xlu0 %v3522, 32
      %v3525 = vpop.permute.xlu0 %3524
      %3526 = vrot.lane.b32.xlu0 %v3523, 32
      %v3527 = vpop.permute.xlu0 %3526
      %vm3528 = vcmask 261120
      %v3529 = vsel %vm3528, %v3525, %v3527
      %v3531 = vsel %vm512, %v3529, 0
      %v3534 = vsel %vm516, %v3511, 0
      %v3537 = vsel %vm516, %v3512, 0
      %3539 = vmatprep.subr.bf16.mxu0 %v3504
      %3540 = vmatpush1.bf16.msra.mxu0 %v3503
      %3541 = vmatprep.subr.bf16.mxu0 %v3506
      %3542 = vmatpush1.bf16.msra.mxu0 %v3505
      %3543 = vmatprep.subr.bf16.mxu0 %v3508
      %3544 = vmatpush1.bf16.msra.mxu0 %v3507
      %3545 = vmatprep.subr.bf16.mxu0 %v3510
      %3546 = vmatpush1.bf16.msra.mxu0 %v3509
      %3547 = vmatprep.subr.bf16.mxu0 %v3537
      %3548 = vmatpush1.bf16.msra.mxu0 %v3534
      %3549 = vmatprep.subr.bf16.mxu0 0
      %3550 = vmatpush1.bf16.msra.mxu0 0
      %3551 = vmatprep.subr.bf16.mxu0 0
      %3552 = vmatpush1.bf16.msra.mxu0 0
      %3553 = vmatprep.subr.bf16.mxu0 0
      %3554 = vmatpush1.bf16.msra.mxu0 0
      %3555 = vmatprep.subr.bf16.mxu0 0
      %3556 = vmatpush1.bf16.msra.mxu0 0
      %3557 = vmatprep.subr.bf16.mxu0 0
      %3558 = vmatpush1.bf16.msra.mxu0 0
      %3559 = vmatprep.subr.bf16.mxu0 0
      %3560 = vmatpush1.bf16.msra.mxu0 0
      %3561 = vmatprep.subr.bf16.mxu0 0
      %3562 = vmatpush1.bf16.msra.mxu0 0
      %3563 = vmatprep.subr.bf16.mxu0 0
      %3564 = vmatpush1.bf16.msra.mxu0 0
      %3565 = vmatprep.subr.bf16.mxu0 0
      %3566 = vmatpush1.bf16.msra.mxu0 0
      %3567 = vmatprep.subr.bf16.mxu0 0
      %3568 = vmatpush1.bf16.msra.mxu0 0
      %3569 = vmatprep.subr.bf16.mxu0 0
      %3570 = vmatpush1.bf16.msra.mxu0 0
      %3571 = vmatprep.mubr.bf16.mxu0 0
      %3572 = vmatmul.mubr.bf16.gmra.mrb[0].mxu0 %v3531
      %v3573 = vpop.f32.mrb[0].mxu0
      %v3574 = vadd.f32 %v3517, %v3573
      %v3575 = vpop.f32.mrb[0].mxu0
      %v3576 = vadd.f32 %v3517, %v3575
      %v3577 = vpop.f32.mrb[0].mxu0
      %v3578 = vpop.f32.mrb[0].mxu0
      %3579 = vdwg.mxu0
      %v3582 = vcombine.low %v3574, %v3576
      %3584 = vst [vmem:[%s170] sm:$0x77] %v3582
      %p3585 = scmp.lt.s32.totalorder %s14, 1
      %s3586 = scalar_select %p3585, %s14, 1
      %s3587 = smul.addr %s3586, 2
      %s3588 = smul.addr %s3587, 4
      %s3589 = scalar_lea.vmem %s3, %s3588
      // Predicated region
      $region33: #{deep_cnn_forward.1} parent=31 // pred_check
        %p3590 = pneg %p100
      $region34: #{deep_cnn_forward.1} parent=31 // pred_check_branch
        %3592 = sbr.rel (%p3590) target = $region36
      $region35: #{deep_cnn_forward.1} parent=31 // pred_region
        _
      $region36: #{deep_cnn_forward.1} parent=31 // pred_fallthru
        _
    $region32: #{deep_cnn_forward.1} parent=5 // pred_fallthru
      _
    %p3593 = scmp.le.s32.totalorder 2, %s9
    // Predicated region
    $region37: #{deep_cnn_forward.1} parent=5 // pred_check
      %p3594 = pneg %p3593
    $region38: #{deep_cnn_forward.1} parent=5 // pred_check_branch
      %3596 = sbr.rel (%p3594) target = $region40
    $region39: #{deep_cnn_forward.1} parent=5 // pred_region
      %s3597 = ssub.s32 %s9, 2
      // Predicated region
      $region41: #{deep_cnn_forward.1} parent=39 // pred_check
        %p3598 = pneg %p106
      $region42: #{deep_cnn_forward.1} parent=39 // pred_check_branch
        %3600 = sbr.rel (%p3598) target = $region44
      $region43: #{deep_cnn_forward.1} parent=39 // pred_region
        %p3601 = scmp.lt.s32.totalorder %s15, 1
        %s3602 = scalar_select %p3601, %s15, 1
        %s3603 = smul.addr %s3602, 2
        %s3604 = smul.addr %s3603, 4
        %s3605 = scalar_lea.vmem %s3, %s3604
      $region44: #{deep_cnn_forward.1} parent=39 // pred_fallthru
        _
    $region40: #{deep_cnn_forward.1} parent=5 // pred_fallthru
      _
  $region6: #{deep_cnn_forward.1} parent=0 // loop_footer
    %s13 = sadd.s32 1, %s9
  $region7: #{deep_cnn_forward.1} parent=0 // loop_footer_branch
    %8 = sbr.rel target = $region3
  $region8: #{deep_cnn_forward.1} parent=0 // loop_exit
    _

</llo_original>
